<compile_context>
chip_gen: v5e
topology: v5e:2x2
jax: 0.10.0
libtpu: 0.0.40
codegen_flags: <defaults>
</compile_context>

<pallas_src>
import math
import functools

import jax
import jax.numpy as jnp
from jax.experimental import pallas as pl
from jax.experimental.pallas import tpu as pltpu


# ---------------------------------------------------------------------------
# math helpers usable inside Pallas kernels
# ---------------------------------------------------------------------------
def _erf(x):
    # Abramowitz & Stegun 7.1.26, |err| < 1.5e-7 -> erf-exact GELU at f32 accuracy
    a1, a2, a3, a4, a5 = 0.254829592, -0.284496736, 1.421413741, -1.453152027, 1.061405429
    p = 0.3275911
    sgn = jnp.where(x >= 0.0, 1.0, -1.0)
    ax = jnp.abs(x)
    t = 1.0 / (1.0 + p * ax)
    poly = t * (a1 + t * (a2 + t * (a3 + t * (a4 + t * a5))))
    return sgn * (1.0 - poly * jnp.exp(-ax * ax))


def _gelu(x):
    # PyTorch activation='gelu' (exact, erf-based)
    return 0.5 * x * (1.0 + _erf(x * 0.7071067811865476))


def _layernorm(x, g, b, eps=1e-5):
    mu = jnp.mean(x, axis=-1, keepdims=True)
    var = jnp.mean(jnp.square(x - mu), axis=-1, keepdims=True)
    return (x - mu) * jax.lax.rsqrt(var + eps) * g + b


# ---------------------------------------------------------------------------
# Fused SA kernel: conv3x3 (im2col matmul) + headwise w1 + PE + encoder layers
#                  + final norm + headwise w2.
# Grid: (B,), one batch element per grid step; everything stays VMEM-resident.
# ---------------------------------------------------------------------------
def _sa_fused_kernel(xcol_ref, wc_ref, bc_ref, w1_ref, b1_ref, pe_ref,
                     wqkv_ref, bqkv_ref, wo_ref, bo_ref,
                     ln1g_ref, ln1b_ref, wf1_ref, bf1_ref, wf2_ref, bf2_ref,
                     ln2g_ref, ln2b_ref, ng_ref, nb_ref, w2_ref, b2_ref,
                     o_ref, *, nhead, nlayers):
    f32 = jnp.float32
    bf16 = jnp.bfloat16
    K = wc_ref.shape[0]               # topk == sequence length
    D = w1_ref.shape[2]               # project_dim
    in_dim = w2_ref.shape[2]
    dh = D // nhead

    # ---- 3x3 conv (stride 1, pad 1): one bf16 im2col matmul, f32 accumulation.
    # m[k, hw] = sum_{tap,c} Wc[k, tap*C+c] * xcol[hw, tap*C+c]  -> (K, HW)
    xcol = xcol_ref[0]                                              # (HW, 9C) bf16
    m = jax.lax.dot_general(wc_ref[...], xcol, (((1,), (1,)), ((), ())),
                            preferred_element_type=f32) + bc_ref[...]

    # ---- headwise linear 1 (K-batched): src[i] = m[i] @ w1[i]; + bias + PE ----
    src = jax.lax.dot_general(m.astype(bf16)[:, None, :], w1_ref[...],
                              (((2,), (1,)), ((0,), (0,))),
                              preferred_element_type=f32)           # (K, 1, D)
    x = src.reshape(K, D) + b1_ref[...] + pe_ref[...]               # (K, D) f32

    # ---- transformer encoder layers (post-norm, exact GELU, dropout=identity).
    # Unrolled Python loop is fine at nlayers<=4; switch to lax.fori_loop with
    # dynamic layer indexing if nlayers grows.
    for l in range(nlayers):
        xb = x.astype(bf16)
        qkv = jnp.dot(xb, wqkv_ref[l], preferred_element_type=f32) + bqkv_ref[l]  # (K, 3D)

        # split once into head-batched (nhead, K, dh); 1/sqrt(dh) is pre-folded
        # into the Q block of wqkv at init time.
        q3 = jnp.stack([qkv[:, h * dh:(h + 1) * dh]
                        for h in range(nhead)], axis=0).astype(bf16)
        k3 = jnp.stack([qkv[:, D + h * dh:D + (h + 1) * dh]
                        for h in range(nhead)], axis=0).astype(bf16)
        v3 = jnp.stack([qkv[:, 2 * D + h * dh:2 * D + (h + 1) * dh]
                        for h in range(nhead)], axis=0).astype(bf16)

        # all heads in one shot: scores, single softmax pass, PV
        s = jnp.einsum('hqd,hkd->hqk', q3, k3,
                       preferred_element_type=f32)                  # (nhead, K, K)
        s = s - jnp.max(s, axis=-1, keepdims=True)
        p = jnp.exp(s)
        p = p * pl.reciprocal(jnp.sum(p, axis=-1, keepdims=True), approx=True)
        o3 = jnp.einsum('hqk,hkd->hqd', p.astype(bf16), v3,
                        preferred_element_type=f32)                 # (nhead, K, dh)

        # out-proj as row-block sum: concat_h(o_h) @ Wo == sum_h o_h @ Wo[rows_h]
        attn = jnp.sum(jnp.einsum('hqd,hde->hqe', o3.astype(bf16), wo_ref[l],
                                  preferred_element_type=f32), axis=0) + bo_ref[l]

        y = _layernorm(x + attn, ln1g_ref[l], ln1b_ref[l])
        hdn = _gelu(jnp.dot(y.astype(bf16), wf1_ref[l],
                            preferred_element_type=f32) + bf1_ref[l])
        ffn = jnp.dot(hdn.astype(bf16), wf2_ref[l],
                      preferred_element_type=f32) + bf2_ref[l]
        x = _layernorm(y + ffn, ln2g_ref[l], ln2b_ref[l])

    # ---- final TransformerEncoder LayerNorm ----
    x = _layernorm(x, ng_ref[...], nb_ref[...])

    # ---- headwise linear 2 (K-batched): out[i] = x[i] @ w2[i] + b2[i] ----
    out = jax.lax.dot_general(x.astype(bf16)[:, None, :], w2_ref[...],
                              (((2,), (1,)), ((0,), (0,))),
                              preferred_element_type=f32)           # (K, 1, in_dim)
    o_ref[0] = (out.reshape(K, in_dim) + b2_ref[...]).astype(o_ref.dtype)


def sa_forward(x_nchw, p):
    """SA.forward (is_TKPool=False, pos='learn_pos', eval-mode dropout)."""
    B, C, H, W = x_nchw.shape
    K = p["topk"]
    nhead = p["nhead"]
    nlayers = p["wqkv"].shape[0]
    in_dim = p["w2"].shape[2]
    HW = H * W

    # im2col in the wrapper, in bf16: xcol[b, h*W+w, tap*C+c] = xpad[b, h+di, w+dj, c]
    # with tap = di*3 + dj (matches the (K, 9C) conv-weight column ordering).
    xpad = jnp.pad(jnp.transpose(x_nchw, (0, 2, 3, 1)).astype(jnp.bfloat16),
                   ((0, 0), (1, 1), (1, 1), (0, 0)))
    taps = [xpad[:, di:di + H, dj:dj + W, :] for di in range(3) for dj in range(3)]
    xcol = jnp.concatenate(taps, axis=-1).reshape(B, HW, 9 * C)

    def fullspec(a):
        nd = a.ndim
        return pl.BlockSpec(a.shape, lambda b, _nd=nd: (0,) * _nd)

    weights = [p["conv_w"], p["conv_b"], p["w1"], p["b1"], p["pe"],
               p["wqkv"], p["bqkv"], p["wo"], p["bo"],
               p["ln1_g"], p["ln1_b"], p["w1f"], p["b1f"], p["w2f"], p["b2f"],
               p["ln2_g"], p["ln2_b"], p["norm_g"], p["norm_b"], p["w2"], p["b2"]]

    out = pl.pallas_call(
        functools.partial(_sa_fused_kernel, nhead=nhead, nlayers=nlayers),
        out_shape=jax.ShapeDtypeStruct((B, K, in_dim), jnp.float32),
        grid=(B,),
        in_specs=[pl.BlockSpec((1, HW, 9 * C), lambda b: (b, 0, 0))]
                 + [fullspec(w) for w in weights],
        out_specs=pl.BlockSpec((1, K, in_dim), lambda b: (b, 0, 0)),
        compiler_params=pltpu.CompilerParams(dimension_semantics=("parallel",)),
    )(xcol, *weights)

    return jnp.transpose(out, (0, 2, 1))            # (B, in_dim, topk)


# ---------------------------------------------------------------------------
# Parameters (deterministic in-script init; shapes follow SA.__init__).
# All MXU-facing weights are stored bf16; biases / LN params stay f32.
# Porting real PyTorch weights requires transposing nn.Linear's (out,in)
# layouts to the (in,out) layouts below and applying the same Q-scale fold.
# ---------------------------------------------------------------------------
def init_sa_params(key, *, c_in, topk, in_dim, project_dim, nhead, nlayers, d_hid):
    keys = iter(jax.random.split(key, 64))

    def nrm(shape, std):
        return (std * jax.random.normal(next(keys), shape)).astype(jnp.float32)

    D, Dh, L, K = project_dim, d_hid, nlayers, topk
    bf16 = jnp.bfloat16
    dh = D // nhead

    # fold the attention softmax scale 1/sqrt(dh) into the Q projection
    wqkv = nrm((L, D, 3 * D), 0.02)
    wqkv = wqkv.at[:, :, :D].multiply(1.0 / math.sqrt(dh))

    p = {
        "topk": K, "nhead": nhead,
        # conv weight pre-flattened to (K, 9*Cin), columns ordered tap-major/channel-minor
        "conv_w": nrm((K, 9 * c_in), 0.02).astype(bf16),
        "conv_b": nrm((K, 1), 0.02),
        "w1": nrm((K, in_dim, D), 0.005).astype(bf16),    # init_weights_: normal(0,0.005)
        "b1": jnp.full((K, D), 0.1, jnp.float32),         # bias = 0.1
        "w2": nrm((K, D, in_dim), 0.005).astype(bf16),
        "b2": jnp.full((K, in_dim), 0.1, jnp.float32),
        "pe": jnp.zeros((K, D), jnp.float32),             # LearnablePE init = zeros
        "norm_g": jnp.ones((1, D), jnp.float32),
        "norm_b": jnp.zeros((1, D), jnp.float32),
        # encoder-layer params stacked over layers (leading dim = nlayers)
        "wqkv": wqkv.astype(bf16),
        "bqkv": jnp.zeros((L, 1, 3 * D), jnp.float32),    # (scale the Q-bias too when porting)
        "wo": nrm((L, nhead, dh, D), 0.02).astype(bf16),  # out-proj split into per-head row blocks
        "bo": jnp.zeros((L, 1, D), jnp.float32),
        "ln1_g": jnp.ones((L, 1, D), jnp.float32),
        "ln1_b": jnp.zeros((L, 1, D), jnp.float32),
        "w1f": nrm((L, D, Dh), 0.02).astype(bf16),
        "b1f": jnp.zeros((L, 1, Dh), jnp.float32),
        "w2f": nrm((L, Dh, D), 0.02).astype(bf16),
        "b2f": jnp.zeros((L, 1, D), jnp.float32),
        "ln2_g": jnp.ones((L, 1, D), jnp.float32),
        "ln2_b": jnp.zeros((L, 1, D), jnp.float32),
    }
    return p


if __name__ == "__main__":
    key = jax.random.PRNGKey(0)
    B, C, H, W = 2, 512, 8, 8          # Conv2d in-channels hard-coded to 512 in SA
    topk, project_dim, nhead, nlayers, d_hid = 8, 128, 4, 2, 256
    kx, kp = jax.random.split(key)
    x = jax.random.normal(kx, (B, C, H, W), jnp.float32)
    params = init_sa_params(kp, c_in=C, topk=topk, in_dim=H * W,
                            project_dim=project_dim, nhead=nhead,
                            nlayers=nlayers, d_hid=d_hid)

    out = jax.jit(lambda xx: sa_forward(xx, params))(x)
    out = jax.block_until_ready(out)
    assert out.shape == (B, H * W, topk), out.shape
    assert bool(jnp.all(jnp.isfinite(out)))
    print("KERNEL_OK")
</pallas_src>

<mosaic_0001>
module attributes {stable_mosaic.version = 11 : i64} {
  func.func @_sa_fused_kernel(%arg0: i32, %arg1: memref<1x64x4608xbf16, #tpu.memory_space<vmem>>, %arg2: memref<8x4608xbf16, #tpu.memory_space<vmem>>, %arg3: memref<8x1xf32, #tpu.memory_space<vmem>>, %arg4: memref<8x64x128xbf16, #tpu.memory_space<vmem>>, %arg5: memref<8x128xf32, #tpu.memory_space<vmem>>, %arg6: memref<8x128xf32, #tpu.memory_space<vmem>>, %arg7: memref<2x128x384xbf16, #tpu.memory_space<vmem>>, %arg8: memref<2x1x384xf32, #tpu.memory_space<vmem>>, %arg9: memref<2x4x32x128xbf16, #tpu.memory_space<vmem>>, %arg10: memref<2x1x128xf32, #tpu.memory_space<vmem>>, %arg11: memref<2x1x128xf32, #tpu.memory_space<vmem>>, %arg12: memref<2x1x128xf32, #tpu.memory_space<vmem>>, %arg13: memref<2x128x256xbf16, #tpu.memory_space<vmem>>, %arg14: memref<2x1x256xf32, #tpu.memory_space<vmem>>, %arg15: memref<2x256x128xbf16, #tpu.memory_space<vmem>>, %arg16: memref<2x1x128xf32, #tpu.memory_space<vmem>>, %arg17: memref<2x1x128xf32, #tpu.memory_space<vmem>>, %arg18: memref<2x1x128xf32, #tpu.memory_space<vmem>>, %arg19: memref<1x128xf32, #tpu.memory_space<vmem>>, %arg20: memref<1x128xf32, #tpu.memory_space<vmem>>, %arg21: memref<8x128x64xbf16, #tpu.memory_space<vmem>>, %arg22: memref<8x64xf32, #tpu.memory_space<vmem>>, %arg23: memref<1x8x64xf32, #tpu.memory_space<vmem>>) attributes {dimension_semantics = [#tpu.dimension_semantics<parallel>], iteration_bounds = array<i64: 2>, scalar_prefetch = 0 : i64, scratch_operands = 0 : i64, tpu.core_type = #tpu.core_type<tc>, window_params = [{transform_indices = @transform_0, window_bounds = array<i64: 1, 64, 4608>}, {pipeline_mode = #tpu.pipeline_mode<synchronous>, transform_indices = @transform_1, window_bounds = array<i64: 8, 4608>}, {pipeline_mode = #tpu.pipeline_mode<synchronous>, transform_indices = @transform_2, window_bounds = array<i64: 8, 1>}, {pipeline_mode = #tpu.pipeline_mode<synchronous>, transform_indices = @transform_3, window_bounds = array<i64: 8, 64, 128>}, {pipeline_mode = #tpu.pipeline_mode<synchronous>, transform_indices = @transform_4, window_bounds = array<i64: 8, 128>}, {pipeline_mode = #tpu.pipeline_mode<synchronous>, transform_indices = @transform_5, window_bounds = array<i64: 8, 128>}, {pipeline_mode = #tpu.pipeline_mode<synchronous>, transform_indices = @transform_6, window_bounds = array<i64: 2, 128, 384>}, {pipeline_mode = #tpu.pipeline_mode<synchronous>, transform_indices = @transform_7, window_bounds = array<i64: 2, 1, 384>}, {pipeline_mode = #tpu.pipeline_mode<synchronous>, transform_indices = @transform_8, window_bounds = array<i64: 2, 4, 32, 128>}, {pipeline_mode = #tpu.pipeline_mode<synchronous>, transform_indices = @transform_9, window_bounds = array<i64: 2, 1, 128>}, {pipeline_mode = #tpu.pipeline_mode<synchronous>, transform_indices = @transform_10, window_bounds = array<i64: 2, 1, 128>}, {pipeline_mode = #tpu.pipeline_mode<synchronous>, transform_indices = @transform_11, window_bounds = array<i64: 2, 1, 128>}, {pipeline_mode = #tpu.pipeline_mode<synchronous>, transform_indices = @transform_12, window_bounds = array<i64: 2, 128, 256>}, {pipeline_mode = #tpu.pipeline_mode<synchronous>, transform_indices = @transform_13, window_bounds = array<i64: 2, 1, 256>}, {pipeline_mode = #tpu.pipeline_mode<synchronous>, transform_indices = @transform_14, window_bounds = array<i64: 2, 256, 128>}, {pipeline_mode = #tpu.pipeline_mode<synchronous>, transform_indices = @transform_15, window_bounds = array<i64: 2, 1, 128>}, {pipeline_mode = #tpu.pipeline_mode<synchronous>, transform_indices = @transform_16, window_bounds = array<i64: 2, 1, 128>}, {pipeline_mode = #tpu.pipeline_mode<synchronous>, transform_indices = @transform_17, window_bounds = array<i64: 2, 1, 128>}, {pipeline_mode = #tpu.pipeline_mode<synchronous>, transform_indices = @transform_18, window_bounds = array<i64: 1, 128>}, {pipeline_mode = #tpu.pipeline_mode<synchronous>, transform_indices = @transform_19, window_bounds = array<i64: 1, 128>}, {pipeline_mode = #tpu.pipeline_mode<synchronous>, transform_indices = @transform_20, window_bounds = array<i64: 8, 128, 64>}, {pipeline_mode = #tpu.pipeline_mode<synchronous>, transform_indices = @transform_21, window_bounds = array<i64: 8, 64>}, {transform_indices = @transform_22, window_bounds = array<i64: 1, 8, 64>}]} {
    %c0 = arith.constant 0 : index
    %c0_0 = arith.constant 0 : index
    %c0_1 = arith.constant 0 : index
    %0 = vector.load %arg1[%c0, %c0_0, %c0_1] : memref<1x64x4608xbf16, #tpu.memory_space<vmem>>, vector<1x64x4608xbf16>
    %1 = vector.shape_cast %0 : vector<1x64x4608xbf16> to vector<64x4608xbf16>
    %c0_2 = arith.constant 0 : index
    %c0_3 = arith.constant 0 : index
    %2 = vector.load %arg2[%c0_2, %c0_3] : memref<8x4608xbf16, #tpu.memory_space<vmem>>, vector<8x4608xbf16>
    %cst = arith.constant dense<0.000000e+00> : vector<8x64xf32>
    %3 = tpu.matmul %2, %1, %cst {dimension_numbers = #tpu.dot_dimension_numbers<[1], [1], [0], [0], [0, 0, 1, 0], [], []>} : vector<8x4608xbf16>, vector<64x4608xbf16>, vector<8x64xf32> -> vector<8x64xf32>
    %c0_4 = arith.constant 0 : index
    %c0_5 = arith.constant 0 : index
    %4 = vector.load %arg3[%c0_4, %c0_5] : memref<8x1xf32, #tpu.memory_space<vmem>>, vector<8x1xf32>
    %5 = vector.broadcast %4 : vector<8x1xf32> to vector<8x64xf32>
    %6 = arith.addf %3, %5 : vector<8x64xf32>
    %7 = arith.truncf %6 : vector<8x64xf32> to vector<8x64xbf16>
    %8 = vector.shape_cast %7 : vector<8x64xbf16> to vector<8x1x64xbf16>
    %c0_6 = arith.constant 0 : index
    %c0_7 = arith.constant 0 : index
    %c0_8 = arith.constant 0 : index
    %9 = vector.load %arg4[%c0_6, %c0_7, %c0_8] : memref<8x64x128xbf16, #tpu.memory_space<vmem>>, vector<8x64x128xbf16>
    %cst_9 = arith.constant dense<0.000000e+00> : vector<8x1x128xf32>
    %10 = tpu.matmul %8, %9, %cst_9 {dimension_numbers = #tpu.dot_dimension_numbers<[2], [1], [1], [2], [0, 0, 0, 1, 1, 2], [0], [0]>} : vector<8x1x64xbf16>, vector<8x64x128xbf16>, vector<8x1x128xf32> -> vector<8x1x128xf32>
    %11 = vector.shape_cast %10 : vector<8x1x128xf32> to vector<8x128xf32>
    %c0_10 = arith.constant 0 : index
    %c0_11 = arith.constant 0 : index
    %12 = vector.load %arg5[%c0_10, %c0_11] : memref<8x128xf32, #tpu.memory_space<vmem>>, vector<8x128xf32>
    %13 = arith.addf %11, %12 : vector<8x128xf32>
    %c0_12 = arith.constant 0 : index
    %c0_13 = arith.constant 0 : index
    %14 = vector.load %arg6[%c0_12, %c0_13] : memref<8x128xf32, #tpu.memory_space<vmem>>, vector<8x128xf32>
    %15 = arith.addf %13, %14 : vector<8x128xf32>
    %16 = arith.truncf %15 : vector<8x128xf32> to vector<8x128xbf16>
    %c0_14 = arith.constant 0 : index
    %c0_15 = arith.constant 0 : index
    %c0_16 = arith.constant 0 : index
    %17 = vector.load %arg7[%c0_14, %c0_15, %c0_16] : memref<2x128x384xbf16, #tpu.memory_space<vmem>>, vector<1x128x384xbf16>
    %18 = vector.shape_cast %17 : vector<1x128x384xbf16> to vector<128x384xbf16>
    %cst_17 = arith.constant dense<0.000000e+00> : vector<8x384xf32>
    %19 = tpu.matmul %16, %18, %cst_17 {dimension_numbers = #tpu.dot_dimension_numbers<[1], [0], [0], [1], [0, 0, 1, 1], [], []>} : vector<8x128xbf16>, vector<128x384xbf16>, vector<8x384xf32> -> vector<8x384xf32>
    %c0_18 = arith.constant 0 : index
    %c0_19 = arith.constant 0 : index
    %c0_20 = arith.constant 0 : index
    %20 = vector.load %arg8[%c0_18, %c0_19, %c0_20] : memref<2x1x384xf32, #tpu.memory_space<vmem>>, vector<1x1x384xf32>
    %21 = vector.shape_cast %20 : vector<1x1x384xf32> to vector<1x384xf32>
    %22 = vector.broadcast %21 : vector<1x384xf32> to vector<8x384xf32>
    %23 = arith.addf %19, %22 : vector<8x384xf32>
    %24 = vector.extract_strided_slice %23 {offsets = [0, 0], sizes = [8, 32], strides = [1, 1]} : vector<8x384xf32> to vector<8x32xf32>
    %25 = vector.extract_strided_slice %23 {offsets = [0, 32], sizes = [8, 32], strides = [1, 1]} : vector<8x384xf32> to vector<8x32xf32>
    %26 = vector.extract_strided_slice %23 {offsets = [0, 64], sizes = [8, 32], strides = [1, 1]} : vector<8x384xf32> to vector<8x32xf32>
    %27 = vector.extract_strided_slice %23 {offsets = [0, 96], sizes = [8, 32], strides = [1, 1]} : vector<8x384xf32> to vector<8x32xf32>
    %28 = vector.shape_cast %24 : vector<8x32xf32> to vector<1x8x32xf32>
    %29 = vector.shape_cast %25 : vector<8x32xf32> to vector<1x8x32xf32>
    %30 = vector.shape_cast %26 : vector<8x32xf32> to vector<1x8x32xf32>
    %31 = vector.shape_cast %27 : vector<8x32xf32> to vector<1x8x32xf32>
    %32 = tpu.concatenate %28, %29, %30, %31 in 0 : vector<1x8x32xf32>, vector<1x8x32xf32>, vector<1x8x32xf32>, vector<1x8x32xf32> -> vector<4x8x32xf32>
    %33 = arith.truncf %32 : vector<4x8x32xf32> to vector<4x8x32xbf16>
    %34 = vector.extract_strided_slice %23 {offsets = [0, 128], sizes = [8, 32], strides = [1, 1]} : vector<8x384xf32> to vector<8x32xf32>
    %35 = vector.extract_strided_slice %23 {offsets = [0, 160], sizes = [8, 32], strides = [1, 1]} : vector<8x384xf32> to vector<8x32xf32>
    %36 = vector.extract_strided_slice %23 {offsets = [0, 192], sizes = [8, 32], strides = [1, 1]} : vector<8x384xf32> to vector<8x32xf32>
    %37 = vector.extract_strided_slice %23 {offsets = [0, 224], sizes = [8, 32], strides = [1, 1]} : vector<8x384xf32> to vector<8x32xf32>
    %38 = vector.shape_cast %34 : vector<8x32xf32> to vector<1x8x32xf32>
    %39 = vector.shape_cast %35 : vector<8x32xf32> to vector<1x8x32xf32>
    %40 = vector.shape_cast %36 : vector<8x32xf32> to vector<1x8x32xf32>
    %41 = vector.shape_cast %37 : vector<8x32xf32> to vector<1x8x32xf32>
    %42 = tpu.concatenate %38, %39, %40, %41 in 0 : vector<1x8x32xf32>, vector<1x8x32xf32>, vector<1x8x32xf32>, vector<1x8x32xf32> -> vector<4x8x32xf32>
    %43 = arith.truncf %42 : vector<4x8x32xf32> to vector<4x8x32xbf16>
    %44 = vector.extract_strided_slice %23 {offsets = [0, 256], sizes = [8, 32], strides = [1, 1]} : vector<8x384xf32> to vector<8x32xf32>
    %45 = vector.extract_strided_slice %23 {offsets = [0, 288], sizes = [8, 32], strides = [1, 1]} : vector<8x384xf32> to vector<8x32xf32>
    %46 = vector.extract_strided_slice %23 {offsets = [0, 320], sizes = [8, 32], strides = [1, 1]} : vector<8x384xf32> to vector<8x32xf32>
    %47 = vector.extract_strided_slice %23 {offsets = [0, 352], sizes = [8, 32], strides = [1, 1]} : vector<8x384xf32> to vector<8x32xf32>
    %48 = vector.shape_cast %44 : vector<8x32xf32> to vector<1x8x32xf32>
    %49 = vector.shape_cast %45 : vector<8x32xf32> to vector<1x8x32xf32>
    %50 = vector.shape_cast %46 : vector<8x32xf32> to vector<1x8x32xf32>
    %51 = vector.shape_cast %47 : vector<8x32xf32> to vector<1x8x32xf32>
    %52 = tpu.concatenate %48, %49, %50, %51 in 0 : vector<1x8x32xf32>, vector<1x8x32xf32>, vector<1x8x32xf32>, vector<1x8x32xf32> -> vector<4x8x32xf32>
    %53 = arith.truncf %52 : vector<4x8x32xf32> to vector<4x8x32xbf16>
    "tpu.trace_start"() <{level = 10 : i32, message = "hqd,hkd->hqk"}> : () -> ()
    %cst_21 = arith.constant dense<0.000000e+00> : vector<4x8x8xf32>
    %54 = tpu.matmul %33, %43, %cst_21 {dimension_numbers = #tpu.dot_dimension_numbers<[2], [2], [1], [1], [0, 0, 0, 1, 1, 1], [0], [0]>} : vector<4x8x32xbf16>, vector<4x8x32xbf16>, vector<4x8x8xf32> -> vector<4x8x8xf32>
    "tpu.trace_stop"() : () -> ()
    %cst_22 = arith.constant dense<0xFF800000> : vector<4x8xf32>
    %55 = vector.multi_reduction <maximumf>, %54, %cst_22 [2] : vector<4x8x8xf32> to vector<4x8xf32>
    %56 = vector.shape_cast %55 : vector<4x8xf32> to vector<4x8x1xf32>
    %57 = vector.broadcast %56 : vector<4x8x1xf32> to vector<4x8x8xf32>
    %58 = arith.subf %54, %57 : vector<4x8x8xf32>
    %59 = math.exp %58 : vector<4x8x8xf32>
    %cst_23 = arith.constant dense<0.000000e+00> : vector<4x8xf32>
    %60 = vector.multi_reduction <add>, %59, %cst_23 [2] : vector<4x8x8xf32> to vector<4x8xf32>
    %61 = vector.shape_cast %60 : vector<4x8xf32> to vector<4x8x1xf32>
    %62 = tpu.reciprocal %61 {approx = true} : vector<4x8x1xf32> -> vector<4x8x1xf32>
    %63 = vector.broadcast %62 : vector<4x8x1xf32> to vector<4x8x8xf32>
    %64 = arith.mulf %59, %63 : vector<4x8x8xf32>
    %65 = arith.truncf %64 : vector<4x8x8xf32> to vector<4x8x8xbf16>
    "tpu.trace_start"() <{level = 10 : i32, message = "hqk,hkd->hqd"}> : () -> ()
    %cst_24 = arith.constant dense<0.000000e+00> : vector<4x8x32xf32>
    %66 = tpu.matmul %65, %53, %cst_24 {dimension_numbers = #tpu.dot_dimension_numbers<[2], [1], [1], [2], [0, 0, 0, 1, 1, 2], [0], [0]>} : vector<4x8x8xbf16>, vector<4x8x32xbf16>, vector<4x8x32xf32> -> vector<4x8x32xf32>
    "tpu.trace_stop"() : () -> ()
    %67 = arith.truncf %66 : vector<4x8x32xf32> to vector<4x8x32xbf16>
    %c0_25 = arith.constant 0 : index
    %c0_26 = arith.constant 0 : index
    %c0_27 = arith.constant 0 : index
    %c0_28 = arith.constant 0 : index
    %68 = vector.load %arg9[%c0_25, %c0_26, %c0_27, %c0_28] : memref<2x4x32x128xbf16, #tpu.memory_space<vmem>>, vector<1x4x32x128xbf16>
    %69 = vector.shape_cast %68 : vector<1x4x32x128xbf16> to vector<4x32x128xbf16>
    "tpu.trace_start"() <{level = 10 : i32, message = "hqd,hde->hqe"}> : () -> ()
    %cst_29 = arith.constant dense<0.000000e+00> : vector<4x8x128xf32>
    %70 = tpu.matmul %67, %69, %cst_29 {dimension_numbers = #tpu.dot_dimension_numbers<[2], [1], [1], [2], [0, 0, 0, 1, 1, 2], [0], [0]>} : vector<4x8x32xbf16>, vector<4x32x128xbf16>, vector<4x8x128xf32> -> vector<4x8x128xf32>
    "tpu.trace_stop"() : () -> ()
    %cst_30 = arith.constant dense<0.000000e+00> : vector<8x128xf32>
    %71 = vector.multi_reduction <add>, %70, %cst_30 [0] : vector<4x8x128xf32> to vector<8x128xf32>
    %c0_31 = arith.constant 0 : index
    %c0_32 = arith.constant 0 : index
    %c0_33 = arith.constant 0 : index
    %72 = vector.load %arg10[%c0_31, %c0_32, %c0_33] : memref<2x1x128xf32, #tpu.memory_space<vmem>>, vector<1x1x128xf32>
    %73 = vector.shape_cast %72 : vector<1x1x128xf32> to vector<1x128xf32>
    %74 = vector.broadcast %73 : vector<1x128xf32> to vector<8x128xf32>
    %75 = arith.addf %71, %74 : vector<8x128xf32>
    %76 = arith.addf %15, %75 : vector<8x128xf32>
    %c0_34 = arith.constant 0 : index
    %c0_35 = arith.constant 0 : index
    %c0_36 = arith.constant 0 : index
    %77 = vector.load %arg11[%c0_34, %c0_35, %c0_36] : memref<2x1x128xf32, #tpu.memory_space<vmem>>, vector<1x1x128xf32>
    %78 = vector.shape_cast %77 : vector<1x1x128xf32> to vector<1x128xf32>
    %c0_37 = arith.constant 0 : index
    %c0_38 = arith.constant 0 : index
    %c0_39 = arith.constant 0 : index
    %79 = vector.load %arg12[%c0_37, %c0_38, %c0_39] : memref<2x1x128xf32, #tpu.memory_space<vmem>>, vector<1x1x128xf32>
    %80 = vector.shape_cast %79 : vector<1x1x128xf32> to vector<1x128xf32>
    %cst_40 = arith.constant dense<0.000000e+00> : vector<8xf32>
    %81 = vector.multi_reduction <add>, %76, %cst_40 [1] : vector<8x128xf32> to vector<8xf32>
    %82 = vector.shape_cast %81 : vector<8xf32> to vector<8x1xf32>
    %cst_41 = arith.constant 1.280000e+02 : f32
    %83 = vector.broadcast %cst_41 : f32 to vector<8x1xf32>
    %84 = arith.divf %82, %83 : vector<8x1xf32>
    %85 = vector.broadcast %84 : vector<8x1xf32> to vector<8x128xf32>
    %86 = arith.subf %76, %85 : vector<8x128xf32>
    %87 = arith.mulf %86, %86 : vector<8x128xf32>
    %cst_42 = arith.constant dense<0.000000e+00> : vector<8xf32>
    %88 = vector.multi_reduction <add>, %87, %cst_42 [1] : vector<8x128xf32> to vector<8xf32>
    %89 = vector.shape_cast %88 : vector<8xf32> to vector<8x1xf32>
    %cst_43 = arith.constant 1.280000e+02 : f32
    %90 = vector.broadcast %cst_43 : f32 to vector<8x1xf32>
    %91 = arith.divf %89, %90 : vector<8x1xf32>
    %92 = vector.broadcast %84 : vector<8x1xf32> to vector<8x128xf32>
    %93 = arith.subf %76, %92 : vector<8x128xf32>
    %cst_44 = arith.constant 9.99999974E-6 : f32
    %94 = vector.broadcast %cst_44 : f32 to vector<8x1xf32>
    %95 = arith.addf %91, %94 : vector<8x1xf32>
    %96 = math.rsqrt %95 : vector<8x1xf32>
    %97 = vector.broadcast %96 : vector<8x1xf32> to vector<8x128xf32>
    %98 = arith.mulf %93, %97 : vector<8x128xf32>
    %99 = vector.broadcast %78 : vector<1x128xf32> to vector<8x128xf32>
    %100 = arith.mulf %98, %99 : vector<8x128xf32>
    %101 = vector.broadcast %80 : vector<1x128xf32> to vector<8x128xf32>
    %102 = arith.addf %100, %101 : vector<8x128xf32>
    %103 = arith.truncf %102 : vector<8x128xf32> to vector<8x128xbf16>
    %c0_45 = arith.constant 0 : index
    %c0_46 = arith.constant 0 : index
    %c0_47 = arith.constant 0 : index
    %104 = vector.load %arg13[%c0_45, %c0_46, %c0_47] : memref<2x128x256xbf16, #tpu.memory_space<vmem>>, vector<1x128x256xbf16>
    %105 = vector.shape_cast %104 : vector<1x128x256xbf16> to vector<128x256xbf16>
    %cst_48 = arith.constant dense<0.000000e+00> : vector<8x256xf32>
    %106 = tpu.matmul %103, %105, %cst_48 {dimension_numbers = #tpu.dot_dimension_numbers<[1], [0], [0], [1], [0, 0, 1, 1], [], []>} : vector<8x128xbf16>, vector<128x256xbf16>, vector<8x256xf32> -> vector<8x256xf32>
    %c0_49 = arith.constant 0 : index
    %c0_50 = arith.constant 0 : index
    %c0_51 = arith.constant 0 : index
    %107 = vector.load %arg14[%c0_49, %c0_50, %c0_51] : memref<2x1x256xf32, #tpu.memory_space<vmem>>, vector<1x1x256xf32>
    %108 = vector.shape_cast %107 : vector<1x1x256xf32> to vector<1x256xf32>
    %109 = vector.broadcast %108 : vector<1x256xf32> to vector<8x256xf32>
    %110 = arith.addf %106, %109 : vector<8x256xf32>
    %cst_52 = arith.constant 5.000000e-01 : f32
    %111 = vector.broadcast %cst_52 : f32 to vector<8x256xf32>
    %112 = arith.mulf %111, %110 : vector<8x256xf32>
    %cst_53 = arith.constant 0.707106769 : f32
    %113 = vector.broadcast %cst_53 : f32 to vector<8x256xf32>
    %114 = arith.mulf %110, %113 : vector<8x256xf32>
    %cst_54 = arith.constant 0.000000e+00 : f32
    %115 = vector.broadcast %cst_54 : f32 to vector<8x256xf32>
    %116 = arith.cmpf oge, %114, %115 : vector<8x256xf32>
    %cst_55 = arith.constant 1.000000e+00 : f32
    %cst_56 = arith.constant -1.000000e+00 : f32
    %117 = vector.broadcast %cst_55 : f32 to vector<8x256xf32>
    %118 = vector.broadcast %cst_56 : f32 to vector<8x256xf32>
    %119 = arith.select %116, %117, %118 : vector<8x256xi1>, vector<8x256xf32>
    %120 = math.absf %114 : vector<8x256xf32>
    %cst_57 = arith.constant 0.327591091 : f32
    %121 = vector.broadcast %cst_57 : f32 to vector<8x256xf32>
    %122 = arith.mulf %121, %120 : vector<8x256xf32>
    %cst_58 = arith.constant 1.000000e+00 : f32
    %123 = vector.broadcast %cst_58 : f32 to vector<8x256xf32>
    %124 = arith.addf %123, %122 : vector<8x256xf32>
    %cst_59 = arith.constant 1.000000e+00 : f32
    %125 = vector.broadcast %cst_59 : f32 to vector<8x256xf32>
    %126 = arith.divf %125, %124 : vector<8x256xf32>
    %cst_60 = arith.constant 1.06140542 : f32
    %127 = vector.broadcast %cst_60 : f32 to vector<8x256xf32>
    %128 = arith.mulf %126, %127 : vector<8x256xf32>
    %cst_61 = arith.constant -1.45315206 : f32
    %129 = vector.broadcast %cst_61 : f32 to vector<8x256xf32>
    %130 = arith.addf %129, %128 : vector<8x256xf32>
    %131 = arith.mulf %126, %130 : vector<8x256xf32>
    %cst_62 = arith.constant 1.42141378 : f32
    %132 = vector.broadcast %cst_62 : f32 to vector<8x256xf32>
    %133 = arith.addf %132, %131 : vector<8x256xf32>
    %134 = arith.mulf %126, %133 : vector<8x256xf32>
    %cst_63 = arith.constant -0.284496725 : f32
    %135 = vector.broadcast %cst_63 : f32 to vector<8x256xf32>
    %136 = arith.addf %135, %134 : vector<8x256xf32>
    %137 = arith.mulf %126, %136 : vector<8x256xf32>
    %cst_64 = arith.constant 0.254829586 : f32
    %138 = vector.broadcast %cst_64 : f32 to vector<8x256xf32>
    %139 = arith.addf %138, %137 : vector<8x256xf32>
    %140 = arith.mulf %126, %139 : vector<8x256xf32>
    %cst_65 = arith.constant 0.000000e+00 : f32
    %141 = vector.broadcast %cst_65 : f32 to vector<8x256xf32>
    %142 = arith.subf %141, %120 : vector<8x256xf32>
    %143 = arith.mulf %142, %120 : vector<8x256xf32>
    %144 = math.exp %143 : vector<8x256xf32>
    %145 = arith.mulf %140, %144 : vector<8x256xf32>
    %cst_66 = arith.constant 1.000000e+00 : f32
    %146 = vector.broadcast %cst_66 : f32 to vector<8x256xf32>
    %147 = arith.subf %146, %145 : vector<8x256xf32>
    %148 = arith.mulf %119, %147 : vector<8x256xf32>
    %cst_67 = arith.constant 1.000000e+00 : f32
    %149 = vector.broadcast %cst_67 : f32 to vector<8x256xf32>
    %150 = arith.addf %149, %148 : vector<8x256xf32>
    %151 = arith.mulf %112, %150 : vector<8x256xf32>
    %152 = arith.truncf %151 : vector<8x256xf32> to vector<8x256xbf16>
    %c0_68 = arith.constant 0 : index
    %c0_69 = arith.constant 0 : index
    %c0_70 = arith.constant 0 : index
    %153 = vector.load %arg15[%c0_68, %c0_69, %c0_70] : memref<2x256x128xbf16, #tpu.memory_space<vmem>>, vector<1x256x128xbf16>
    %154 = vector.shape_cast %153 : vector<1x256x128xbf16> to vector<256x128xbf16>
    %cst_71 = arith.constant dense<0.000000e+00> : vector<8x128xf32>
    %155 = tpu.matmul %152, %154, %cst_71 {dimension_numbers = #tpu.dot_dimension_numbers<[1], [0], [0], [1], [0, 0, 1, 1], [], []>} : vector<8x256xbf16>, vector<256x128xbf16>, vector<8x128xf32> -> vector<8x128xf32>
    %c0_72 = arith.constant 0 : index
    %c0_73 = arith.constant 0 : index
    %c0_74 = arith.constant 0 : index
    %156 = vector.load %arg16[%c0_72, %c0_73, %c0_74] : memref<2x1x128xf32, #tpu.memory_space<vmem>>, vector<1x1x128xf32>
    %157 = vector.shape_cast %156 : vector<1x1x128xf32> to vector<1x128xf32>
    %158 = vector.broadcast %157 : vector<1x128xf32> to vector<8x128xf32>
    %159 = arith.addf %155, %158 : vector<8x128xf32>
    %160 = arith.addf %102, %159 : vector<8x128xf32>
    %c0_75 = arith.constant 0 : index
    %c0_76 = arith.constant 0 : index
    %c0_77 = arith.constant 0 : index
    %161 = vector.load %arg17[%c0_75, %c0_76, %c0_77] : memref<2x1x128xf32, #tpu.memory_space<vmem>>, vector<1x1x128xf32>
    %162 = vector.shape_cast %161 : vector<1x1x128xf32> to vector<1x128xf32>
    %c0_78 = arith.constant 0 : index
    %c0_79 = arith.constant 0 : index
    %c0_80 = arith.constant 0 : index
    %163 = vector.load %arg18[%c0_78, %c0_79, %c0_80] : memref<2x1x128xf32, #tpu.memory_space<vmem>>, vector<1x1x128xf32>
    %164 = vector.shape_cast %163 : vector<1x1x128xf32> to vector<1x128xf32>
    %cst_81 = arith.constant dense<0.000000e+00> : vector<8xf32>
    %165 = vector.multi_reduction <add>, %160, %cst_81 [1] : vector<8x128xf32> to vector<8xf32>
    %166 = vector.shape_cast %165 : vector<8xf32> to vector<8x1xf32>
    %cst_82 = arith.constant 1.280000e+02 : f32
    %167 = vector.broadcast %cst_82 : f32 to vector<8x1xf32>
    %168 = arith.divf %166, %167 : vector<8x1xf32>
    %169 = vector.broadcast %168 : vector<8x1xf32> to vector<8x128xf32>
    %170 = arith.subf %160, %169 : vector<8x128xf32>
    %171 = arith.mulf %170, %170 : vector<8x128xf32>
    %cst_83 = arith.constant dense<0.000000e+00> : vector<8xf32>
    %172 = vector.multi_reduction <add>, %171, %cst_83 [1] : vector<8x128xf32> to vector<8xf32>
    %173 = vector.shape_cast %172 : vector<8xf32> to vector<8x1xf32>
    %cst_84 = arith.constant 1.280000e+02 : f32
    %174 = vector.broadcast %cst_84 : f32 to vector<8x1xf32>
    %175 = arith.divf %173, %174 : vector<8x1xf32>
    %176 = vector.broadcast %168 : vector<8x1xf32> to vector<8x128xf32>
    %177 = arith.subf %160, %176 : vector<8x128xf32>
    %cst_85 = arith.constant 9.99999974E-6 : f32
    %178 = vector.broadcast %cst_85 : f32 to vector<8x1xf32>
    %179 = arith.addf %175, %178 : vector<8x1xf32>
    %180 = math.rsqrt %179 : vector<8x1xf32>
    %181 = vector.broadcast %180 : vector<8x1xf32> to vector<8x128xf32>
    %182 = arith.mulf %177, %181 : vector<8x128xf32>
    %183 = vector.broadcast %162 : vector<1x128xf32> to vector<8x128xf32>
    %184 = arith.mulf %182, %183 : vector<8x128xf32>
    %185 = vector.broadcast %164 : vector<1x128xf32> to vector<8x128xf32>
    %186 = arith.addf %184, %185 : vector<8x128xf32>
    %187 = arith.truncf %186 : vector<8x128xf32> to vector<8x128xbf16>
    %c1 = arith.constant 1 : index
    %c0_86 = arith.constant 0 : index
    %c0_87 = arith.constant 0 : index
    %188 = vector.load %arg7[%c1, %c0_86, %c0_87] : memref<2x128x384xbf16, #tpu.memory_space<vmem>>, vector<1x128x384xbf16>
    %189 = vector.shape_cast %188 : vector<1x128x384xbf16> to vector<128x384xbf16>
    %cst_88 = arith.constant dense<0.000000e+00> : vector<8x384xf32>
    %190 = tpu.matmul %187, %189, %cst_88 {dimension_numbers = #tpu.dot_dimension_numbers<[1], [0], [0], [1], [0, 0, 1, 1], [], []>} : vector<8x128xbf16>, vector<128x384xbf16>, vector<8x384xf32> -> vector<8x384xf32>
    %c1_89 = arith.constant 1 : index
    %c0_90 = arith.constant 0 : index
    %c0_91 = arith.constant 0 : index
    %191 = vector.load %arg8[%c1_89, %c0_90, %c0_91] : memref<2x1x384xf32, #tpu.memory_space<vmem>>, vector<1x1x384xf32>
    %192 = vector.shape_cast %191 : vector<1x1x384xf32> to vector<1x384xf32>
    %193 = vector.broadcast %192 : vector<1x384xf32> to vector<8x384xf32>
    %194 = arith.addf %190, %193 : vector<8x384xf32>
    %195 = vector.extract_strided_slice %194 {offsets = [0, 0], sizes = [8, 32], strides = [1, 1]} : vector<8x384xf32> to vector<8x32xf32>
    %196 = vector.extract_strided_slice %194 {offsets = [0, 32], sizes = [8, 32], strides = [1, 1]} : vector<8x384xf32> to vector<8x32xf32>
    %197 = vector.extract_strided_slice %194 {offsets = [0, 64], sizes = [8, 32], strides = [1, 1]} : vector<8x384xf32> to vector<8x32xf32>
    %198 = vector.extract_strided_slice %194 {offsets = [0, 96], sizes = [8, 32], strides = [1, 1]} : vector<8x384xf32> to vector<8x32xf32>
    %199 = vector.shape_cast %195 : vector<8x32xf32> to vector<1x8x32xf32>
    %200 = vector.shape_cast %196 : vector<8x32xf32> to vector<1x8x32xf32>
    %201 = vector.shape_cast %197 : vector<8x32xf32> to vector<1x8x32xf32>
    %202 = vector.shape_cast %198 : vector<8x32xf32> to vector<1x8x32xf32>
    %203 = tpu.concatenate %199, %200, %201, %202 in 0 : vector<1x8x32xf32>, vector<1x8x32xf32>, vector<1x8x32xf32>, vector<1x8x32xf32> -> vector<4x8x32xf32>
    %204 = arith.truncf %203 : vector<4x8x32xf32> to vector<4x8x32xbf16>
    %205 = vector.extract_strided_slice %194 {offsets = [0, 128], sizes = [8, 32], strides = [1, 1]} : vector<8x384xf32> to vector<8x32xf32>
    %206 = vector.extract_strided_slice %194 {offsets = [0, 160], sizes = [8, 32], strides = [1, 1]} : vector<8x384xf32> to vector<8x32xf32>
    %207 = vector.extract_strided_slice %194 {offsets = [0, 192], sizes = [8, 32], strides = [1, 1]} : vector<8x384xf32> to vector<8x32xf32>
    %208 = vector.extract_strided_slice %194 {offsets = [0, 224], sizes = [8, 32], strides = [1, 1]} : vector<8x384xf32> to vector<8x32xf32>
    %209 = vector.shape_cast %205 : vector<8x32xf32> to vector<1x8x32xf32>
    %210 = vector.shape_cast %206 : vector<8x32xf32> to vector<1x8x32xf32>
    %211 = vector.shape_cast %207 : vector<8x32xf32> to vector<1x8x32xf32>
    %212 = vector.shape_cast %208 : vector<8x32xf32> to vector<1x8x32xf32>
    %213 = tpu.concatenate %209, %210, %211, %212 in 0 : vector<1x8x32xf32>, vector<1x8x32xf32>, vector<1x8x32xf32>, vector<1x8x32xf32> -> vector<4x8x32xf32>
    %214 = arith.truncf %213 : vector<4x8x32xf32> to vector<4x8x32xbf16>
    %215 = vector.extract_strided_slice %194 {offsets = [0, 256], sizes = [8, 32], strides = [1, 1]} : vector<8x384xf32> to vector<8x32xf32>
    %216 = vector.extract_strided_slice %194 {offsets = [0, 288], sizes = [8, 32], strides = [1, 1]} : vector<8x384xf32> to vector<8x32xf32>
    %217 = vector.extract_strided_slice %194 {offsets = [0, 320], sizes = [8, 32], strides = [1, 1]} : vector<8x384xf32> to vector<8x32xf32>
    %218 = vector.extract_strided_slice %194 {offsets = [0, 352], sizes = [8, 32], strides = [1, 1]} : vector<8x384xf32> to vector<8x32xf32>
    %219 = vector.shape_cast %215 : vector<8x32xf32> to vector<1x8x32xf32>
    %220 = vector.shape_cast %216 : vector<8x32xf32> to vector<1x8x32xf32>
    %221 = vector.shape_cast %217 : vector<8x32xf32> to vector<1x8x32xf32>
    %222 = vector.shape_cast %218 : vector<8x32xf32> to vector<1x8x32xf32>
    %223 = tpu.concatenate %219, %220, %221, %222 in 0 : vector<1x8x32xf32>, vector<1x8x32xf32>, vector<1x8x32xf32>, vector<1x8x32xf32> -> vector<4x8x32xf32>
    %224 = arith.truncf %223 : vector<4x8x32xf32> to vector<4x8x32xbf16>
    "tpu.trace_start"() <{level = 10 : i32, message = "hqd,hkd->hqk"}> : () -> ()
    %cst_92 = arith.constant dense<0.000000e+00> : vector<4x8x8xf32>
    %225 = tpu.matmul %204, %214, %cst_92 {dimension_numbers = #tpu.dot_dimension_numbers<[2], [2], [1], [1], [0, 0, 0, 1, 1, 1], [0], [0]>} : vector<4x8x32xbf16>, vector<4x8x32xbf16>, vector<4x8x8xf32> -> vector<4x8x8xf32>
    "tpu.trace_stop"() : () -> ()
    %cst_93 = arith.constant dense<0xFF800000> : vector<4x8xf32>
    %226 = vector.multi_reduction <maximumf>, %225, %cst_93 [2] : vector<4x8x8xf32> to vector<4x8xf32>
    %227 = vector.shape_cast %226 : vector<4x8xf32> to vector<4x8x1xf32>
    %228 = vector.broadcast %227 : vector<4x8x1xf32> to vector<4x8x8xf32>
    %229 = arith.subf %225, %228 : vector<4x8x8xf32>
    %230 = math.exp %229 : vector<4x8x8xf32>
    %cst_94 = arith.constant dense<0.000000e+00> : vector<4x8xf32>
    %231 = vector.multi_reduction <add>, %230, %cst_94 [2] : vector<4x8x8xf32> to vector<4x8xf32>
    %232 = vector.shape_cast %231 : vector<4x8xf32> to vector<4x8x1xf32>
    %233 = tpu.reciprocal %232 {approx = true} : vector<4x8x1xf32> -> vector<4x8x1xf32>
    %234 = vector.broadcast %233 : vector<4x8x1xf32> to vector<4x8x8xf32>
    %235 = arith.mulf %230, %234 : vector<4x8x8xf32>
    %236 = arith.truncf %235 : vector<4x8x8xf32> to vector<4x8x8xbf16>
    "tpu.trace_start"() <{level = 10 : i32, message = "hqk,hkd->hqd"}> : () -> ()
    %cst_95 = arith.constant dense<0.000000e+00> : vector<4x8x32xf32>
    %237 = tpu.matmul %236, %224, %cst_95 {dimension_numbers = #tpu.dot_dimension_numbers<[2], [1], [1], [2], [0, 0, 0, 1, 1, 2], [0], [0]>} : vector<4x8x8xbf16>, vector<4x8x32xbf16>, vector<4x8x32xf32> -> vector<4x8x32xf32>
    "tpu.trace_stop"() : () -> ()
    %238 = arith.truncf %237 : vector<4x8x32xf32> to vector<4x8x32xbf16>
    %c1_96 = arith.constant 1 : index
    %c0_97 = arith.constant 0 : index
    %c0_98 = arith.constant 0 : index
    %c0_99 = arith.constant 0 : index
    %239 = vector.load %arg9[%c1_96, %c0_97, %c0_98, %c0_99] : memref<2x4x32x128xbf16, #tpu.memory_space<vmem>>, vector<1x4x32x128xbf16>
    %240 = vector.shape_cast %239 : vector<1x4x32x128xbf16> to vector<4x32x128xbf16>
    "tpu.trace_start"() <{level = 10 : i32, message = "hqd,hde->hqe"}> : () -> ()
    %cst_100 = arith.constant dense<0.000000e+00> : vector<4x8x128xf32>
    %241 = tpu.matmul %238, %240, %cst_100 {dimension_numbers = #tpu.dot_dimension_numbers<[2], [1], [1], [2], [0, 0, 0, 1, 1, 2], [0], [0]>} : vector<4x8x32xbf16>, vector<4x32x128xbf16>, vector<4x8x128xf32> -> vector<4x8x128xf32>
    "tpu.trace_stop"() : () -> ()
    %cst_101 = arith.constant dense<0.000000e+00> : vector<8x128xf32>
    %242 = vector.multi_reduction <add>, %241, %cst_101 [0] : vector<4x8x128xf32> to vector<8x128xf32>
    %c1_102 = arith.constant 1 : index
    %c0_103 = arith.constant 0 : index
    %c0_104 = arith.constant 0 : index
    %243 = vector.load %arg10[%c1_102, %c0_103, %c0_104] : memref<2x1x128xf32, #tpu.memory_space<vmem>>, vector<1x1x128xf32>
    %244 = vector.shape_cast %243 : vector<1x1x128xf32> to vector<1x128xf32>
    %245 = vector.broadcast %244 : vector<1x128xf32> to vector<8x128xf32>
    %246 = arith.addf %242, %245 : vector<8x128xf32>
    %247 = arith.addf %186, %246 : vector<8x128xf32>
    %c1_105 = arith.constant 1 : index
    %c0_106 = arith.constant 0 : index
    %c0_107 = arith.constant 0 : index
    %248 = vector.load %arg11[%c1_105, %c0_106, %c0_107] : memref<2x1x128xf32, #tpu.memory_space<vmem>>, vector<1x1x128xf32>
    %249 = vector.shape_cast %248 : vector<1x1x128xf32> to vector<1x128xf32>
    %c1_108 = arith.constant 1 : index
    %c0_109 = arith.constant 0 : index
    %c0_110 = arith.constant 0 : index
    %250 = vector.load %arg12[%c1_108, %c0_109, %c0_110] : memref<2x1x128xf32, #tpu.memory_space<vmem>>, vector<1x1x128xf32>
    %251 = vector.shape_cast %250 : vector<1x1x128xf32> to vector<1x128xf32>
    %cst_111 = arith.constant dense<0.000000e+00> : vector<8xf32>
    %252 = vector.multi_reduction <add>, %247, %cst_111 [1] : vector<8x128xf32> to vector<8xf32>
    %253 = vector.shape_cast %252 : vector<8xf32> to vector<8x1xf32>
    %cst_112 = arith.constant 1.280000e+02 : f32
    %254 = vector.broadcast %cst_112 : f32 to vector<8x1xf32>
    %255 = arith.divf %253, %254 : vector<8x1xf32>
    %256 = vector.broadcast %255 : vector<8x1xf32> to vector<8x128xf32>
    %257 = arith.subf %247, %256 : vector<8x128xf32>
    %258 = arith.mulf %257, %257 : vector<8x128xf32>
    %cst_113 = arith.constant dense<0.000000e+00> : vector<8xf32>
    %259 = vector.multi_reduction <add>, %258, %cst_113 [1] : vector<8x128xf32> to vector<8xf32>
    %260 = vector.shape_cast %259 : vector<8xf32> to vector<8x1xf32>
    %cst_114 = arith.constant 1.280000e+02 : f32
    %261 = vector.broadcast %cst_114 : f32 to vector<8x1xf32>
    %262 = arith.divf %260, %261 : vector<8x1xf32>
    %263 = vector.broadcast %255 : vector<8x1xf32> to vector<8x128xf32>
    %264 = arith.subf %247, %263 : vector<8x128xf32>
    %cst_115 = arith.constant 9.99999974E-6 : f32
    %265 = vector.broadcast %cst_115 : f32 to vector<8x1xf32>
    %266 = arith.addf %262, %265 : vector<8x1xf32>
    %267 = math.rsqrt %266 : vector<8x1xf32>
    %268 = vector.broadcast %267 : vector<8x1xf32> to vector<8x128xf32>
    %269 = arith.mulf %264, %268 : vector<8x128xf32>
    %270 = vector.broadcast %249 : vector<1x128xf32> to vector<8x128xf32>
    %271 = arith.mulf %269, %270 : vector<8x128xf32>
    %272 = vector.broadcast %251 : vector<1x128xf32> to vector<8x128xf32>
    %273 = arith.addf %271, %272 : vector<8x128xf32>
    %274 = arith.truncf %273 : vector<8x128xf32> to vector<8x128xbf16>
    %c1_116 = arith.constant 1 : index
    %c0_117 = arith.constant 0 : index
    %c0_118 = arith.constant 0 : index
    %275 = vector.load %arg13[%c1_116, %c0_117, %c0_118] : memref<2x128x256xbf16, #tpu.memory_space<vmem>>, vector<1x128x256xbf16>
    %276 = vector.shape_cast %275 : vector<1x128x256xbf16> to vector<128x256xbf16>
    %cst_119 = arith.constant dense<0.000000e+00> : vector<8x256xf32>
    %277 = tpu.matmul %274, %276, %cst_119 {dimension_numbers = #tpu.dot_dimension_numbers<[1], [0], [0], [1], [0, 0, 1, 1], [], []>} : vector<8x128xbf16>, vector<128x256xbf16>, vector<8x256xf32> -> vector<8x256xf32>
    %c1_120 = arith.constant 1 : index
    %c0_121 = arith.constant 0 : index
    %c0_122 = arith.constant 0 : index
    %278 = vector.load %arg14[%c1_120, %c0_121, %c0_122] : memref<2x1x256xf32, #tpu.memory_space<vmem>>, vector<1x1x256xf32>
    %279 = vector.shape_cast %278 : vector<1x1x256xf32> to vector<1x256xf32>
    %280 = vector.broadcast %279 : vector<1x256xf32> to vector<8x256xf32>
    %281 = arith.addf %277, %280 : vector<8x256xf32>
    %cst_123 = arith.constant 5.000000e-01 : f32
    %282 = vector.broadcast %cst_123 : f32 to vector<8x256xf32>
    %283 = arith.mulf %282, %281 : vector<8x256xf32>
    %cst_124 = arith.constant 0.707106769 : f32
    %284 = vector.broadcast %cst_124 : f32 to vector<8x256xf32>
    %285 = arith.mulf %281, %284 : vector<8x256xf32>
    %cst_125 = arith.constant 0.000000e+00 : f32
    %286 = vector.broadcast %cst_125 : f32 to vector<8x256xf32>
    %287 = arith.cmpf oge, %285, %286 : vector<8x256xf32>
    %cst_126 = arith.constant 1.000000e+00 : f32
    %cst_127 = arith.constant -1.000000e+00 : f32
    %288 = vector.broadcast %cst_126 : f32 to vector<8x256xf32>
    %289 = vector.broadcast %cst_127 : f32 to vector<8x256xf32>
    %290 = arith.select %287, %288, %289 : vector<8x256xi1>, vector<8x256xf32>
    %291 = math.absf %285 : vector<8x256xf32>
    %cst_128 = arith.constant 0.327591091 : f32
    %292 = vector.broadcast %cst_128 : f32 to vector<8x256xf32>
    %293 = arith.mulf %292, %291 : vector<8x256xf32>
    %cst_129 = arith.constant 1.000000e+00 : f32
    %294 = vector.broadcast %cst_129 : f32 to vector<8x256xf32>
    %295 = arith.addf %294, %293 : vector<8x256xf32>
    %cst_130 = arith.constant 1.000000e+00 : f32
    %296 = vector.broadcast %cst_130 : f32 to vector<8x256xf32>
    %297 = arith.divf %296, %295 : vector<8x256xf32>
    %cst_131 = arith.constant 1.06140542 : f32
    %298 = vector.broadcast %cst_131 : f32 to vector<8x256xf32>
    %299 = arith.mulf %297, %298 : vector<8x256xf32>
    %cst_132 = arith.constant -1.45315206 : f32
    %300 = vector.broadcast %cst_132 : f32 to vector<8x256xf32>
    %301 = arith.addf %300, %299 : vector<8x256xf32>
    %302 = arith.mulf %297, %301 : vector<8x256xf32>
    %cst_133 = arith.constant 1.42141378 : f32
    %303 = vector.broadcast %cst_133 : f32 to vector<8x256xf32>
    %304 = arith.addf %303, %302 : vector<8x256xf32>
    %305 = arith.mulf %297, %304 : vector<8x256xf32>
    %cst_134 = arith.constant -0.284496725 : f32
    %306 = vector.broadcast %cst_134 : f32 to vector<8x256xf32>
    %307 = arith.addf %306, %305 : vector<8x256xf32>
    %308 = arith.mulf %297, %307 : vector<8x256xf32>
    %cst_135 = arith.constant 0.254829586 : f32
    %309 = vector.broadcast %cst_135 : f32 to vector<8x256xf32>
    %310 = arith.addf %309, %308 : vector<8x256xf32>
    %311 = arith.mulf %297, %310 : vector<8x256xf32>
    %cst_136 = arith.constant 0.000000e+00 : f32
    %312 = vector.broadcast %cst_136 : f32 to vector<8x256xf32>
    %313 = arith.subf %312, %291 : vector<8x256xf32>
    %314 = arith.mulf %313, %291 : vector<8x256xf32>
    %315 = math.exp %314 : vector<8x256xf32>
    %316 = arith.mulf %311, %315 : vector<8x256xf32>
    %cst_137 = arith.constant 1.000000e+00 : f32
    %317 = vector.broadcast %cst_137 : f32 to vector<8x256xf32>
    %318 = arith.subf %317, %316 : vector<8x256xf32>
    %319 = arith.mulf %290, %318 : vector<8x256xf32>
    %cst_138 = arith.constant 1.000000e+00 : f32
    %320 = vector.broadcast %cst_138 : f32 to vector<8x256xf32>
    %321 = arith.addf %320, %319 : vector<8x256xf32>
    %322 = arith.mulf %283, %321 : vector<8x256xf32>
    %323 = arith.truncf %322 : vector<8x256xf32> to vector<8x256xbf16>
    %c1_139 = arith.constant 1 : index
    %c0_140 = arith.constant 0 : index
    %c0_141 = arith.constant 0 : index
    %324 = vector.load %arg15[%c1_139, %c0_140, %c0_141] : memref<2x256x128xbf16, #tpu.memory_space<vmem>>, vector<1x256x128xbf16>
    %325 = vector.shape_cast %324 : vector<1x256x128xbf16> to vector<256x128xbf16>
    %cst_142 = arith.constant dense<0.000000e+00> : vector<8x128xf32>
    %326 = tpu.matmul %323, %325, %cst_142 {dimension_numbers = #tpu.dot_dimension_numbers<[1], [0], [0], [1], [0, 0, 1, 1], [], []>} : vector<8x256xbf16>, vector<256x128xbf16>, vector<8x128xf32> -> vector<8x128xf32>
    %c1_143 = arith.constant 1 : index
    %c0_144 = arith.constant 0 : index
    %c0_145 = arith.constant 0 : index
    %327 = vector.load %arg16[%c1_143, %c0_144, %c0_145] : memref<2x1x128xf32, #tpu.memory_space<vmem>>, vector<1x1x128xf32>
    %328 = vector.shape_cast %327 : vector<1x1x128xf32> to vector<1x128xf32>
    %329 = vector.broadcast %328 : vector<1x128xf32> to vector<8x128xf32>
    %330 = arith.addf %326, %329 : vector<8x128xf32>
    %331 = arith.addf %273, %330 : vector<8x128xf32>
    %c1_146 = arith.constant 1 : index
    %c0_147 = arith.constant 0 : index
    %c0_148 = arith.constant 0 : index
    %332 = vector.load %arg17[%c1_146, %c0_147, %c0_148] : memref<2x1x128xf32, #tpu.memory_space<vmem>>, vector<1x1x128xf32>
    %333 = vector.shape_cast %332 : vector<1x1x128xf32> to vector<1x128xf32>
    %c1_149 = arith.constant 1 : index
    %c0_150 = arith.constant 0 : index
    %c0_151 = arith.constant 0 : index
    %334 = vector.load %arg18[%c1_149, %c0_150, %c0_151] : memref<2x1x128xf32, #tpu.memory_space<vmem>>, vector<1x1x128xf32>
    %335 = vector.shape_cast %334 : vector<1x1x128xf32> to vector<1x128xf32>
    %cst_152 = arith.constant dense<0.000000e+00> : vector<8xf32>
    %336 = vector.multi_reduction <add>, %331, %cst_152 [1] : vector<8x128xf32> to vector<8xf32>
    %337 = vector.shape_cast %336 : vector<8xf32> to vector<8x1xf32>
    %cst_153 = arith.constant 1.280000e+02 : f32
    %338 = vector.broadcast %cst_153 : f32 to vector<8x1xf32>
    %339 = arith.divf %337, %338 : vector<8x1xf32>
    %340 = vector.broadcast %339 : vector<8x1xf32> to vector<8x128xf32>
    %341 = arith.subf %331, %340 : vector<8x128xf32>
    %342 = arith.mulf %341, %341 : vector<8x128xf32>
    %cst_154 = arith.constant dense<0.000000e+00> : vector<8xf32>
    %343 = vector.multi_reduction <add>, %342, %cst_154 [1] : vector<8x128xf32> to vector<8xf32>
    %344 = vector.shape_cast %343 : vector<8xf32> to vector<8x1xf32>
    %cst_155 = arith.constant 1.280000e+02 : f32
    %345 = vector.broadcast %cst_155 : f32 to vector<8x1xf32>
    %346 = arith.divf %344, %345 : vector<8x1xf32>
    %347 = vector.broadcast %339 : vector<8x1xf32> to vector<8x128xf32>
    %348 = arith.subf %331, %347 : vector<8x128xf32>
    %cst_156 = arith.constant 9.99999974E-6 : f32
    %349 = vector.broadcast %cst_156 : f32 to vector<8x1xf32>
    %350 = arith.addf %346, %349 : vector<8x1xf32>
    %351 = math.rsqrt %350 : vector<8x1xf32>
    %352 = vector.broadcast %351 : vector<8x1xf32> to vector<8x128xf32>
    %353 = arith.mulf %348, %352 : vector<8x128xf32>
    %354 = vector.broadcast %333 : vector<1x128xf32> to vector<8x128xf32>
    %355 = arith.mulf %353, %354 : vector<8x128xf32>
    %356 = vector.broadcast %335 : vector<1x128xf32> to vector<8x128xf32>
    %357 = arith.addf %355, %356 : vector<8x128xf32>
    %c0_157 = arith.constant 0 : index
    %c0_158 = arith.constant 0 : index
    %358 = vector.load %arg19[%c0_157, %c0_158] : memref<1x128xf32, #tpu.memory_space<vmem>>, vector<1x128xf32>
    %c0_159 = arith.constant 0 : index
    %c0_160 = arith.constant 0 : index
    %359 = vector.load %arg20[%c0_159, %c0_160] : memref<1x128xf32, #tpu.memory_space<vmem>>, vector<1x128xf32>
    %cst_161 = arith.constant dense<0.000000e+00> : vector<8xf32>
    %360 = vector.multi_reduction <add>, %357, %cst_161 [1] : vector<8x128xf32> to vector<8xf32>
    %361 = vector.shape_cast %360 : vector<8xf32> to vector<8x1xf32>
    %cst_162 = arith.constant 1.280000e+02 : f32
    %362 = vector.broadcast %cst_162 : f32 to vector<8x1xf32>
    %363 = arith.divf %361, %362 : vector<8x1xf32>
    %364 = vector.broadcast %363 : vector<8x1xf32> to vector<8x128xf32>
    %365 = arith.subf %357, %364 : vector<8x128xf32>
    %366 = arith.mulf %365, %365 : vector<8x128xf32>
    %cst_163 = arith.constant dense<0.000000e+00> : vector<8xf32>
    %367 = vector.multi_reduction <add>, %366, %cst_163 [1] : vector<8x128xf32> to vector<8xf32>
    %368 = vector.shape_cast %367 : vector<8xf32> to vector<8x1xf32>
    %cst_164 = arith.constant 1.280000e+02 : f32
    %369 = vector.broadcast %cst_164 : f32 to vector<8x1xf32>
    %370 = arith.divf %368, %369 : vector<8x1xf32>
    %371 = vector.broadcast %363 : vector<8x1xf32> to vector<8x128xf32>
    %372 = arith.subf %357, %371 : vector<8x128xf32>
    %cst_165 = arith.constant 9.99999974E-6 : f32
    %373 = vector.broadcast %cst_165 : f32 to vector<8x1xf32>
    %374 = arith.addf %370, %373 : vector<8x1xf32>
    %375 = math.rsqrt %374 : vector<8x1xf32>
    %376 = vector.broadcast %375 : vector<8x1xf32> to vector<8x128xf32>
    %377 = arith.mulf %372, %376 : vector<8x128xf32>
    %378 = vector.broadcast %358 : vector<1x128xf32> to vector<8x128xf32>
    %379 = arith.mulf %377, %378 : vector<8x128xf32>
    %380 = vector.broadcast %359 : vector<1x128xf32> to vector<8x128xf32>
    %381 = arith.addf %379, %380 : vector<8x128xf32>
    %382 = arith.truncf %381 : vector<8x128xf32> to vector<8x128xbf16>
    %383 = vector.shape_cast %382 : vector<8x128xbf16> to vector<8x1x128xbf16>
    %c0_166 = arith.constant 0 : index
    %c0_167 = arith.constant 0 : index
    %c0_168 = arith.constant 0 : index
    %384 = vector.load %arg21[%c0_166, %c0_167, %c0_168] : memref<8x128x64xbf16, #tpu.memory_space<vmem>>, vector<8x128x64xbf16>
    %cst_169 = arith.constant dense<0.000000e+00> : vector<8x1x64xf32>
    %385 = tpu.matmul %383, %384, %cst_169 {dimension_numbers = #tpu.dot_dimension_numbers<[2], [1], [1], [2], [0, 0, 0, 1, 1, 2], [0], [0]>} : vector<8x1x128xbf16>, vector<8x128x64xbf16>, vector<8x1x64xf32> -> vector<8x1x64xf32>
    %386 = vector.shape_cast %385 : vector<8x1x64xf32> to vector<8x64xf32>
    %c0_170 = arith.constant 0 : index
    %c0_171 = arith.constant 0 : index
    %387 = vector.load %arg22[%c0_170, %c0_171] : memref<8x64xf32, #tpu.memory_space<vmem>>, vector<8x64xf32>
    %388 = arith.addf %386, %387 : vector<8x64xf32>
    %c0_172 = arith.constant 0 : index
    %c0_173 = arith.constant 0 : index
    %c0_174 = arith.constant 0 : index
    %389 = vector.load %arg23[%c0_172, %c0_173, %c0_174] : memref<1x8x64xf32, #tpu.memory_space<vmem>>, vector<1x8x64xf32>
    %390 = vector.shape_cast %389 : vector<1x8x64xf32> to vector<8x64xf32>
    %391 = vector.shape_cast %388 : vector<8x64xf32> to vector<1x8x64xf32>
    tpu.vector_store %arg23[%c0_172, %c0_173, %c0_174], %391 {strides = array<i32>} : memref<1x8x64xf32, #tpu.memory_space<vmem>>, vector<1x8x64xf32>,
    return
  }
  func.func @transform_0(%arg0: i32) -> (i32, i32, i32) {
    %c0_i32 = arith.constant 0 : i32
    %c0_i32_0 = arith.constant 0 : i32
    %c0_i32_1 = arith.constant 0 : i32
    return %arg0, %c0_i32, %c0_i32_0 : i32, i32, i32
  }
  func.func @transform_1(%arg0: i32) -> (i32, i32) {
    %c0_i32 = arith.constant 0 : i32
    %c0_i32_0 = arith.constant 0 : i32
    %c0_i32_1 = arith.constant 0 : i32
    return %c0_i32, %c0_i32_0 : i32, i32
  }
  func.func @transform_2(%arg0: i32) -> (i32, i32) {
    %c0_i32 = arith.constant 0 : i32
    %c0_i32_0 = arith.constant 0 : i32
    %c0_i32_1 = arith.constant 0 : i32
    return %c0_i32, %c0_i32_0 : i32, i32
  }
  func.func @transform_3(%arg0: i32) -> (i32, i32, i32) {
    %c0_i32 = arith.constant 0 : i32
    %c0_i32_0 = arith.constant 0 : i32
    %c0_i32_1 = arith.constant 0 : i32
    %c0_i32_2 = arith.constant 0 : i32
    return %c0_i32, %c0_i32_0, %c0_i32_1 : i32, i32, i32
  }
  func.func @transform_4(%arg0: i32) -> (i32, i32) {
    %c0_i32 = arith.constant 0 : i32
    %c0_i32_0 = arith.constant 0 : i32
    %c0_i32_1 = arith.constant 0 : i32
    return %c0_i32, %c0_i32_0 : i32, i32
  }
  func.func @transform_5(%arg0: i32) -> (i32, i32) {
    %c0_i32 = arith.constant 0 : i32
    %c0_i32_0 = arith.constant 0 : i32
    %c0_i32_1 = arith.constant 0 : i32
    return %c0_i32, %c0_i32_0 : i32, i32
  }
  func.func @transform_6(%arg0: i32) -> (i32, i32, i32) {
    %c0_i32 = arith.constant 0 : i32
    %c0_i32_0 = arith.constant 0 : i32
    %c0_i32_1 = arith.constant 0 : i32
    %c0_i32_2 = arith.constant 0 : i32
    return %c0_i32, %c0_i32_0, %c0_i32_1 : i32, i32, i32
  }
  func.func @transform_7(%arg0: i32) -> (i32, i32, i32) {
    %c0_i32 = arith.constant 0 : i32
    %c0_i32_0 = arith.constant 0 : i32
    %c0_i32_1 = arith.constant 0 : i32
    %c0_i32_2 = arith.constant 0 : i32
    return %c0_i32, %c0_i32_0, %c0_i32_1 : i32, i32, i32
  }
  func.func @transform_8(%arg0: i32) -> (i32, i32, i32, i32) {
    %c0_i32 = arith.constant 0 : i32
    %c0_i32_0 = arith.constant 0 : i32
    %c0_i32_1 = arith.constant 0 : i32
    %c0_i32_2 = arith.constant 0 : i32
    %c0_i32_3 = arith.constant 0 : i32
    return %c0_i32, %c0_i32_0, %c0_i32_1, %c0_i32_2 : i32, i32, i32, i32
  }
  func.func @transform_9(%arg0: i32) -> (i32, i32, i32) {
    %c0_i32 = arith.constant 0 : i32
    %c0_i32_0 = arith.constant 0 : i32
    %c0_i32_1 = arith.constant 0 : i32
    %c0_i32_2 = arith.constant 0 : i32
    return %c0_i32, %c0_i32_0, %c0_i32_1 : i32, i32, i32
  }
  func.func @transform_10(%arg0: i32) -> (i32, i32, i32) {
    %c0_i32 = arith.constant 0 : i32
    %c0_i32_0 = arith.constant 0 : i32
    %c0_i32_1 = arith.constant 0 : i32
    %c0_i32_2 = arith.constant 0 : i32
    return %c0_i32, %c0_i32_0, %c0_i32_1 : i32, i32, i32
  }
  func.func @transform_11(%arg0: i32) -> (i32, i32, i32) {
    %c0_i32 = arith.constant 0 : i32
    %c0_i32_0 = arith.constant 0 : i32
    %c0_i32_1 = arith.constant 0 : i32
    %c0_i32_2 = arith.constant 0 : i32
    return %c0_i32, %c0_i32_0, %c0_i32_1 : i32, i32, i32
  }
  func.func @transform_12(%arg0: i32) -> (i32, i32, i32) {
    %c0_i32 = arith.constant 0 : i32
    %c0_i32_0 = arith.constant 0 : i32
    %c0_i32_1 = arith.constant 0 : i32
    %c0_i32_2 = arith.constant 0 : i32
    return %c0_i32, %c0_i32_0, %c0_i32_1 : i32, i32, i32
  }
  func.func @transform_13(%arg0: i32) -> (i32, i32, i32) {
    %c0_i32 = arith.constant 0 : i32
    %c0_i32_0 = arith.constant 0 : i32
    %c0_i32_1 = arith.constant 0 : i32
    %c0_i32_2 = arith.constant 0 : i32
    return %c0_i32, %c0_i32_0, %c0_i32_1 : i32, i32, i32
  }
  func.func @transform_14(%arg0: i32) -> (i32, i32, i32) {
    %c0_i32 = arith.constant 0 : i32
    %c0_i32_0 = arith.constant 0 : i32
    %c0_i32_1 = arith.constant 0 : i32
    %c0_i32_2 = arith.constant 0 : i32
    return %c0_i32, %c0_i32_0, %c0_i32_1 : i32, i32, i32
  }
  func.func @transform_15(%arg0: i32) -> (i32, i32, i32) {
    %c0_i32 = arith.constant 0 : i32
    %c0_i32_0 = arith.constant 0 : i32
    %c0_i32_1 = arith.constant 0 : i32
    %c0_i32_2 = arith.constant 0 : i32
    return %c0_i32, %c0_i32_0, %c0_i32_1 : i32, i32, i32
  }
  func.func @transform_16(%arg0: i32) -> (i32, i32, i32) {
    %c0_i32 = arith.constant 0 : i32
    %c0_i32_0 = arith.constant 0 : i32
    %c0_i32_1 = arith.constant 0 : i32
    %c0_i32_2 = arith.constant 0 : i32
    return %c0_i32, %c0_i32_0, %c0_i32_1 : i32, i32, i32
  }
  func.func @transform_17(%arg0: i32) -> (i32, i32, i32) {
    %c0_i32 = arith.constant 0 : i32
    %c0_i32_0 = arith.constant 0 : i32
    %c0_i32_1 = arith.constant 0 : i32
    %c0_i32_2 = arith.constant 0 : i32
    return %c0_i32, %c0_i32_0, %c0_i32_1 : i32, i32, i32
  }
  func.func @transform_18(%arg0: i32) -> (i32, i32) {
    %c0_i32 = arith.constant 0 : i32
    %c0_i32_0 = arith.constant 0 : i32
    %c0_i32_1 = arith.constant 0 : i32
    return %c0_i32, %c0_i32_0 : i32, i32
  }
  func.func @transform_19(%arg0: i32) -> (i32, i32) {
    %c0_i32 = arith.constant 0 : i32
    %c0_i32_0 = arith.constant 0 : i32
    %c0_i32_1 = arith.constant 0 : i32
    return %c0_i32, %c0_i32_0 : i32, i32
  }
  func.func @transform_20(%arg0: i32) -> (i32, i32, i32) {
    %c0_i32 = arith.constant 0 : i32
    %c0_i32_0 = arith.constant 0 : i32
    %c0_i32_1 = arith.constant 0 : i32
    %c0_i32_2 = arith.constant 0 : i32
    return %c0_i32, %c0_i32_0, %c0_i32_1 : i32, i32, i32
  }
  func.func @transform_21(%arg0: i32) -> (i32, i32) {
    %c0_i32 = arith.constant 0 : i32
    %c0_i32_0 = arith.constant 0 : i32
    %c0_i32_1 = arith.constant 0 : i32
    return %c0_i32, %c0_i32_0 : i32, i32
  }
  func.func @transform_22(%arg0: i32) -> (i32, i32, i32) {
    %c0_i32 = arith.constant 0 : i32
    %c0_i32_0 = arith.constant 0 : i32
    %c0_i32_1 = arith.constant 0 : i32
    return %arg0, %c0_i32, %c0_i32_0 : i32, i32, i32
  }
}

</mosaic_0001>

<llo_original>
// kernel: _lambda_.1
$region0: #{_lambda_.1}
  #allocation0 [shape = 'u32[]', space=smem, size = 0x4, offset = 0x4, fixed_abs, tag = 'smem constant byte address 0x4 - core index']
  #allocation1 [shape = 'u32[72,128]{1,0:T(1,128)}', space=vmem, size = 0x9000, scoped, tag = 'internal scratch']
  %s0 = inlined_call_operand.vmem [shape: bf16[2,64,4608], index: 0, kind: input, shape index: {}]
  %s1 = inlined_call_operand.vmem [shape: bf16[8,4608], index: 1, kind: input, shape index: {}]
  %s2 = inlined_call_operand.vmem [shape: f32[8,1], index: 2, kind: input, shape index: {}]
  %s3 = inlined_call_operand.vmem [shape: bf16[8,64,128], index: 3, kind: input, shape index: {}]
  %s4 = inlined_call_operand.vmem [shape: f32[8,128], index: 4, kind: input, shape index: {}]
  %s5 = inlined_call_operand.vmem [shape: f32[8,128], index: 5, kind: input, shape index: {}]
  %s6 = inlined_call_operand.vmem [shape: bf16[2,128,384], index: 6, kind: input, shape index: {}]
  %s7 = inlined_call_operand.vmem [shape: f32[2,1,384], index: 7, kind: input, shape index: {}]
  %s8 = inlined_call_operand.vmem [shape: bf16[2,4,32,128], index: 8, kind: input, shape index: {}]
  %s9 = inlined_call_operand.vmem [shape: f32[2,1,128], index: 9, kind: input, shape index: {}, may-alias: {9,11,15,17}]
  %s10 = inlined_call_operand.vmem [shape: f32[2,1,128], index: 10, kind: input, shape index: {}, may-alias: {10,16}]
  %s11 = inlined_call_operand.vmem [shape: f32[2,1,128], index: 11, kind: input, shape index: {}, may-alias: {9,11,15,17}]
  %s12 = inlined_call_operand.vmem [shape: bf16[2,128,256], index: 12, kind: input, shape index: {}]
  %s13 = inlined_call_operand.vmem [shape: f32[2,1,256], index: 13, kind: input, shape index: {}]
  %s14 = inlined_call_operand.vmem [shape: bf16[2,256,128], index: 14, kind: input, shape index: {}]
  %s15 = inlined_call_operand.vmem [shape: f32[2,1,128], index: 15, kind: input, shape index: {}, may-alias: {9,11,15,17}]
  %s16 = inlined_call_operand.vmem [shape: f32[2,1,128], index: 16, kind: input, shape index: {}, may-alias: {10,16}]
  %s17 = inlined_call_operand.vmem [shape: f32[2,1,128], index: 17, kind: input, shape index: {}, may-alias: {9,11,15,17}]
  %s18 = inlined_call_operand.vmem [shape: f32[1,128], index: 18, kind: input, shape index: {}]
  %s19 = inlined_call_operand.vmem [shape: f32[1,128], index: 19, kind: input, shape index: {}]
  %s20 = inlined_call_operand.vmem [shape: bf16[8,128,64], index: 20, kind: input, shape index: {}]
  %s21 = inlined_call_operand.vmem [shape: f32[8,64], index: 21, kind: input, shape index: {}]
  %s22 = inlined_call_operand.hbm [shape: f32[2,8,64], index: 22, kind: output, shape index: {}]
  %s23 = sld [smem:[#allocation0]]
  $region121: #{_lambda_.1} parent=0
    _
  %s25 = ssub.s32 1, %s23
  %s26 = scalar_select 0, %s25, %s23
  $region1: #{_lambda_.1} parent=0
    #allocation2 [shape = 'u8[8192]{0}', space=vmem, size = 0x2000, scoped, tag = 'output window, operand 0']
    #allocation3 [shape = 's32[2]{0}', space=sflag, size = 0x8, scoped, tag = 'scoped memory for _lambda_.1']
    %27 = vsyncpa [#allocation3], 0
    %s28 = scalar_lea.sflag [#allocation3], 1
    %29 = vsyncpa %s28, 0
    loop: start=0, step=1, limit=4
    $region2: #{_lambda_.1} parent=1 // loop_pre_header
      _
    $region3: #{_lambda_.1} parent=1 // loop_header
      %s31 = sphi 0, %s35
      %p32 = scmp.ge.s32.totalorder %s31, 4
      %s41 = sphi 0, %s43
      %s44 = sphi 0, %s41
      %s45 = sphi 0, %s44
      %s61 = sphi 0, %s45
      %s65 = sphi 0, %s65
      %s67 = sphi 0, %s65
      %s68 = sphi 0, %s67
      %s82 = sphi 0, %s68
      %s86 = sphi 0, %s86
      %s88 = sphi 0, %s86
      %s89 = sphi 0, %s88
      %s103 = sphi 0, %s89
      %s107 = sphi 0, %s107
      %s109 = sphi 0, %s107
      %s110 = sphi 0, %s109
      %s124 = sphi 0, %s110
      %s128 = sphi 0, %s128
      %s130 = sphi 0, %s128
      %s131 = sphi 0, %s130
      %s145 = sphi 0, %s131
      %s149 = sphi 0, %s149
      %s151 = sphi 0, %s149
      %s152 = sphi 0, %s151
      %s166 = sphi 0, %s152
      %s170 = sphi 0, %s170
      %s172 = sphi 0, %s170
      %s173 = sphi 0, %s172
      %s187 = sphi 0, %s173
      %s191 = sphi 0, %s191
      %s193 = sphi 0, %s191
      %s194 = sphi 0, %s193
      %s208 = sphi 0, %s194
      %s212 = sphi 0, %s212
      %s214 = sphi 0, %s212
      %s215 = sphi 0, %s214
      %s229 = sphi 0, %s215
      %s233 = sphi 0, %s233
      %s235 = sphi 0, %s233
      %s236 = sphi 0, %s235
      %s250 = sphi 0, %s236
      %s254 = sphi 0, %s254
      %s256 = sphi 0, %s254
      %s257 = sphi 0, %s256
      %s271 = sphi 0, %s257
      %s275 = sphi 0, %s275
      %s277 = sphi 0, %s275
      %s278 = sphi 0, %s277
      %s292 = sphi 0, %s278
      %s296 = sphi 0, %s296
      %s298 = sphi 0, %s296
      %s299 = sphi 0, %s298
      %s313 = sphi 0, %s299
      %s317 = sphi 0, %s317
      %s319 = sphi 0, %s317
      %s320 = sphi 0, %s319
      %s334 = sphi 0, %s320
      %s338 = sphi 0, %s338
      %s340 = sphi 0, %s338
      %s341 = sphi 0, %s340
      %s355 = sphi 0, %s341
      %s359 = sphi 0, %s359
      %s361 = sphi 0, %s359
      %s362 = sphi 0, %s361
      %s376 = sphi 0, %s362
      %s380 = sphi 0, %s380
      %s382 = sphi 0, %s380
      %s383 = sphi 0, %s382
      %s397 = sphi 0, %s383
      %s401 = sphi 0, %s401
      %s403 = sphi 0, %s401
      %s404 = sphi 0, %s403
      %s418 = sphi 0, %s404
      %s422 = sphi 0, %s422
      %s424 = sphi 0, %s422
      %s425 = sphi 0, %s424
      %s439 = sphi 0, %s425
      %s443 = sphi 0, %s443
      %s445 = sphi 0, %s443
      %s446 = sphi 0, %s445
      %s460 = sphi 0, %s446
      %s464 = sphi 0, %s464
      %s466 = sphi 0, %s464
      %s467 = sphi 0, %s466
      %s481 = sphi 0, %s467
      %s485 = sphi 0, %s485
      %s487 = sphi 0, %s485
      %s488 = sphi 0, %s487
      %s502 = sphi 0, %s488
      %s508 = sphi 0, %s510
      %s511 = sphi 0, %s508
      %s512 = sphi 0, %s511
      %s528 = sphi 0, %s512
    $region4: #{_lambda_.1} parent=1 // loop_header_branch
      %34 = sbr.rel (%p32) target = $region8
    $region5: #{_lambda_.1} parent=1 // loop_body
      %s36 = ssub.s32 %s31, 1
      %s37 = ssub.s32 %s31, 2
      %s38 = sadd.s32 %s31, 1
      %s39 = ssub.s32 %s31, %s38
      %p40 = scmp.eq.s32.totalorder %s39, 0
      %s42 = sadd.s32 %s41, 1
      %s43 = scalar_select %p40, %s41, %s42
      %p46 = pneg %p40
      %p47 = scmp.eq.s32.totalorder %s31, 1
      %p48 = por %p46, %p47
      %p49 = scmp.ne.s32.totalorder %s41, %s44
      %p50 = scmp.eq.s32.totalorder %s31, 0
      %p51 = por %p49, %p50
      %p52 = scmp.ne.s32.totalorder %s41, %s44
      %p53 = scmp.eq.s32.totalorder %s36, 1
      %p54 = por %p52, %p53
      %p55 = scmp.ne.s32.totalorder %s44, %s45
      %p56 = scmp.eq.s32.totalorder %s36, 0
      %p57 = por %p55, %p56
      %p58 = scmp.ne.s32.totalorder %s44, %s45
      %p59 = scmp.eq.s32.totalorder %s37, 1
      %p60 = por %p58, %p59
      %p62 = scmp.ne.s32.totalorder %s45, %s61
      %p63 = scmp.eq.s32.totalorder %s37, 0
      %p64 = por %p62, %p63
      %s66 = sadd.s32 %s65, 1
      %p69 = scmp.eq.s32.totalorder %s31, 1
      %p70 = scmp.ne.s32.totalorder %s65, %s67
      %p71 = scmp.eq.s32.totalorder %s31, 0
      %p72 = por %p70, %p71
      %p73 = scmp.ne.s32.totalorder %s65, %s67
      %p74 = scmp.eq.s32.totalorder %s36, 1
      %p75 = por %p73, %p74
      %p76 = scmp.ne.s32.totalorder %s67, %s68
      %p77 = scmp.eq.s32.totalorder %s36, 0
      %p78 = por %p76, %p77
      %p79 = scmp.ne.s32.totalorder %s67, %s68
      %p80 = scmp.eq.s32.totalorder %s37, 1
      %p81 = por %p79, %p80
      %p83 = scmp.ne.s32.totalorder %s68, %s82
      %p84 = scmp.eq.s32.totalorder %s37, 0
      %p85 = por %p83, %p84
      %s87 = sadd.s32 %s86, 1
      %p90 = scmp.eq.s32.totalorder %s31, 1
      %p91 = scmp.ne.s32.totalorder %s86, %s88
      %p92 = scmp.eq.s32.totalorder %s31, 0
      %p93 = por %p91, %p92
      %p94 = scmp.ne.s32.totalorder %s86, %s88
      %p95 = scmp.eq.s32.totalorder %s36, 1
      %p96 = por %p94, %p95
      %p97 = scmp.ne.s32.totalorder %s88, %s89
      %p98 = scmp.eq.s32.totalorder %s36, 0
      %p99 = por %p97, %p98
      %p100 = scmp.ne.s32.totalorder %s88, %s89
      %p101 = scmp.eq.s32.totalorder %s37, 1
      %p102 = por %p100, %p101
      %p104 = scmp.ne.s32.totalorder %s89, %s103
      %p105 = scmp.eq.s32.totalorder %s37, 0
      %p106 = por %p104, %p105
      %s108 = sadd.s32 %s107, 1
      %p111 = scmp.eq.s32.totalorder %s31, 1
      %p112 = scmp.ne.s32.totalorder %s107, %s109
      %p113 = scmp.eq.s32.totalorder %s31, 0
      %p114 = por %p112, %p113
      %p115 = scmp.ne.s32.totalorder %s107, %s109
      %p116 = scmp.eq.s32.totalorder %s36, 1
      %p117 = por %p115, %p116
      %p118 = scmp.ne.s32.totalorder %s109, %s110
      %p119 = scmp.eq.s32.totalorder %s36, 0
      %p120 = por %p118, %p119
      %p121 = scmp.ne.s32.totalorder %s109, %s110
      %p122 = scmp.eq.s32.totalorder %s37, 1
      %p123 = por %p121, %p122
      %p125 = scmp.ne.s32.totalorder %s110, %s124
      %p126 = scmp.eq.s32.totalorder %s37, 0
      %p127 = por %p125, %p126
      %s129 = sadd.s32 %s128, 1
      %p132 = scmp.eq.s32.totalorder %s31, 1
      %p133 = scmp.ne.s32.totalorder %s128, %s130
      %p134 = scmp.eq.s32.totalorder %s31, 0
      %p135 = por %p133, %p134
      %p136 = scmp.ne.s32.totalorder %s128, %s130
      %p137 = scmp.eq.s32.totalorder %s36, 1
      %p138 = por %p136, %p137
      %p139 = scmp.ne.s32.totalorder %s130, %s131
      %p140 = scmp.eq.s32.totalorder %s36, 0
      %p141 = por %p139, %p140
      %p142 = scmp.ne.s32.totalorder %s130, %s131
      %p143 = scmp.eq.s32.totalorder %s37, 1
      %p144 = por %p142, %p143
      %p146 = scmp.ne.s32.totalorder %s131, %s145
      %p147 = scmp.eq.s32.totalorder %s37, 0
      %p148 = por %p146, %p147
      %s150 = sadd.s32 %s149, 1
      %p153 = scmp.eq.s32.totalorder %s31, 1
      %p154 = scmp.ne.s32.totalorder %s149, %s151
      %p155 = scmp.eq.s32.totalorder %s31, 0
      %p156 = por %p154, %p155
      %p157 = scmp.ne.s32.totalorder %s149, %s151
      %p158 = scmp.eq.s32.totalorder %s36, 1
      %p159 = por %p157, %p158
      %p160 = scmp.ne.s32.totalorder %s151, %s152
      %p161 = scmp.eq.s32.totalorder %s36, 0
      %p162 = por %p160, %p161
      %p163 = scmp.ne.s32.totalorder %s151, %s152
      %p164 = scmp.eq.s32.totalorder %s37, 1
      %p165 = por %p163, %p164
      %p167 = scmp.ne.s32.totalorder %s152, %s166
      %p168 = scmp.eq.s32.totalorder %s37, 0
      %p169 = por %p167, %p168
      %s171 = sadd.s32 %s170, 1
      %p174 = scmp.eq.s32.totalorder %s31, 1
      %p175 = scmp.ne.s32.totalorder %s170, %s172
      %p176 = scmp.eq.s32.totalorder %s31, 0
      %p177 = por %p175, %p176
      %p178 = scmp.ne.s32.totalorder %s170, %s172
      %p179 = scmp.eq.s32.totalorder %s36, 1
      %p180 = por %p178, %p179
      %p181 = scmp.ne.s32.totalorder %s172, %s173
      %p182 = scmp.eq.s32.totalorder %s36, 0
      %p183 = por %p181, %p182
      %p184 = scmp.ne.s32.totalorder %s172, %s173
      %p185 = scmp.eq.s32.totalorder %s37, 1
      %p186 = por %p184, %p185
      %p188 = scmp.ne.s32.totalorder %s173, %s187
      %p189 = scmp.eq.s32.totalorder %s37, 0
      %p190 = por %p188, %p189
      %s192 = sadd.s32 %s191, 1
      %p195 = scmp.eq.s32.totalorder %s31, 1
      %p196 = scmp.ne.s32.totalorder %s191, %s193
      %p197 = scmp.eq.s32.totalorder %s31, 0
      %p198 = por %p196, %p197
      %p199 = scmp.ne.s32.totalorder %s191, %s193
      %p200 = scmp.eq.s32.totalorder %s36, 1
      %p201 = por %p199, %p200
      %p202 = scmp.ne.s32.totalorder %s193, %s194
      %p203 = scmp.eq.s32.totalorder %s36, 0
      %p204 = por %p202, %p203
      %p205 = scmp.ne.s32.totalorder %s193, %s194
      %p206 = scmp.eq.s32.totalorder %s37, 1
      %p207 = por %p205, %p206
      %p209 = scmp.ne.s32.totalorder %s194, %s208
      %p210 = scmp.eq.s32.totalorder %s37, 0
      %p211 = por %p209, %p210
      %s213 = sadd.s32 %s212, 1
      %p216 = scmp.eq.s32.totalorder %s31, 1
      %p217 = scmp.ne.s32.totalorder %s212, %s214
      %p218 = scmp.eq.s32.totalorder %s31, 0
      %p219 = por %p217, %p218
      %p220 = scmp.ne.s32.totalorder %s212, %s214
      %p221 = scmp.eq.s32.totalorder %s36, 1
      %p222 = por %p220, %p221
      %p223 = scmp.ne.s32.totalorder %s214, %s215
      %p224 = scmp.eq.s32.totalorder %s36, 0
      %p225 = por %p223, %p224
      %p226 = scmp.ne.s32.totalorder %s214, %s215
      %p227 = scmp.eq.s32.totalorder %s37, 1
      %p228 = por %p226, %p227
      %p230 = scmp.ne.s32.totalorder %s215, %s229
      %p231 = scmp.eq.s32.totalorder %s37, 0
      %p232 = por %p230, %p231
      %s234 = sadd.s32 %s233, 1
      %p237 = scmp.eq.s32.totalorder %s31, 1
      %p238 = scmp.ne.s32.totalorder %s233, %s235
      %p239 = scmp.eq.s32.totalorder %s31, 0
      %p240 = por %p238, %p239
      %p241 = scmp.ne.s32.totalorder %s233, %s235
      %p242 = scmp.eq.s32.totalorder %s36, 1
      %p243 = por %p241, %p242
      %p244 = scmp.ne.s32.totalorder %s235, %s236
      %p245 = scmp.eq.s32.totalorder %s36, 0
      %p246 = por %p244, %p245
      %p247 = scmp.ne.s32.totalorder %s235, %s236
      %p248 = scmp.eq.s32.totalorder %s37, 1
      %p249 = por %p247, %p248
      %p251 = scmp.ne.s32.totalorder %s236, %s250
      %p252 = scmp.eq.s32.totalorder %s37, 0
      %p253 = por %p251, %p252
      %s255 = sadd.s32 %s254, 1
      %p258 = scmp.eq.s32.totalorder %s31, 1
      %p259 = scmp.ne.s32.totalorder %s254, %s256
      %p260 = scmp.eq.s32.totalorder %s31, 0
      %p261 = por %p259, %p260
      %p262 = scmp.ne.s32.totalorder %s254, %s256
      %p263 = scmp.eq.s32.totalorder %s36, 1
      %p264 = por %p262, %p263
      %p265 = scmp.ne.s32.totalorder %s256, %s257
      %p266 = scmp.eq.s32.totalorder %s36, 0
      %p267 = por %p265, %p266
      %p268 = scmp.ne.s32.totalorder %s256, %s257
      %p269 = scmp.eq.s32.totalorder %s37, 1
      %p270 = por %p268, %p269
      %p272 = scmp.ne.s32.totalorder %s257, %s271
      %p273 = scmp.eq.s32.totalorder %s37, 0
      %p274 = por %p272, %p273
      %s276 = sadd.s32 %s275, 1
      %p279 = scmp.eq.s32.totalorder %s31, 1
      %p280 = scmp.ne.s32.totalorder %s275, %s277
      %p281 = scmp.eq.s32.totalorder %s31, 0
      %p282 = por %p280, %p281
      %p283 = scmp.ne.s32.totalorder %s275, %s277
      %p284 = scmp.eq.s32.totalorder %s36, 1
      %p285 = por %p283, %p284
      %p286 = scmp.ne.s32.totalorder %s277, %s278
      %p287 = scmp.eq.s32.totalorder %s36, 0
      %p288 = por %p286, %p287
      %p289 = scmp.ne.s32.totalorder %s277, %s278
      %p290 = scmp.eq.s32.totalorder %s37, 1
      %p291 = por %p289, %p290
      %p293 = scmp.ne.s32.totalorder %s278, %s292
      %p294 = scmp.eq.s32.totalorder %s37, 0
      %p295 = por %p293, %p294
      %s297 = sadd.s32 %s296, 1
      %p300 = scmp.eq.s32.totalorder %s31, 1
      %p301 = scmp.ne.s32.totalorder %s296, %s298
      %p302 = scmp.eq.s32.totalorder %s31, 0
      %p303 = por %p301, %p302
      %p304 = scmp.ne.s32.totalorder %s296, %s298
      %p305 = scmp.eq.s32.totalorder %s36, 1
      %p306 = por %p304, %p305
      %p307 = scmp.ne.s32.totalorder %s298, %s299
      %p308 = scmp.eq.s32.totalorder %s36, 0
      %p309 = por %p307, %p308
      %p310 = scmp.ne.s32.totalorder %s298, %s299
      %p311 = scmp.eq.s32.totalorder %s37, 1
      %p312 = por %p310, %p311
      %p314 = scmp.ne.s32.totalorder %s299, %s313
      %p315 = scmp.eq.s32.totalorder %s37, 0
      %p316 = por %p314, %p315
      %s318 = sadd.s32 %s317, 1
      %p321 = scmp.eq.s32.totalorder %s31, 1
      %p322 = scmp.ne.s32.totalorder %s317, %s319
      %p323 = scmp.eq.s32.totalorder %s31, 0
      %p324 = por %p322, %p323
      %p325 = scmp.ne.s32.totalorder %s317, %s319
      %p326 = scmp.eq.s32.totalorder %s36, 1
      %p327 = por %p325, %p326
      %p328 = scmp.ne.s32.totalorder %s319, %s320
      %p329 = scmp.eq.s32.totalorder %s36, 0
      %p330 = por %p328, %p329
      %p331 = scmp.ne.s32.totalorder %s319, %s320
      %p332 = scmp.eq.s32.totalorder %s37, 1
      %p333 = por %p331, %p332
      %p335 = scmp.ne.s32.totalorder %s320, %s334
      %p336 = scmp.eq.s32.totalorder %s37, 0
      %p337 = por %p335, %p336
      %s339 = sadd.s32 %s338, 1
      %p342 = scmp.eq.s32.totalorder %s31, 1
      %p343 = scmp.ne.s32.totalorder %s338, %s340
      %p344 = scmp.eq.s32.totalorder %s31, 0
      %p345 = por %p343, %p344
      %p346 = scmp.ne.s32.totalorder %s338, %s340
      %p347 = scmp.eq.s32.totalorder %s36, 1
      %p348 = por %p346, %p347
      %p349 = scmp.ne.s32.totalorder %s340, %s341
      %p350 = scmp.eq.s32.totalorder %s36, 0
      %p351 = por %p349, %p350
      %p352 = scmp.ne.s32.totalorder %s340, %s341
      %p353 = scmp.eq.s32.totalorder %s37, 1
      %p354 = por %p352, %p353
      %p356 = scmp.ne.s32.totalorder %s341, %s355
      %p357 = scmp.eq.s32.totalorder %s37, 0
      %p358 = por %p356, %p357
      %s360 = sadd.s32 %s359, 1
      %p363 = scmp.eq.s32.totalorder %s31, 1
      %p364 = scmp.ne.s32.totalorder %s359, %s361
      %p365 = scmp.eq.s32.totalorder %s31, 0
      %p366 = por %p364, %p365
      %p367 = scmp.ne.s32.totalorder %s359, %s361
      %p368 = scmp.eq.s32.totalorder %s36, 1
      %p369 = por %p367, %p368
      %p370 = scmp.ne.s32.totalorder %s361, %s362
      %p371 = scmp.eq.s32.totalorder %s36, 0
      %p372 = por %p370, %p371
      %p373 = scmp.ne.s32.totalorder %s361, %s362
      %p374 = scmp.eq.s32.totalorder %s37, 1
      %p375 = por %p373, %p374
      %p377 = scmp.ne.s32.totalorder %s362, %s376
      %p378 = scmp.eq.s32.totalorder %s37, 0
      %p379 = por %p377, %p378
      %s381 = sadd.s32 %s380, 1
      %p384 = scmp.eq.s32.totalorder %s31, 1
      %p385 = scmp.ne.s32.totalorder %s380, %s382
      %p386 = scmp.eq.s32.totalorder %s31, 0
      %p387 = por %p385, %p386
      %p388 = scmp.ne.s32.totalorder %s380, %s382
      %p389 = scmp.eq.s32.totalorder %s36, 1
      %p390 = por %p388, %p389
      %p391 = scmp.ne.s32.totalorder %s382, %s383
      %p392 = scmp.eq.s32.totalorder %s36, 0
      %p393 = por %p391, %p392
      %p394 = scmp.ne.s32.totalorder %s382, %s383
      %p395 = scmp.eq.s32.totalorder %s37, 1
      %p396 = por %p394, %p395
      %p398 = scmp.ne.s32.totalorder %s383, %s397
      %p399 = scmp.eq.s32.totalorder %s37, 0
      %p400 = por %p398, %p399
      %s402 = sadd.s32 %s401, 1
      %p405 = scmp.eq.s32.totalorder %s31, 1
      %p406 = scmp.ne.s32.totalorder %s401, %s403
      %p407 = scmp.eq.s32.totalorder %s31, 0
      %p408 = por %p406, %p407
      %p409 = scmp.ne.s32.totalorder %s401, %s403
      %p410 = scmp.eq.s32.totalorder %s36, 1
      %p411 = por %p409, %p410
      %p412 = scmp.ne.s32.totalorder %s403, %s404
      %p413 = scmp.eq.s32.totalorder %s36, 0
      %p414 = por %p412, %p413
      %p415 = scmp.ne.s32.totalorder %s403, %s404
      %p416 = scmp.eq.s32.totalorder %s37, 1
      %p417 = por %p415, %p416
      %p419 = scmp.ne.s32.totalorder %s404, %s418
      %p420 = scmp.eq.s32.totalorder %s37, 0
      %p421 = por %p419, %p420
      %s423 = sadd.s32 %s422, 1
      %p426 = scmp.eq.s32.totalorder %s31, 1
      %p427 = scmp.ne.s32.totalorder %s422, %s424
      %p428 = scmp.eq.s32.totalorder %s31, 0
      %p429 = por %p427, %p428
      %p430 = scmp.ne.s32.totalorder %s422, %s424
      %p431 = scmp.eq.s32.totalorder %s36, 1
      %p432 = por %p430, %p431
      %p433 = scmp.ne.s32.totalorder %s424, %s425
      %p434 = scmp.eq.s32.totalorder %s36, 0
      %p435 = por %p433, %p434
      %p436 = scmp.ne.s32.totalorder %s424, %s425
      %p437 = scmp.eq.s32.totalorder %s37, 1
      %p438 = por %p436, %p437
      %p440 = scmp.ne.s32.totalorder %s425, %s439
      %p441 = scmp.eq.s32.totalorder %s37, 0
      %p442 = por %p440, %p441
      %s444 = sadd.s32 %s443, 1
      %p447 = scmp.eq.s32.totalorder %s31, 1
      %p448 = scmp.ne.s32.totalorder %s443, %s445
      %p449 = scmp.eq.s32.totalorder %s31, 0
      %p450 = por %p448, %p449
      %p451 = scmp.ne.s32.totalorder %s443, %s445
      %p452 = scmp.eq.s32.totalorder %s36, 1
      %p453 = por %p451, %p452
      %p454 = scmp.ne.s32.totalorder %s445, %s446
      %p455 = scmp.eq.s32.totalorder %s36, 0
      %p456 = por %p454, %p455
      %p457 = scmp.ne.s32.totalorder %s445, %s446
      %p458 = scmp.eq.s32.totalorder %s37, 1
      %p459 = por %p457, %p458
      %p461 = scmp.ne.s32.totalorder %s446, %s460
      %p462 = scmp.eq.s32.totalorder %s37, 0
      %p463 = por %p461, %p462
      %s465 = sadd.s32 %s464, 1
      %p468 = scmp.eq.s32.totalorder %s31, 1
      %p469 = scmp.ne.s32.totalorder %s464, %s466
      %p470 = scmp.eq.s32.totalorder %s31, 0
      %p471 = por %p469, %p470
      %p472 = scmp.ne.s32.totalorder %s464, %s466
      %p473 = scmp.eq.s32.totalorder %s36, 1
      %p474 = por %p472, %p473
      %p475 = scmp.ne.s32.totalorder %s466, %s467
      %p476 = scmp.eq.s32.totalorder %s36, 0
      %p477 = por %p475, %p476
      %p478 = scmp.ne.s32.totalorder %s466, %s467
      %p479 = scmp.eq.s32.totalorder %s37, 1
      %p480 = por %p478, %p479
      %p482 = scmp.ne.s32.totalorder %s467, %s481
      %p483 = scmp.eq.s32.totalorder %s37, 0
      %p484 = por %p482, %p483
      %s486 = sadd.s32 %s485, 1
      %p489 = scmp.eq.s32.totalorder %s31, 1
      %p490 = scmp.ne.s32.totalorder %s485, %s487
      %p491 = scmp.eq.s32.totalorder %s31, 0
      %p492 = por %p490, %p491
      %p493 = scmp.ne.s32.totalorder %s485, %s487
      %p494 = scmp.eq.s32.totalorder %s36, 1
      %p495 = por %p493, %p494
      %p496 = scmp.ne.s32.totalorder %s487, %s488
      %p497 = scmp.eq.s32.totalorder %s36, 0
      %p498 = por %p496, %p497
      %p499 = scmp.ne.s32.totalorder %s487, %s488
      %p500 = scmp.eq.s32.totalorder %s37, 1
      %p501 = por %p499, %p500
      %p503 = scmp.ne.s32.totalorder %s488, %s502
      %p504 = scmp.eq.s32.totalorder %s37, 0
      %p505 = por %p503, %p504
      %s506 = ssub.s32 %s31, %s38
      %p507 = scmp.eq.s32.totalorder %s506, 0
      %s509 = sadd.s32 %s508, 1
      %s510 = scalar_select %p507, %s508, %s509
      %p513 = pneg %p507
      %p514 = scmp.eq.s32.totalorder %s31, 1
      %p515 = por %p513, %p514
      %p516 = scmp.ne.s32.totalorder %s508, %s511
      %p517 = scmp.eq.s32.totalorder %s31, 0
      %p518 = por %p516, %p517
      %p519 = scmp.ne.s32.totalorder %s508, %s511
      %p520 = scmp.eq.s32.totalorder %s36, 1
      %p521 = por %p519, %p520
      %p522 = scmp.ne.s32.totalorder %s511, %s512
      %p523 = scmp.eq.s32.totalorder %s36, 0
      %p524 = por %p522, %p523
      %p525 = scmp.ne.s32.totalorder %s511, %s512
      %p526 = scmp.eq.s32.totalorder %s37, 1
      %p527 = por %p525, %p526
      %p529 = scmp.ne.s32.totalorder %s512, %s528
      %p530 = scmp.eq.s32.totalorder %s37, 0
      %p531 = por %p529, %p530
      %p532 = scmp.le.s32.totalorder 1, %s31
      %p533 = scmp.lt.s32.totalorder %s31, 3
      %p534 = pnand %p532, %p533
      %p535 = pneg %p534
      // Predicated region
      $region9: #{_lambda_.1} parent=5 // pred_check
        _
      $region10: #{_lambda_.1} parent=5 // pred_check_branch
        %537 = sbr.rel (%p534) target = $region12
      $region11: #{_lambda_.1} parent=5 // pred_region
        %s538 = ssub.s32 %s31, 1
        // Predicated region
        $region13: #{_lambda_.1} parent=11 // pred_check
          %p539 = pneg %p78
        $region14: #{_lambda_.1} parent=11 // pred_check_branch
          %541 = sbr.rel (%p539) target = $region16
        $region15: #{_lambda_.1} parent=11 // pred_region
          _
        $region16: #{_lambda_.1} parent=11 // pred_fallthru
          _
        // Predicated region
        $region17: #{_lambda_.1} parent=11 // pred_check
          %p542 = pneg %p99
        $region18: #{_lambda_.1} parent=11 // pred_check_branch
          %544 = sbr.rel (%p542) target = $region20
        $region19: #{_lambda_.1} parent=11 // pred_region
          _
        $region20: #{_lambda_.1} parent=11 // pred_fallthru
          _
        // Predicated region
        $region21: #{_lambda_.1} parent=11 // pred_check
          %p545 = pneg %p120
        $region22: #{_lambda_.1} parent=11 // pred_check_branch
          %547 = sbr.rel (%p545) target = $region24
        $region23: #{_lambda_.1} parent=11 // pred_region
          _
        $region24: #{_lambda_.1} parent=11 // pred_fallthru
          _
        // Predicated region
        $region25: #{_lambda_.1} parent=11 // pred_check
          %p548 = pneg %p141
        $region26: #{_lambda_.1} parent=11 // pred_check_branch
          %550 = sbr.rel (%p548) target = $region28
        $region27: #{_lambda_.1} parent=11 // pred_region
          _
        $region28: #{_lambda_.1} parent=11 // pred_fallthru
          _
        // Predicated region
        $region29: #{_lambda_.1} parent=11 // pred_check
          %p551 = pneg %p162
        $region30: #{_lambda_.1} parent=11 // pred_check_branch
          %553 = sbr.rel (%p551) target = $region32
        $region31: #{_lambda_.1} parent=11 // pred_region
          _
        $region32: #{_lambda_.1} parent=11 // pred_fallthru
          _
        // Predicated region
        $region33: #{_lambda_.1} parent=11 // pred_check
          %p554 = pneg %p183
        $region34: #{_lambda_.1} parent=11 // pred_check_branch
          %556 = sbr.rel (%p554) target = $region36
        $region35: #{_lambda_.1} parent=11 // pred_region
          _
        $region36: #{_lambda_.1} parent=11 // pred_fallthru
          _
        // Predicated region
        $region37: #{_lambda_.1} parent=11 // pred_check
          %p557 = pneg %p204
        $region38: #{_lambda_.1} parent=11 // pred_check_branch
          %559 = sbr.rel (%p557) target = $region40
        $region39: #{_lambda_.1} parent=11 // pred_region
          _
        $region40: #{_lambda_.1} parent=11 // pred_fallthru
          _
        // Predicated region
        $region41: #{_lambda_.1} parent=11 // pred_check
          %p560 = pneg %p225
        $region42: #{_lambda_.1} parent=11 // pred_check_branch
          %562 = sbr.rel (%p560) target = $region44
        $region43: #{_lambda_.1} parent=11 // pred_region
          _
        $region44: #{_lambda_.1} parent=11 // pred_fallthru
          _
        // Predicated region
        $region45: #{_lambda_.1} parent=11 // pred_check
          %p563 = pneg %p246
        $region46: #{_lambda_.1} parent=11 // pred_check_branch
          %565 = sbr.rel (%p563) target = $region48
        $region47: #{_lambda_.1} parent=11 // pred_region
          _
        $region48: #{_lambda_.1} parent=11 // pred_fallthru
          _
        // Predicated region
        $region49: #{_lambda_.1} parent=11 // pred_check
          %p566 = pneg %p267
        $region50: #{_lambda_.1} parent=11 // pred_check_branch
          %568 = sbr.rel (%p566) target = $region52
        $region51: #{_lambda_.1} parent=11 // pred_region
          _
        $region52: #{_lambda_.1} parent=11 // pred_fallthru
          _
        // Predicated region
        $region53: #{_lambda_.1} parent=11 // pred_check
          %p569 = pneg %p288
        $region54: #{_lambda_.1} parent=11 // pred_check_branch
          %571 = sbr.rel (%p569) target = $region56
        $region55: #{_lambda_.1} parent=11 // pred_region
          _
        $region56: #{_lambda_.1} parent=11 // pred_fallthru
          _
        // Predicated region
        $region57: #{_lambda_.1} parent=11 // pred_check
          %p572 = pneg %p309
        $region58: #{_lambda_.1} parent=11 // pred_check_branch
          %574 = sbr.rel (%p572) target = $region60
        $region59: #{_lambda_.1} parent=11 // pred_region
          _
        $region60: #{_lambda_.1} parent=11 // pred_fallthru
          _
        // Predicated region
        $region61: #{_lambda_.1} parent=11 // pred_check
          %p575 = pneg %p330
        $region62: #{_lambda_.1} parent=11 // pred_check_branch
          %577 = sbr.rel (%p575) target = $region64
        $region63: #{_lambda_.1} parent=11 // pred_region
          _
        $region64: #{_lambda_.1} parent=11 // pred_fallthru
          _
        // Predicated region
        $region65: #{_lambda_.1} parent=11 // pred_check
          %p578 = pneg %p351
        $region66: #{_lambda_.1} parent=11 // pred_check_branch
          %580 = sbr.rel (%p578) target = $region68
        $region67: #{_lambda_.1} parent=11 // pred_region
          _
        $region68: #{_lambda_.1} parent=11 // pred_fallthru
          _
        // Predicated region
        $region69: #{_lambda_.1} parent=11 // pred_check
          %p581 = pneg %p372
        $region70: #{_lambda_.1} parent=11 // pred_check_branch
          %583 = sbr.rel (%p581) target = $region72
        $region71: #{_lambda_.1} parent=11 // pred_region
          _
        $region72: #{_lambda_.1} parent=11 // pred_fallthru
          _
        // Predicated region
        $region73: #{_lambda_.1} parent=11 // pred_check
          %p584 = pneg %p393
        $region74: #{_lambda_.1} parent=11 // pred_check_branch
          %586 = sbr.rel (%p584) target = $region76
        $region75: #{_lambda_.1} parent=11 // pred_region
          _
        $region76: #{_lambda_.1} parent=11 // pred_fallthru
          _
        // Predicated region
        $region77: #{_lambda_.1} parent=11 // pred_check
          %p587 = pneg %p414
        $region78: #{_lambda_.1} parent=11 // pred_check_branch
          %589 = sbr.rel (%p587) target = $region80
        $region79: #{_lambda_.1} parent=11 // pred_region
          _
        $region80: #{_lambda_.1} parent=11 // pred_fallthru
          _
        // Predicated region
        $region81: #{_lambda_.1} parent=11 // pred_check
          %p590 = pneg %p435
        $region82: #{_lambda_.1} parent=11 // pred_check_branch
          %592 = sbr.rel (%p590) target = $region84
        $region83: #{_lambda_.1} parent=11 // pred_region
          _
        $region84: #{_lambda_.1} parent=11 // pred_fallthru
          _
        // Predicated region
        $region85: #{_lambda_.1} parent=11 // pred_check
          %p593 = pneg %p456
        $region86: #{_lambda_.1} parent=11 // pred_check_branch
          %595 = sbr.rel (%p593) target = $region88
        $region87: #{_lambda_.1} parent=11 // pred_region
          _
        $region88: #{_lambda_.1} parent=11 // pred_fallthru
          _
        // Predicated region
        $region89: #{_lambda_.1} parent=11 // pred_check
          %p596 = pneg %p477
        $region90: #{_lambda_.1} parent=11 // pred_check_branch
          %598 = sbr.rel (%p596) target = $region92
        $region91: #{_lambda_.1} parent=11 // pred_region
          _
        $region92: #{_lambda_.1} parent=11 // pred_fallthru
          _
        // Predicated region
        $region93: #{_lambda_.1} parent=11 // pred_check
          %p599 = pneg %p498
        $region94: #{_lambda_.1} parent=11 // pred_check_branch
          %601 = sbr.rel (%p599) target = $region96
        $region95: #{_lambda_.1} parent=11 // pred_region
          _
        $region96: #{_lambda_.1} parent=11 // pred_fallthru
          _
      $region12: #{_lambda_.1} parent=5 // pred_fallthru
        _
      %p602 = scmp.lt.s32.totalorder %s31, 2
      // Predicated region
      $region97: #{_lambda_.1} parent=5 // pred_check
        %p603 = pneg %p602
      $region98: #{_lambda_.1} parent=5 // pred_check_branch
        %605 = sbr.rel (%p603) target = $region100
      $region99: #{_lambda_.1} parent=5 // pred_region
        // Predicated region
        $region101: #{_lambda_.1} parent=99 // pred_check
          %p606 = pneg %p51
        $region102: #{_lambda_.1} parent=99 // pred_check_branch
          %608 = sbr.rel (%p606) target = $region104
        $region103: #{_lambda_.1} parent=99 // pred_region
          %p609 = scmp.lt.s32.totalorder %s31, 1
          %s610 = scalar_select %p609, %s31, 1
          %s611 = smul.addr %s610, 288
          %s612 = smul.addr %s611, 4
          %s613 = scalar_lea.vmem %s0, %s612
        $region104: #{_lambda_.1} parent=99 // pred_fallthru
          _
      $region100: #{_lambda_.1} parent=5 // pred_fallthru
        _
      %p614 = scmp.le.s32.totalorder 1, %s31
      %p615 = scmp.lt.s32.totalorder %s31, 3
      %p616 = pnand %p614, %p615
      %p617 = pneg %p616
      // Predicated region
      $region105: #{_lambda_.1} parent=5 // pred_check
        _
      $region106: #{_lambda_.1} parent=5 // pred_check_branch
        %619 = sbr.rel (%p616) target = $region108
      $region107: #{_lambda_.1} parent=5 // pred_region
        %s620 = ssub.s32 %s31, 1
        %p621 = scmp.lt.s32.totalorder %s36, 1
        %s622 = scalar_select %p621, %s36, 1
        %s623 = smul.addr %s622, 288
        %s624 = smul.addr %s623, 4
        %s625 = scalar_lea.vmem %s0, %s624
        %p626 = pneg %p57
        %p627 = pneg %p54
        %p628 = pneg %p78
        %p629 = pneg %p75
        %p630 = pneg %p99
        %p631 = pneg %p96
        %p632 = pneg %p120
        %p633 = pneg %p117
        %p634 = pneg %p141
        %p635 = pneg %p138
        %p636 = pneg %p162
        %p637 = pneg %p159
        %p638 = pneg %p183
        %p639 = pneg %p180
        %p640 = pneg %p204
        %p641 = pneg %p201
        %p642 = pneg %p225
        %p643 = pneg %p222
        %p644 = pneg %p246
        %p645 = pneg %p243
        %p646 = pneg %p267
        %p647 = pneg %p264
        %p648 = pneg %p288
        %p649 = pneg %p285
        %p650 = pneg %p309
        %p651 = pneg %p306
        %p652 = pneg %p330
        %p653 = pneg %p327
        %p654 = pneg %p351
        %p655 = pneg %p348
        %p656 = pneg %p372
        %p657 = pneg %p369
        %p658 = pneg %p393
        %p659 = pneg %p390
        %p660 = pneg %p414
        %p661 = pneg %p411
        %p662 = pneg %p435
        %p663 = pneg %p432
        %p664 = pneg %p456
        %p665 = pneg %p453
        %p666 = pneg %p477
        %p667 = pneg %p474
        %p668 = pneg %p498
        %p669 = pneg %p495
        %p670 = pneg %p524
        %p671 = pneg %p521
        %s672 = sand.u32 %s511, 1
        %s673 = scalar_lea.sflag [#allocation3], %s672
        %s674 = sand.u32 %s511, 1
        %s675 = smul.addr %s674, 8
        %s676 = scalar_lea.vmem [#allocation2], %s675
        %p677 = scmp.lt.s32.totalorder %s36, 1
        %s678 = scalar_select %p677, %s36, 1
        %s679 = smul.addr %s678, 288
        %s680 = smul.addr %s679, 4
        %s681 = scalar_lea.vmem %s0, %s680
        %v683 = vld [vmem:[%s681] sm:$0xff]
        %v684 = vld [vmem:[%s681 + $0x8] sm:$0xff]
        %v685 = vld [vmem:[%s681 + $0x10] sm:$0xff]
        %v686 = vld [vmem:[%s681 + $0x18] sm:$0xff]
        %v687 = vld [vmem:[%s681 + $0x20] sm:$0xff]
        %v688 = vld [vmem:[%s681 + $0x28] sm:$0xff]
        %v689 = vld [vmem:[%s681 + $0x30] sm:$0xff]
        %v690 = vld [vmem:[%s681 + $0x38] sm:$0xff]
        %v691 = vld [vmem:[%s681 + $0x40] sm:$0xff]
        %v692 = vld [vmem:[%s681 + $0x48] sm:$0xff]
        %v693 = vld [vmem:[%s681 + $0x50] sm:$0xff]
        %v694 = vld [vmem:[%s681 + $0x58] sm:$0xff]
        %v695 = vld [vmem:[%s681 + $0x60] sm:$0xff]
        %v696 = vld [vmem:[%s681 + $0x68] sm:$0xff]
        %v697 = vld [vmem:[%s681 + $0x70] sm:$0xff]
        %v698 = vld [vmem:[%s681 + $0x78] sm:$0xff]
        %v699 = vld [vmem:[%s681 + $0x80] sm:$0xff]
        %v700 = vld [vmem:[%s681 + $0x88] sm:$0xff]
        %v701 = vld [vmem:[%s681 + $0x90] sm:$0xff]
        %v702 = vld [vmem:[%s681 + $0x98] sm:$0xff]
        %v703 = vld [vmem:[%s681 + $0xa0] sm:$0xff]
        %v704 = vld [vmem:[%s681 + $0xa8] sm:$0xff]
        %v705 = vld [vmem:[%s681 + $0xb0] sm:$0xff]
        %v706 = vld [vmem:[%s681 + $0xb8] sm:$0xff]
        %v707 = vld [vmem:[%s681 + $0xc0] sm:$0xff]
        %v708 = vld [vmem:[%s681 + $0xc8] sm:$0xff]
        %v709 = vld [vmem:[%s681 + $0xd0] sm:$0xff]
        %v710 = vld [vmem:[%s681 + $0xd8] sm:$0xff]
        %v711 = vld [vmem:[%s681 + $0xe0] sm:$0xff]
        %v712 = vld [vmem:[%s681 + $0xe8] sm:$0xff]
        %v713 = vld [vmem:[%s681 + $0xf0] sm:$0xff]
        %v714 = vld [vmem:[%s681 + $0xf8] sm:$0xff]
        %v715 = vld [vmem:[%s681 + $0x100] sm:$0xff]
        %v716 = vld [vmem:[%s681 + $0x108] sm:$0xff]
        %v717 = vld [vmem:[%s681 + $0x110] sm:$0xff]
        %v718 = vld [vmem:[%s681 + $0x118] sm:$0xff]
        %v719 = vld [vmem:[%s681 + $0x120] sm:$0xff]
        %v720 = vld [vmem:[%s681 + $0x128] sm:$0xff]
        %v721 = vld [vmem:[%s681 + $0x130] sm:$0xff]
        %v722 = vld [vmem:[%s681 + $0x138] sm:$0xff]
        %v723 = vld [vmem:[%s681 + $0x140] sm:$0xff]
        %v724 = vld [vmem:[%s681 + $0x148] sm:$0xff]
        %v725 = vld [vmem:[%s681 + $0x150] sm:$0xff]
        %v726 = vld [vmem:[%s681 + $0x158] sm:$0xff]
        %v727 = vld [vmem:[%s681 + $0x160] sm:$0xff]
        %v728 = vld [vmem:[%s681 + $0x168] sm:$0xff]
        %v729 = vld [vmem:[%s681 + $0x170] sm:$0xff]
        %v730 = vld [vmem:[%s681 + $0x178] sm:$0xff]
        %v731 = vld [vmem:[%s681 + $0x180] sm:$0xff]
        %v732 = vld [vmem:[%s681 + $0x188] sm:$0xff]
        %v733 = vld [vmem:[%s681 + $0x190] sm:$0xff]
        %v734 = vld [vmem:[%s681 + $0x198] sm:$0xff]
        %v735 = vld [vmem:[%s681 + $0x1a0] sm:$0xff]
        %v736 = vld [vmem:[%s681 + $0x1a8] sm:$0xff]
        %v737 = vld [vmem:[%s681 + $0x1b0] sm:$0xff]
        %v738 = vld [vmem:[%s681 + $0x1b8] sm:$0xff]
        %v739 = vld [vmem:[%s681 + $0x1c0] sm:$0xff]
        %v740 = vld [vmem:[%s681 + $0x1c8] sm:$0xff]
        %v741 = vld [vmem:[%s681 + $0x1d0] sm:$0xff]
        %v742 = vld [vmem:[%s681 + $0x1d8] sm:$0xff]
        %v743 = vld [vmem:[%s681 + $0x1e0] sm:$0xff]
        %v744 = vld [vmem:[%s681 + $0x1e8] sm:$0xff]
        %v745 = vld [vmem:[%s681 + $0x1f0] sm:$0xff]
        %v746 = vld [vmem:[%s681 + $0x1f8] sm:$0xff]
        %v747 = vld [vmem:[%s681 + $0x200] sm:$0xff]
        %v748 = vld [vmem:[%s681 + $0x208] sm:$0xff]
        %v749 = vld [vmem:[%s681 + $0x210] sm:$0xff]
        %v750 = vld [vmem:[%s681 + $0x218] sm:$0xff]
        %v751 = vld [vmem:[%s681 + $0x220] sm:$0xff]
        %v752 = vld [vmem:[%s681 + $0x228] sm:$0xff]
        %v753 = vld [vmem:[%s681 + $0x230] sm:$0xff]
        %v754 = vld [vmem:[%s681 + $0x238] sm:$0xff]
        %v755 = vld [vmem:[%s681 + $0x240] sm:$0xff]
        %v756 = vld [vmem:[%s681 + $0x248] sm:$0xff]
        %v757 = vld [vmem:[%s681 + $0x250] sm:$0xff]
        %v758 = vld [vmem:[%s681 + $0x258] sm:$0xff]
        %v759 = vld [vmem:[%s681 + $0x260] sm:$0xff]
        %v760 = vld [vmem:[%s681 + $0x268] sm:$0xff]
        %v761 = vld [vmem:[%s681 + $0x270] sm:$0xff]
        %v762 = vld [vmem:[%s681 + $0x278] sm:$0xff]
        %v763 = vld [vmem:[%s681 + $0x280] sm:$0xff]
        %v764 = vld [vmem:[%s681 + $0x288] sm:$0xff]
        %v765 = vld [vmem:[%s681 + $0x290] sm:$0xff]
        %v766 = vld [vmem:[%s681 + $0x298] sm:$0xff]
        %v767 = vld [vmem:[%s681 + $0x2a0] sm:$0xff]
        %v768 = vld [vmem:[%s681 + $0x2a8] sm:$0xff]
        %v769 = vld [vmem:[%s681 + $0x2b0] sm:$0xff]
        %v770 = vld [vmem:[%s681 + $0x2b8] sm:$0xff]
        %v771 = vld [vmem:[%s681 + $0x2c0] sm:$0xff]
        %v772 = vld [vmem:[%s681 + $0x2c8] sm:$0xff]
        %v773 = vld [vmem:[%s681 + $0x2d0] sm:$0xff]
        %v774 = vld [vmem:[%s681 + $0x2d8] sm:$0xff]
        %v775 = vld [vmem:[%s681 + $0x2e0] sm:$0xff]
        %v776 = vld [vmem:[%s681 + $0x2e8] sm:$0xff]
        %v777 = vld [vmem:[%s681 + $0x2f0] sm:$0xff]
        %v778 = vld [vmem:[%s681 + $0x2f8] sm:$0xff]
        %v779 = vld [vmem:[%s681 + $0x300] sm:$0xff]
        %v780 = vld [vmem:[%s681 + $0x308] sm:$0xff]
        %v781 = vld [vmem:[%s681 + $0x310] sm:$0xff]
        %v782 = vld [vmem:[%s681 + $0x318] sm:$0xff]
        %v783 = vld [vmem:[%s681 + $0x320] sm:$0xff]
        %v784 = vld [vmem:[%s681 + $0x328] sm:$0xff]
        %v785 = vld [vmem:[%s681 + $0x330] sm:$0xff]
        %v786 = vld [vmem:[%s681 + $0x338] sm:$0xff]
        %v787 = vld [vmem:[%s681 + $0x340] sm:$0xff]
        %v788 = vld [vmem:[%s681 + $0x348] sm:$0xff]
        %v789 = vld [vmem:[%s681 + $0x350] sm:$0xff]
        %v790 = vld [vmem:[%s681 + $0x358] sm:$0xff]
        %v791 = vld [vmem:[%s681 + $0x360] sm:$0xff]
        %v792 = vld [vmem:[%s681 + $0x368] sm:$0xff]
        %v793 = vld [vmem:[%s681 + $0x370] sm:$0xff]
        %v794 = vld [vmem:[%s681 + $0x378] sm:$0xff]
        %v795 = vld [vmem:[%s681 + $0x380] sm:$0xff]
        %v796 = vld [vmem:[%s681 + $0x388] sm:$0xff]
        %v797 = vld [vmem:[%s681 + $0x390] sm:$0xff]
        %v798 = vld [vmem:[%s681 + $0x398] sm:$0xff]
        %v799 = vld [vmem:[%s681 + $0x3a0] sm:$0xff]
        %v800 = vld [vmem:[%s681 + $0x3a8] sm:$0xff]
        %v801 = vld [vmem:[%s681 + $0x3b0] sm:$0xff]
        %v802 = vld [vmem:[%s681 + $0x3b8] sm:$0xff]
        %v803 = vld [vmem:[%s681 + $0x3c0] sm:$0xff]
        %v804 = vld [vmem:[%s681 + $0x3c8] sm:$0xff]
        %v805 = vld [vmem:[%s681 + $0x3d0] sm:$0xff]
        %v806 = vld [vmem:[%s681 + $0x3d8] sm:$0xff]
        %v807 = vld [vmem:[%s681 + $0x3e0] sm:$0xff]
        %v808 = vld [vmem:[%s681 + $0x3e8] sm:$0xff]
        %v809 = vld [vmem:[%s681 + $0x3f0] sm:$0xff]
        %v810 = vld [vmem:[%s681 + $0x3f8] sm:$0xff]
        %v811 = vld [vmem:[%s681 + $0x400] sm:$0xff]
        %v812 = vld [vmem:[%s681 + $0x408] sm:$0xff]
        %v813 = vld [vmem:[%s681 + $0x410] sm:$0xff]
        %v814 = vld [vmem:[%s681 + $0x418] sm:$0xff]
        %v815 = vld [vmem:[%s681 + $0x420] sm:$0xff]
        %v816 = vld [vmem:[%s681 + $0x428] sm:$0xff]
        %v817 = vld [vmem:[%s681 + $0x430] sm:$0xff]
        %v818 = vld [vmem:[%s681 + $0x438] sm:$0xff]
        %v819 = vld [vmem:[%s681 + $0x440] sm:$0xff]
        %v820 = vld [vmem:[%s681 + $0x448] sm:$0xff]
        %v821 = vld [vmem:[%s681 + $0x450] sm:$0xff]
        %v822 = vld [vmem:[%s681 + $0x458] sm:$0xff]
        %v823 = vld [vmem:[%s681 + $0x460] sm:$0xff]
        %v824 = vld [vmem:[%s681 + $0x468] sm:$0xff]
        %v825 = vld [vmem:[%s681 + $0x470] sm:$0xff]
        %v826 = vld [vmem:[%s681 + $0x478] sm:$0xff]
        %v827 = vld [vmem:[%s1] sm:$0xff]
        %v828 = vld [vmem:[%s1 + $0x8] sm:$0xff]
        %v829 = vld [vmem:[%s1 + $0x10] sm:$0xff]
        %v830 = vld [vmem:[%s1 + $0x18] sm:$0xff]
        %v831 = vld [vmem:[%s1 + $0x20] sm:$0xff]
        %v832 = vld [vmem:[%s1 + $0x28] sm:$0xff]
        %v833 = vld [vmem:[%s1 + $0x30] sm:$0xff]
        %v834 = vld [vmem:[%s1 + $0x38] sm:$0xff]
        %v835 = vld [vmem:[%s1 + $0x40] sm:$0xff]
        %v836 = vld [vmem:[%s1 + $0x48] sm:$0xff]
        %v837 = vld [vmem:[%s1 + $0x50] sm:$0xff]
        %v838 = vld [vmem:[%s1 + $0x58] sm:$0xff]
        %v839 = vld [vmem:[%s1 + $0x60] sm:$0xff]
        %v840 = vld [vmem:[%s1 + $0x68] sm:$0xff]
        %v841 = vld [vmem:[%s1 + $0x70] sm:$0xff]
        %v842 = vld [vmem:[%s1 + $0x78] sm:$0xff]
        %v843 = vld [vmem:[%s1 + $0x80] sm:$0xff]
        %v844 = vld [vmem:[%s1 + $0x88] sm:$0xff]
        %v845 = vld [vmem:[%s2] sm:$0xff]
        %847 = vset.pattern.permute.xlu0 0
        %848 = vperm.xlu0 %847, %v845
        %v849 = vpop.permute.xlu0 %848
        %v869 = vunpack.c.l.b16 %v827
        %v870 = vunpack.c.h.b16 %v827
        %v871 = vunpack.c.l.b16 %v828
        %v872 = vunpack.c.h.b16 %v828
        %v873 = vunpack.c.l.b16 %v829
        %v874 = vunpack.c.h.b16 %v829
        %v875 = vunpack.c.l.b16 %v830
        %v876 = vunpack.c.h.b16 %v830
        %v877 = vunpack.c.l.b16 %v831
        %v878 = vunpack.c.h.b16 %v831
        %v879 = vunpack.c.l.b16 %v832
        %v880 = vunpack.c.h.b16 %v832
        %v881 = vunpack.c.l.b16 %v833
        %v882 = vunpack.c.h.b16 %v833
        %v883 = vunpack.c.l.b16 %v834
        %v884 = vunpack.c.h.b16 %v834
        %v885 = vunpack.c.l.b16 %v835
        %v886 = vunpack.c.h.b16 %v835
        %v887 = vunpack.c.l.b16 %v836
        %v888 = vunpack.c.h.b16 %v836
        %v889 = vunpack.c.l.b16 %v837
        %v890 = vunpack.c.h.b16 %v837
        %v891 = vunpack.c.l.b16 %v838
        %v892 = vunpack.c.h.b16 %v838
        %v893 = vunpack.c.l.b16 %v839
        %v894 = vunpack.c.h.b16 %v839
        %v895 = vunpack.c.l.b16 %v840
        %v896 = vunpack.c.h.b16 %v840
        %v897 = vunpack.c.l.b16 %v841
        %v898 = vunpack.c.h.b16 %v841
        %v899 = vunpack.c.l.b16 %v842
        %v900 = vunpack.c.h.b16 %v842
        %v901 = vunpack.c.l.b16 %v843
        %v902 = vunpack.c.h.b16 %v843
        %v903 = vunpack.c.l.b16 %v844
        %v904 = vunpack.c.h.b16 %v844
        %v905 = vpack.c.b16 %v869, %v869
        %v906 = vpack.c.b16 %v870, %v870
        %v907 = vpack.c.b16 %v871, %v871
        %v908 = vpack.c.b16 %v872, %v872
        %v909 = vpack.c.b16 %v873, %v873
        %v910 = vpack.c.b16 %v874, %v874
        %v911 = vpack.c.b16 %v875, %v875
        %v912 = vpack.c.b16 %v876, %v876
        %v913 = vpack.c.b16 %v877, %v877
        %v914 = vpack.c.b16 %v878, %v878
        %v915 = vpack.c.b16 %v879, %v879
        %v916 = vpack.c.b16 %v880, %v880
        %v917 = vpack.c.b16 %v881, %v881
        %v918 = vpack.c.b16 %v882, %v882
        %v919 = vpack.c.b16 %v883, %v883
        %v920 = vpack.c.b16 %v884, %v884
        %v921 = vpack.c.b16 %v885, %v885
        %v922 = vpack.c.b16 %v886, %v886
        %v923 = vpack.c.b16 %v887, %v887
        %v924 = vpack.c.b16 %v888, %v888
        %v925 = vpack.c.b16 %v889, %v889
        %v926 = vpack.c.b16 %v890, %v890
        %v927 = vpack.c.b16 %v891, %v891
        %v928 = vpack.c.b16 %v892, %v892
        %v929 = vpack.c.b16 %v893, %v893
        %v930 = vpack.c.b16 %v894, %v894
        %v931 = vpack.c.b16 %v895, %v895
        %v932 = vpack.c.b16 %v896, %v896
        %v933 = vpack.c.b16 %v897, %v897
        %v934 = vpack.c.b16 %v898, %v898
        %v935 = vpack.c.b16 %v899, %v899
        %v936 = vpack.c.b16 %v900, %v900
        %v937 = vpack.c.b16 %v901, %v901
        %v938 = vpack.c.b16 %v902, %v902
        %v939 = vpack.c.b16 %v903, %v903
        %v940 = vpack.c.b16 %v904, %v904
        %v1121 = vunpack.c.l.b16 %v683
        %v1122 = vunpack.c.h.b16 %v683
        %v1123 = vunpack.c.l.b16 %v684
        %v1124 = vunpack.c.h.b16 %v684
        %v1125 = vunpack.c.l.b16 %v685
        %v1126 = vunpack.c.h.b16 %v685
        %v1127 = vunpack.c.l.b16 %v686
        %v1128 = vunpack.c.h.b16 %v686
        %v1129 = vunpack.c.l.b16 %v687
        %v1130 = vunpack.c.h.b16 %v687
        %v1131 = vunpack.c.l.b16 %v688
        %v1132 = vunpack.c.h.b16 %v688
        %v1133 = vunpack.c.l.b16 %v689
        %v1134 = vunpack.c.h.b16 %v689
        %v1135 = vunpack.c.l.b16 %v690
        %v1136 = vunpack.c.h.b16 %v690
        %v1137 = vunpack.c.l.b16 %v691
        %v1138 = vunpack.c.h.b16 %v691
        %v1139 = vunpack.c.l.b16 %v692
        %v1140 = vunpack.c.h.b16 %v692
        %v1141 = vunpack.c.l.b16 %v693
        %v1142 = vunpack.c.h.b16 %v693
        %v1143 = vunpack.c.l.b16 %v694
        %v1144 = vunpack.c.h.b16 %v694
        %v1145 = vunpack.c.l.b16 %v695
        %v1146 = vunpack.c.h.b16 %v695
        %v1147 = vunpack.c.l.b16 %v696
        %v1148 = vunpack.c.h.b16 %v696
        %v1149 = vunpack.c.l.b16 %v697
        %v1150 = vunpack.c.h.b16 %v697
        %v1151 = vunpack.c.l.b16 %v698
        %v1152 = vunpack.c.h.b16 %v698
        %v1153 = vunpack.c.l.b16 %v699
        %v1154 = vunpack.c.h.b16 %v699
        %v1155 = vunpack.c.l.b16 %v700
        %v1156 = vunpack.c.h.b16 %v700
        %v1157 = vunpack.c.l.b16 %v701
        %v1158 = vunpack.c.h.b16 %v701
        %v1159 = vunpack.c.l.b16 %v702
        %v1160 = vunpack.c.h.b16 %v702
        %v1161 = vunpack.c.l.b16 %v703
        %v1162 = vunpack.c.h.b16 %v703
        %v1163 = vunpack.c.l.b16 %v704
        %v1164 = vunpack.c.h.b16 %v704
        %v1165 = vunpack.c.l.b16 %v705
        %v1166 = vunpack.c.h.b16 %v705
        %v1167 = vunpack.c.l.b16 %v706
        %v1168 = vunpack.c.h.b16 %v706
        %v1169 = vunpack.c.l.b16 %v707
        %v1170 = vunpack.c.h.b16 %v707
        %v1171 = vunpack.c.l.b16 %v708
        %v1172 = vunpack.c.h.b16 %v708
        %v1173 = vunpack.c.l.b16 %v709
        %v1174 = vunpack.c.h.b16 %v709
        %v1175 = vunpack.c.l.b16 %v710
        %v1176 = vunpack.c.h.b16 %v710
        %v1177 = vunpack.c.l.b16 %v711
        %v1178 = vunpack.c.h.b16 %v711
        %v1179 = vunpack.c.l.b16 %v712
        %v1180 = vunpack.c.h.b16 %v712
        %v1181 = vunpack.c.l.b16 %v713
        %v1182 = vunpack.c.h.b16 %v713
        %v1183 = vunpack.c.l.b16 %v714
        %v1184 = vunpack.c.h.b16 %v714
        %v1185 = vunpack.c.l.b16 %v715
        %v1186 = vunpack.c.h.b16 %v715
        %v1187 = vunpack.c.l.b16 %v716
        %v1188 = vunpack.c.h.b16 %v716
        %v1189 = vunpack.c.l.b16 %v717
        %v1190 = vunpack.c.h.b16 %v717
        %v1191 = vunpack.c.l.b16 %v718
        %v1192 = vunpack.c.h.b16 %v718
        %v1193 = vunpack.c.l.b16 %v719
        %v1194 = vunpack.c.h.b16 %v719
        %v1195 = vunpack.c.l.b16 %v720
        %v1196 = vunpack.c.h.b16 %v720
        %v1197 = vunpack.c.l.b16 %v721
        %v1198 = vunpack.c.h.b16 %v721
        %v1199 = vunpack.c.l.b16 %v722
        %v1200 = vunpack.c.h.b16 %v722
        %v1201 = vunpack.c.l.b16 %v723
        %v1202 = vunpack.c.h.b16 %v723
        %v1203 = vunpack.c.l.b16 %v724
        %v1204 = vunpack.c.h.b16 %v724
        %v1205 = vunpack.c.l.b16 %v725
        %v1206 = vunpack.c.h.b16 %v725
        %v1207 = vunpack.c.l.b16 %v726
        %v1208 = vunpack.c.h.b16 %v726
        %v1209 = vunpack.c.l.b16 %v727
        %v1210 = vunpack.c.h.b16 %v727
        %v1211 = vunpack.c.l.b16 %v728
        %v1212 = vunpack.c.h.b16 %v728
        %v1213 = vunpack.c.l.b16 %v729
        %v1214 = vunpack.c.h.b16 %v729
        %v1215 = vunpack.c.l.b16 %v730
        %v1216 = vunpack.c.h.b16 %v730
        %v1217 = vunpack.c.l.b16 %v731
        %v1218 = vunpack.c.h.b16 %v731
        %v1219 = vunpack.c.l.b16 %v732
        %v1220 = vunpack.c.h.b16 %v732
        %v1221 = vunpack.c.l.b16 %v733
        %v1222 = vunpack.c.h.b16 %v733
        %v1223 = vunpack.c.l.b16 %v734
        %v1224 = vunpack.c.h.b16 %v734
        %v1225 = vunpack.c.l.b16 %v735
        %v1226 = vunpack.c.h.b16 %v735
        %v1227 = vunpack.c.l.b16 %v736
        %v1228 = vunpack.c.h.b16 %v736
        %v1229 = vunpack.c.l.b16 %v737
        %v1230 = vunpack.c.h.b16 %v737
        %v1231 = vunpack.c.l.b16 %v738
        %v1232 = vunpack.c.h.b16 %v738
        %v1233 = vunpack.c.l.b16 %v739
        %v1234 = vunpack.c.h.b16 %v739
        %v1235 = vunpack.c.l.b16 %v740
        %v1236 = vunpack.c.h.b16 %v740
        %v1237 = vunpack.c.l.b16 %v741
        %v1238 = vunpack.c.h.b16 %v741
        %v1239 = vunpack.c.l.b16 %v742
        %v1240 = vunpack.c.h.b16 %v742
        %v1241 = vunpack.c.l.b16 %v743
        %v1242 = vunpack.c.h.b16 %v743
        %v1243 = vunpack.c.l.b16 %v744
        %v1244 = vunpack.c.h.b16 %v744
        %v1245 = vunpack.c.l.b16 %v745
        %v1246 = vunpack.c.h.b16 %v745
        %v1247 = vunpack.c.l.b16 %v746
        %v1248 = vunpack.c.h.b16 %v746
        %v1249 = vunpack.c.l.b16 %v747
        %v1250 = vunpack.c.h.b16 %v747
        %v1251 = vunpack.c.l.b16 %v748
        %v1252 = vunpack.c.h.b16 %v748
        %v1253 = vunpack.c.l.b16 %v749
        %v1254 = vunpack.c.h.b16 %v749
        %v1255 = vunpack.c.l.b16 %v750
        %v1256 = vunpack.c.h.b16 %v750
        %v1257 = vunpack.c.l.b16 %v751
        %v1258 = vunpack.c.h.b16 %v751
        %v1259 = vunpack.c.l.b16 %v752
        %v1260 = vunpack.c.h.b16 %v752
        %v1261 = vunpack.c.l.b16 %v753
        %v1262 = vunpack.c.h.b16 %v753
        %v1263 = vunpack.c.l.b16 %v754
        %v1264 = vunpack.c.h.b16 %v754
        %v1265 = vunpack.c.l.b16 %v755
        %v1266 = vunpack.c.h.b16 %v755
        %v1267 = vunpack.c.l.b16 %v756
        %v1268 = vunpack.c.h.b16 %v756
        %v1269 = vunpack.c.l.b16 %v757
        %v1270 = vunpack.c.h.b16 %v757
        %v1271 = vunpack.c.l.b16 %v758
        %v1272 = vunpack.c.h.b16 %v758
        %v1273 = vunpack.c.l.b16 %v759
        %v1274 = vunpack.c.h.b16 %v759
        %v1275 = vunpack.c.l.b16 %v760
        %v1276 = vunpack.c.h.b16 %v760
        %v1277 = vunpack.c.l.b16 %v761
        %v1278 = vunpack.c.h.b16 %v761
        %v1279 = vunpack.c.l.b16 %v762
        %v1280 = vunpack.c.h.b16 %v762
        %v1281 = vunpack.c.l.b16 %v763
        %v1282 = vunpack.c.h.b16 %v763
        %v1283 = vunpack.c.l.b16 %v764
        %v1284 = vunpack.c.h.b16 %v764
        %v1285 = vunpack.c.l.b16 %v765
        %v1286 = vunpack.c.h.b16 %v765
        %v1287 = vunpack.c.l.b16 %v766
        %v1288 = vunpack.c.h.b16 %v766
        %v1289 = vunpack.c.l.b16 %v767
        %v1290 = vunpack.c.h.b16 %v767
        %v1291 = vunpack.c.l.b16 %v768
        %v1292 = vunpack.c.h.b16 %v768
        %v1293 = vunpack.c.l.b16 %v769
        %v1294 = vunpack.c.h.b16 %v769
        %v1295 = vunpack.c.l.b16 %v770
        %v1296 = vunpack.c.h.b16 %v770
        %v1297 = vunpack.c.l.b16 %v771
        %v1298 = vunpack.c.h.b16 %v771
        %v1299 = vunpack.c.l.b16 %v772
        %v1300 = vunpack.c.h.b16 %v772
        %v1301 = vunpack.c.l.b16 %v773
        %v1302 = vunpack.c.h.b16 %v773
        %v1303 = vunpack.c.l.b16 %v774
        %v1304 = vunpack.c.h.b16 %v774
        %v1305 = vunpack.c.l.b16 %v775
        %v1306 = vunpack.c.h.b16 %v775
        %v1307 = vunpack.c.l.b16 %v776
        %v1308 = vunpack.c.h.b16 %v776
        %v1309 = vunpack.c.l.b16 %v777
        %v1310 = vunpack.c.h.b16 %v777
        %v1311 = vunpack.c.l.b16 %v778
        %v1312 = vunpack.c.h.b16 %v778
        %v1313 = vunpack.c.l.b16 %v779
        %v1314 = vunpack.c.h.b16 %v779
        %v1315 = vunpack.c.l.b16 %v780
        %v1316 = vunpack.c.h.b16 %v780
        %v1317 = vunpack.c.l.b16 %v781
        %v1318 = vunpack.c.h.b16 %v781
        %v1319 = vunpack.c.l.b16 %v782
        %v1320 = vunpack.c.h.b16 %v782
        %v1321 = vunpack.c.l.b16 %v783
        %v1322 = vunpack.c.h.b16 %v783
        %v1323 = vunpack.c.l.b16 %v784
        %v1324 = vunpack.c.h.b16 %v784
        %v1325 = vunpack.c.l.b16 %v785
        %v1326 = vunpack.c.h.b16 %v785
        %v1327 = vunpack.c.l.b16 %v786
        %v1328 = vunpack.c.h.b16 %v786
        %v1329 = vunpack.c.l.b16 %v787
        %v1330 = vunpack.c.h.b16 %v787
        %v1331 = vunpack.c.l.b16 %v788
        %v1332 = vunpack.c.h.b16 %v788
        %v1333 = vunpack.c.l.b16 %v789
        %v1334 = vunpack.c.h.b16 %v789
        %v1335 = vunpack.c.l.b16 %v790
        %v1336 = vunpack.c.h.b16 %v790
        %v1337 = vunpack.c.l.b16 %v791
        %v1338 = vunpack.c.h.b16 %v791
        %v1339 = vunpack.c.l.b16 %v792
        %v1340 = vunpack.c.h.b16 %v792
        %v1341 = vunpack.c.l.b16 %v793
        %v1342 = vunpack.c.h.b16 %v793
        %v1343 = vunpack.c.l.b16 %v794
        %v1344 = vunpack.c.h.b16 %v794
        %v1345 = vunpack.c.l.b16 %v795
        %v1346 = vunpack.c.h.b16 %v795
        %v1347 = vunpack.c.l.b16 %v796
        %v1348 = vunpack.c.h.b16 %v796
        %v1349 = vunpack.c.l.b16 %v797
        %v1350 = vunpack.c.h.b16 %v797
        %v1351 = vunpack.c.l.b16 %v798
        %v1352 = vunpack.c.h.b16 %v798
        %v1353 = vunpack.c.l.b16 %v799
        %v1354 = vunpack.c.h.b16 %v799
        %v1355 = vunpack.c.l.b16 %v800
        %v1356 = vunpack.c.h.b16 %v800
        %v1357 = vunpack.c.l.b16 %v801
        %v1358 = vunpack.c.h.b16 %v801
        %v1359 = vunpack.c.l.b16 %v802
        %v1360 = vunpack.c.h.b16 %v802
        %v1361 = vunpack.c.l.b16 %v803
        %v1362 = vunpack.c.h.b16 %v803
        %v1363 = vunpack.c.l.b16 %v804
        %v1364 = vunpack.c.h.b16 %v804
        %v1365 = vunpack.c.l.b16 %v805
        %v1366 = vunpack.c.h.b16 %v805
        %v1367 = vunpack.c.l.b16 %v806
        %v1368 = vunpack.c.h.b16 %v806
        %v1369 = vunpack.c.l.b16 %v807
        %v1370 = vunpack.c.h.b16 %v807
        %v1371 = vunpack.c.l.b16 %v808
        %v1372 = vunpack.c.h.b16 %v808
        %v1373 = vunpack.c.l.b16 %v809
        %v1374 = vunpack.c.h.b16 %v809
        %v1375 = vunpack.c.l.b16 %v810
        %v1376 = vunpack.c.h.b16 %v810
        %v1377 = vunpack.c.l.b16 %v811
        %v1378 = vunpack.c.h.b16 %v811
        %v1379 = vunpack.c.l.b16 %v812
        %v1380 = vunpack.c.h.b16 %v812
        %v1381 = vunpack.c.l.b16 %v813
        %v1382 = vunpack.c.h.b16 %v813
        %v1383 = vunpack.c.l.b16 %v814
        %v1384 = vunpack.c.h.b16 %v814
        %v1385 = vunpack.c.l.b16 %v815
        %v1386 = vunpack.c.h.b16 %v815
        %v1387 = vunpack.c.l.b16 %v816
        %v1388 = vunpack.c.h.b16 %v816
        %v1389 = vunpack.c.l.b16 %v817
        %v1390 = vunpack.c.h.b16 %v817
        %v1391 = vunpack.c.l.b16 %v818
        %v1392 = vunpack.c.h.b16 %v818
        %v1393 = vunpack.c.l.b16 %v819
        %v1394 = vunpack.c.h.b16 %v819
        %v1395 = vunpack.c.l.b16 %v820
        %v1396 = vunpack.c.h.b16 %v820
        %v1397 = vunpack.c.l.b16 %v821
        %v1398 = vunpack.c.h.b16 %v821
        %v1399 = vunpack.c.l.b16 %v822
        %v1400 = vunpack.c.h.b16 %v822
        %v1401 = vunpack.c.l.b16 %v823
        %v1402 = vunpack.c.h.b16 %v823
        %v1403 = vunpack.c.l.b16 %v824
        %v1404 = vunpack.c.h.b16 %v824
        %v1405 = vunpack.c.l.b16 %v825
        %v1406 = vunpack.c.h.b16 %v825
        %v1407 = vunpack.c.l.b16 %v826
        %v1408 = vunpack.c.h.b16 %v826
        %v1409 = vpack.c.b16 %v1157, %v1121
        %v1410 = vpack.c.b16 %v1158, %v1122
        %v1411 = vpack.c.b16 %v1159, %v1123
        %v1412 = vpack.c.b16 %v1160, %v1124
        %v1413 = vpack.c.b16 %v1161, %v1125
        %v1414 = vpack.c.b16 %v1162, %v1126
        %v1415 = vpack.c.b16 %v1163, %v1127
        %v1416 = vpack.c.b16 %v1164, %v1128
        %v1417 = vpack.c.b16 %v1165, %v1129
        %v1418 = vpack.c.b16 %v1166, %v1130
        %v1419 = vpack.c.b16 %v1167, %v1131
        %v1420 = vpack.c.b16 %v1168, %v1132
        %v1421 = vpack.c.b16 %v1169, %v1133
        %v1422 = vpack.c.b16 %v1170, %v1134
        %v1423 = vpack.c.b16 %v1171, %v1135
        %v1424 = vpack.c.b16 %v1172, %v1136
        %v1425 = vpack.c.b16 %v1173, %v1137
        %v1426 = vpack.c.b16 %v1174, %v1138
        %v1427 = vpack.c.b16 %v1175, %v1139
        %v1428 = vpack.c.b16 %v1176, %v1140
        %v1429 = vpack.c.b16 %v1177, %v1141
        %v1430 = vpack.c.b16 %v1178, %v1142
        %v1431 = vpack.c.b16 %v1179, %v1143
        %v1432 = vpack.c.b16 %v1180, %v1144
        %v1433 = vpack.c.b16 %v1181, %v1145
        %v1434 = vpack.c.b16 %v1182, %v1146
        %v1435 = vpack.c.b16 %v1183, %v1147
        %v1436 = vpack.c.b16 %v1184, %v1148
        %v1437 = vpack.c.b16 %v1185, %v1149
        %v1438 = vpack.c.b16 %v1186, %v1150
        %v1439 = vpack.c.b16 %v1187, %v1151
        %v1440 = vpack.c.b16 %v1188, %v1152
        %v1441 = vpack.c.b16 %v1189, %v1153
        %v1442 = vpack.c.b16 %v1190, %v1154
        %v1443 = vpack.c.b16 %v1191, %v1155
        %v1444 = vpack.c.b16 %v1192, %v1156
        %v1445 = vpack.c.b16 %v1229, %v1193
        %v1446 = vpack.c.b16 %v1230, %v1194
        %v1447 = vpack.c.b16 %v1231, %v1195
        %v1448 = vpack.c.b16 %v1232, %v1196
        %v1449 = vpack.c.b16 %v1233, %v1197
        %v1450 = vpack.c.b16 %v1234, %v1198
        %v1451 = vpack.c.b16 %v1235, %v1199
        %v1452 = vpack.c.b16 %v1236, %v1200
        %v1453 = vpack.c.b16 %v1237, %v1201
        %v1454 = vpack.c.b16 %v1238, %v1202
        %v1455 = vpack.c.b16 %v1239, %v1203
        %v1456 = vpack.c.b16 %v1240, %v1204
        %v1457 = vpack.c.b16 %v1241, %v1205
        %v1458 = vpack.c.b16 %v1242, %v1206
        %v1459 = vpack.c.b16 %v1243, %v1207
        %v1460 = vpack.c.b16 %v1244, %v1208
        %v1461 = vpack.c.b16 %v1245, %v1209
        %v1462 = vpack.c.b16 %v1246, %v1210
        %v1463 = vpack.c.b16 %v1247, %v1211
        %v1464 = vpack.c.b16 %v1248, %v1212
        %v1465 = vpack.c.b16 %v1249, %v1213
        %v1466 = vpack.c.b16 %v1250, %v1214
        %v1467 = vpack.c.b16 %v1251, %v1215
        %v1468 = vpack.c.b16 %v1252, %v1216
        %v1469 = vpack.c.b16 %v1253, %v1217
        %v1470 = vpack.c.b16 %v1254, %v1218
        %v1471 = vpack.c.b16 %v1255, %v1219
        %v1472 = vpack.c.b16 %v1256, %v1220
        %v1473 = vpack.c.b16 %v1257, %v1221
        %v1474 = vpack.c.b16 %v1258, %v1222
        %v1475 = vpack.c.b16 %v1259, %v1223
        %v1476 = vpack.c.b16 %v1260, %v1224
        %v1477 = vpack.c.b16 %v1261, %v1225
        %v1478 = vpack.c.b16 %v1262, %v1226
        %v1479 = vpack.c.b16 %v1263, %v1227
        %v1480 = vpack.c.b16 %v1264, %v1228
        %v1481 = vpack.c.b16 %v1301, %v1265
        %v1482 = vpack.c.b16 %v1302, %v1266
        %v1483 = vpack.c.b16 %v1303, %v1267
        %v1484 = vpack.c.b16 %v1304, %v1268
        %v1485 = vpack.c.b16 %v1305, %v1269
        %v1486 = vpack.c.b16 %v1306, %v1270
        %v1487 = vpack.c.b16 %v1307, %v1271
        %v1488 = vpack.c.b16 %v1308, %v1272
        %v1489 = vpack.c.b16 %v1309, %v1273
        %v1490 = vpack.c.b16 %v1310, %v1274
        %v1491 = vpack.c.b16 %v1311, %v1275
        %v1492 = vpack.c.b16 %v1312, %v1276
        %v1493 = vpack.c.b16 %v1313, %v1277
        %v1494 = vpack.c.b16 %v1314, %v1278
        %v1495 = vpack.c.b16 %v1315, %v1279
        %v1496 = vpack.c.b16 %v1316, %v1280
        %v1497 = vpack.c.b16 %v1317, %v1281
        %v1498 = vpack.c.b16 %v1318, %v1282
        %v1499 = vpack.c.b16 %v1319, %v1283
        %v1500 = vpack.c.b16 %v1320, %v1284
        %v1501 = vpack.c.b16 %v1321, %v1285
        %v1502 = vpack.c.b16 %v1322, %v1286
        %v1503 = vpack.c.b16 %v1323, %v1287
        %v1504 = vpack.c.b16 %v1324, %v1288
        %v1505 = vpack.c.b16 %v1325, %v1289
        %v1506 = vpack.c.b16 %v1326, %v1290
        %v1507 = vpack.c.b16 %v1327, %v1291
        %v1508 = vpack.c.b16 %v1328, %v1292
        %v1509 = vpack.c.b16 %v1329, %v1293
        %v1510 = vpack.c.b16 %v1330, %v1294
        %v1511 = vpack.c.b16 %v1331, %v1295
        %v1512 = vpack.c.b16 %v1332, %v1296
        %v1513 = vpack.c.b16 %v1333, %v1297
        %v1514 = vpack.c.b16 %v1334, %v1298
        %v1515 = vpack.c.b16 %v1335, %v1299
        %v1516 = vpack.c.b16 %v1336, %v1300
        %v1517 = vpack.c.b16 %v1373, %v1337
        %v1518 = vpack.c.b16 %v1374, %v1338
        %v1519 = vpack.c.b16 %v1375, %v1339
        %v1520 = vpack.c.b16 %v1376, %v1340
        %v1521 = vpack.c.b16 %v1377, %v1341
        %v1522 = vpack.c.b16 %v1378, %v1342
        %v1523 = vpack.c.b16 %v1379, %v1343
        %v1524 = vpack.c.b16 %v1380, %v1344
        %v1525 = vpack.c.b16 %v1381, %v1345
        %v1526 = vpack.c.b16 %v1382, %v1346
        %v1527 = vpack.c.b16 %v1383, %v1347
        %v1528 = vpack.c.b16 %v1384, %v1348
        %v1529 = vpack.c.b16 %v1385, %v1349
        %v1530 = vpack.c.b16 %v1386, %v1350
        %v1531 = vpack.c.b16 %v1387, %v1351
        %v1532 = vpack.c.b16 %v1388, %v1352
        %v1533 = vpack.c.b16 %v1389, %v1353
        %v1534 = vpack.c.b16 %v1390, %v1354
        %v1535 = vpack.c.b16 %v1391, %v1355
        %v1536 = vpack.c.b16 %v1392, %v1356
        %v1537 = vpack.c.b16 %v1393, %v1357
        %v1538 = vpack.c.b16 %v1394, %v1358
        %v1539 = vpack.c.b16 %v1395, %v1359
        %v1540 = vpack.c.b16 %v1396, %v1360
        %v1541 = vpack.c.b16 %v1397, %v1361
        %v1542 = vpack.c.b16 %v1398, %v1362
        %v1543 = vpack.c.b16 %v1399, %v1363
        %v1544 = vpack.c.b16 %v1400, %v1364
        %v1545 = vpack.c.b16 %v1401, %v1365
        %v1546 = vpack.c.b16 %v1402, %v1366
        %v1547 = vpack.c.b16 %v1403, %v1367
        %v1548 = vpack.c.b16 %v1404, %v1368
        %v1549 = vpack.c.b16 %v1405, %v1369
        %v1550 = vpack.c.b16 %v1406, %v1370
        %v1551 = vpack.c.b16 %v1407, %v1371
        %v1552 = vpack.c.b16 %v1408, %v1372
        %1697 = vmatpush.bf16.xpose.msra.mxu0 0
        %1698 = vmatpush.bf16.xpose.msra.mxu0 0
        %1699 = vmatpush.bf16.xpose.msra.mxu0 0
        %1700 = vmatpush.bf16.xpose.msra.mxu0 0
        %1701 = vmatpush.bf16.xpose.msra.mxu0 %v1517
        %1702 = vmatpush.bf16.xpose.msra.mxu0 %v1481
        %1703 = vmatpush.bf16.xpose.msra.mxu0 %v1445
        %1704 = vmatpush.bf16.xpose.msra.mxu0 %v1409
        %1705 = vmatmul.bf16.gmra.mxu0 %v905
        %v1706 = vpop.f32.mrf.mxu0
        %v1707 = vadd.f32 %v849, %v1706
        %v1708 = vpop.f32.mrf.mxu0
        %1709 = vdwg.mxu0
        %1710 = vmatpush.bf16.xpose.msra.mxu0 0
        %1711 = vmatpush.bf16.xpose.msra.mxu0 0
        %1712 = vmatpush.bf16.xpose.msra.mxu0 0
        %1713 = vmatpush.bf16.xpose.msra.mxu0 0
        %1714 = vmatpush.bf16.xpose.msra.mxu0 %v1518
        %1715 = vmatpush.bf16.xpose.msra.mxu0 %v1482
        %1716 = vmatpush.bf16.xpose.msra.mxu0 %v1446
        %1717 = vmatpush.bf16.xpose.msra.mxu0 %v1410
        %1718 = vmatmul.bf16.gmra.mxu0 %v906
        %v1719 = vpop.f32.mrf.mxu0
        %v1720 = vadd.f32 %v1707, %v1719
        %v1721 = vpop.f32.mrf.mxu0
        %1722 = vdwg.mxu0
        %1723 = vmatpush.bf16.xpose.msra.mxu0 0
        %1724 = vmatpush.bf16.xpose.msra.mxu0 0
        %1725 = vmatpush.bf16.xpose.msra.mxu0 0
        %1726 = vmatpush.bf16.xpose.msra.mxu0 0
        %1727 = vmatpush.bf16.xpose.msra.mxu0 %v1519
        %1728 = vmatpush.bf16.xpose.msra.mxu0 %v1483
        %1729 = vmatpush.bf16.xpose.msra.mxu0 %v1447
        %1730 = vmatpush.bf16.xpose.msra.mxu0 %v1411
        %1731 = vmatmul.bf16.gmra.mxu0 %v907
        %v1732 = vpop.f32.mrf.mxu0
        %v1733 = vadd.f32 %v1720, %v1732
        %v1734 = vpop.f32.mrf.mxu0
        %1735 = vdwg.mxu0
        %1736 = vmatpush.bf16.xpose.msra.mxu0 0
        %1737 = vmatpush.bf16.xpose.msra.mxu0 0
        %1738 = vmatpush.bf16.xpose.msra.mxu0 0
        %1739 = vmatpush.bf16.xpose.msra.mxu0 0
        %1740 = vmatpush.bf16.xpose.msra.mxu0 %v1520
        %1741 = vmatpush.bf16.xpose.msra.mxu0 %v1484
        %1742 = vmatpush.bf16.xpose.msra.mxu0 %v1448
        %1743 = vmatpush.bf16.xpose.msra.mxu0 %v1412
        %1744 = vmatmul.bf16.gmra.mxu0 %v908
        %v1745 = vpop.f32.mrf.mxu0
        %v1746 = vadd.f32 %v1733, %v1745
        %v1747 = vpop.f32.mrf.mxu0
        %1748 = vdwg.mxu0
        %1749 = vmatpush.bf16.xpose.msra.mxu0 0
        %1750 = vmatpush.bf16.xpose.msra.mxu0 0
        %1751 = vmatpush.bf16.xpose.msra.mxu0 0
        %1752 = vmatpush.bf16.xpose.msra.mxu0 0
        %1753 = vmatpush.bf16.xpose.msra.mxu0 %v1521
        %1754 = vmatpush.bf16.xpose.msra.mxu0 %v1485
        %1755 = vmatpush.bf16.xpose.msra.mxu0 %v1449
        %1756 = vmatpush.bf16.xpose.msra.mxu0 %v1413
        %1757 = vmatmul.bf16.gmra.mxu0 %v909
        %v1758 = vpop.f32.mrf.mxu0
        %v1759 = vadd.f32 %v1746, %v1758
        %v1760 = vpop.f32.mrf.mxu0
        %1761 = vdwg.mxu0
        %1762 = vmatpush.bf16.xpose.msra.mxu0 0
        %1763 = vmatpush.bf16.xpose.msra.mxu0 0
        %1764 = vmatpush.bf16.xpose.msra.mxu0 0
        %1765 = vmatpush.bf16.xpose.msra.mxu0 0
        %1766 = vmatpush.bf16.xpose.msra.mxu0 %v1522
        %1767 = vmatpush.bf16.xpose.msra.mxu0 %v1486
        %1768 = vmatpush.bf16.xpose.msra.mxu0 %v1450
        %1769 = vmatpush.bf16.xpose.msra.mxu0 %v1414
        %1770 = vmatmul.bf16.gmra.mxu0 %v910
        %v1771 = vpop.f32.mrf.mxu0
        %v1772 = vadd.f32 %v1759, %v1771
        %v1773 = vpop.f32.mrf.mxu0
        %1774 = vdwg.mxu0
        %1775 = vmatpush.bf16.xpose.msra.mxu0 0
        %1776 = vmatpush.bf16.xpose.msra.mxu0 0
        %1777 = vmatpush.bf16.xpose.msra.mxu0 0
        %1778 = vmatpush.bf16.xpose.msra.mxu0 0
        %1779 = vmatpush.bf16.xpose.msra.mxu0 %v1523
        %1780 = vmatpush.bf16.xpose.msra.mxu0 %v1487
        %1781 = vmatpush.bf16.xpose.msra.mxu0 %v1451
        %1782 = vmatpush.bf16.xpose.msra.mxu0 %v1415
        %1783 = vmatmul.bf16.gmra.mxu0 %v911
        %v1784 = vpop.f32.mrf.mxu0
        %v1785 = vadd.f32 %v1772, %v1784
        %v1786 = vpop.f32.mrf.mxu0
        %1787 = vdwg.mxu0
        %1788 = vmatpush.bf16.xpose.msra.mxu0 0
        %1789 = vmatpush.bf16.xpose.msra.mxu0 0
        %1790 = vmatpush.bf16.xpose.msra.mxu0 0
        %1791 = vmatpush.bf16.xpose.msra.mxu0 0
        %1792 = vmatpush.bf16.xpose.msra.mxu0 %v1524
        %1793 = vmatpush.bf16.xpose.msra.mxu0 %v1488
        %1794 = vmatpush.bf16.xpose.msra.mxu0 %v1452
        %1795 = vmatpush.bf16.xpose.msra.mxu0 %v1416
        %1796 = vmatmul.bf16.gmra.mxu0 %v912
        %v1797 = vpop.f32.mrf.mxu0
        %v1798 = vadd.f32 %v1785, %v1797
        %v1799 = vpop.f32.mrf.mxu0
        %1800 = vdwg.mxu0
        %1801 = vmatpush.bf16.xpose.msra.mxu0 0
        %1802 = vmatpush.bf16.xpose.msra.mxu0 0
        %1803 = vmatpush.bf16.xpose.msra.mxu0 0
        %1804 = vmatpush.bf16.xpose.msra.mxu0 0
        %1805 = vmatpush.bf16.xpose.msra.mxu0 %v1525
        %1806 = vmatpush.bf16.xpose.msra.mxu0 %v1489
        %1807 = vmatpush.bf16.xpose.msra.mxu0 %v1453
        %1808 = vmatpush.bf16.xpose.msra.mxu0 %v1417
        %1809 = vmatmul.bf16.gmra.mxu0 %v913
        %v1810 = vpop.f32.mrf.mxu0
        %v1811 = vadd.f32 %v1798, %v1810
        %v1812 = vpop.f32.mrf.mxu0
        %1813 = vdwg.mxu0
        %1814 = vmatpush.bf16.xpose.msra.mxu0 0
        %1815 = vmatpush.bf16.xpose.msra.mxu0 0
        %1816 = vmatpush.bf16.xpose.msra.mxu0 0
        %1817 = vmatpush.bf16.xpose.msra.mxu0 0
        %1818 = vmatpush.bf16.xpose.msra.mxu0 %v1526
        %1819 = vmatpush.bf16.xpose.msra.mxu0 %v1490
        %1820 = vmatpush.bf16.xpose.msra.mxu0 %v1454
        %1821 = vmatpush.bf16.xpose.msra.mxu0 %v1418
        %1822 = vmatmul.bf16.gmra.mxu0 %v914
        %v1823 = vpop.f32.mrf.mxu0
        %v1824 = vadd.f32 %v1811, %v1823
        %v1825 = vpop.f32.mrf.mxu0
        %1826 = vdwg.mxu0
        %1827 = vmatpush.bf16.xpose.msra.mxu0 0
        %1828 = vmatpush.bf16.xpose.msra.mxu0 0
        %1829 = vmatpush.bf16.xpose.msra.mxu0 0
        %1830 = vmatpush.bf16.xpose.msra.mxu0 0
        %1831 = vmatpush.bf16.xpose.msra.mxu0 %v1527
        %1832 = vmatpush.bf16.xpose.msra.mxu0 %v1491
        %1833 = vmatpush.bf16.xpose.msra.mxu0 %v1455
        %1834 = vmatpush.bf16.xpose.msra.mxu0 %v1419
        %1835 = vmatmul.bf16.gmra.mxu0 %v915
        %v1836 = vpop.f32.mrf.mxu0
        %v1837 = vadd.f32 %v1824, %v1836
        %v1838 = vpop.f32.mrf.mxu0
        %1839 = vdwg.mxu0
        %1840 = vmatpush.bf16.xpose.msra.mxu0 0
        %1841 = vmatpush.bf16.xpose.msra.mxu0 0
        %1842 = vmatpush.bf16.xpose.msra.mxu0 0
        %1843 = vmatpush.bf16.xpose.msra.mxu0 0
        %1844 = vmatpush.bf16.xpose.msra.mxu0 %v1528
        %1845 = vmatpush.bf16.xpose.msra.mxu0 %v1492
        %1846 = vmatpush.bf16.xpose.msra.mxu0 %v1456
        %1847 = vmatpush.bf16.xpose.msra.mxu0 %v1420
        %1848 = vmatmul.bf16.gmra.mxu0 %v916
        %v1849 = vpop.f32.mrf.mxu0
        %v1850 = vadd.f32 %v1837, %v1849
        %v1851 = vpop.f32.mrf.mxu0
        %1852 = vdwg.mxu0
        %1853 = vmatpush.bf16.xpose.msra.mxu0 0
        %1854 = vmatpush.bf16.xpose.msra.mxu0 0
        %1855 = vmatpush.bf16.xpose.msra.mxu0 0
        %1856 = vmatpush.bf16.xpose.msra.mxu0 0
        %1857 = vmatpush.bf16.xpose.msra.mxu0 %v1529
        %1858 = vmatpush.bf16.xpose.msra.mxu0 %v1493
        %1859 = vmatpush.bf16.xpose.msra.mxu0 %v1457
        %1860 = vmatpush.bf16.xpose.msra.mxu0 %v1421
        %1861 = vmatmul.bf16.gmra.mxu0 %v917
        %v1862 = vpop.f32.mrf.mxu0
        %v1863 = vadd.f32 %v1850, %v1862
        %v1864 = vpop.f32.mrf.mxu0
        %1865 = vdwg.mxu0
        %1866 = vmatpush.bf16.xpose.msra.mxu0 0
        %1867 = vmatpush.bf16.xpose.msra.mxu0 0
        %1868 = vmatpush.bf16.xpose.msra.mxu0 0
        %1869 = vmatpush.bf16.xpose.msra.mxu0 0
        %1870 = vmatpush.bf16.xpose.msra.mxu0 %v1530
        %1871 = vmatpush.bf16.xpose.msra.mxu0 %v1494
        %1872 = vmatpush.bf16.xpose.msra.mxu0 %v1458
        %1873 = vmatpush.bf16.xpose.msra.mxu0 %v1422
        %1874 = vmatmul.bf16.gmra.mxu0 %v918
        %v1875 = vpop.f32.mrf.mxu0
        %v1876 = vadd.f32 %v1863, %v1875
        %v1877 = vpop.f32.mrf.mxu0
        %1878 = vdwg.mxu0
        %1879 = vmatpush.bf16.xpose.msra.mxu0 0
        %1880 = vmatpush.bf16.xpose.msra.mxu0 0
        %1881 = vmatpush.bf16.xpose.msra.mxu0 0
        %1882 = vmatpush.bf16.xpose.msra.mxu0 0
        %1883 = vmatpush.bf16.xpose.msra.mxu0 %v1531
        %1884 = vmatpush.bf16.xpose.msra.mxu0 %v1495
        %1885 = vmatpush.bf16.xpose.msra.mxu0 %v1459
        %1886 = vmatpush.bf16.xpose.msra.mxu0 %v1423
        %1887 = vmatmul.bf16.gmra.mxu0 %v919
        %v1888 = vpop.f32.mrf.mxu0
        %v1889 = vadd.f32 %v1876, %v1888
        %v1890 = vpop.f32.mrf.mxu0
        %1891 = vdwg.mxu0
        %1892 = vmatpush.bf16.xpose.msra.mxu0 0
        %1893 = vmatpush.bf16.xpose.msra.mxu0 0
        %1894 = vmatpush.bf16.xpose.msra.mxu0 0
        %1895 = vmatpush.bf16.xpose.msra.mxu0 0
        %1896 = vmatpush.bf16.xpose.msra.mxu0 %v1532
        %1897 = vmatpush.bf16.xpose.msra.mxu0 %v1496
        %1898 = vmatpush.bf16.xpose.msra.mxu0 %v1460
        %1899 = vmatpush.bf16.xpose.msra.mxu0 %v1424
        %1900 = vmatmul.bf16.gmra.mxu0 %v920
        %v1901 = vpop.f32.mrf.mxu0
        %v1902 = vadd.f32 %v1889, %v1901
        %v1903 = vpop.f32.mrf.mxu0
        %1904 = vdwg.mxu0
        %1905 = vmatpush.bf16.xpose.msra.mxu0 0
        %1906 = vmatpush.bf16.xpose.msra.mxu0 0
        %1907 = vmatpush.bf16.xpose.msra.mxu0 0
        %1908 = vmatpush.bf16.xpose.msra.mxu0 0
        %1909 = vmatpush.bf16.xpose.msra.mxu0 %v1533
        %1910 = vmatpush.bf16.xpose.msra.mxu0 %v1497
        %1911 = vmatpush.bf16.xpose.msra.mxu0 %v1461
        %1912 = vmatpush.bf16.xpose.msra.mxu0 %v1425
        %1913 = vmatmul.bf16.gmra.mxu0 %v921
        %v1914 = vpop.f32.mrf.mxu0
        %v1915 = vadd.f32 %v1902, %v1914
        %v1916 = vpop.f32.mrf.mxu0
        %1917 = vdwg.mxu0
        %1918 = vmatpush.bf16.xpose.msra.mxu0 0
        %1919 = vmatpush.bf16.xpose.msra.mxu0 0
        %1920 = vmatpush.bf16.xpose.msra.mxu0 0
        %1921 = vmatpush.bf16.xpose.msra.mxu0 0
        %1922 = vmatpush.bf16.xpose.msra.mxu0 %v1534
        %1923 = vmatpush.bf16.xpose.msra.mxu0 %v1498
        %1924 = vmatpush.bf16.xpose.msra.mxu0 %v1462
        %1925 = vmatpush.bf16.xpose.msra.mxu0 %v1426
        %1926 = vmatmul.bf16.gmra.mxu0 %v922
        %v1927 = vpop.f32.mrf.mxu0
        %v1928 = vadd.f32 %v1915, %v1927
        %v1929 = vpop.f32.mrf.mxu0
        %1930 = vdwg.mxu0
        %1931 = vmatpush.bf16.xpose.msra.mxu0 0
        %1932 = vmatpush.bf16.xpose.msra.mxu0 0
        %1933 = vmatpush.bf16.xpose.msra.mxu0 0
        %1934 = vmatpush.bf16.xpose.msra.mxu0 0
        %1935 = vmatpush.bf16.xpose.msra.mxu0 %v1535
        %1936 = vmatpush.bf16.xpose.msra.mxu0 %v1499
        %1937 = vmatpush.bf16.xpose.msra.mxu0 %v1463
        %1938 = vmatpush.bf16.xpose.msra.mxu0 %v1427
        %1939 = vmatmul.bf16.gmra.mxu0 %v923
        %v1940 = vpop.f32.mrf.mxu0
        %v1941 = vadd.f32 %v1928, %v1940
        %v1942 = vpop.f32.mrf.mxu0
        %1943 = vdwg.mxu0
        %1944 = vmatpush.bf16.xpose.msra.mxu0 0
        %1945 = vmatpush.bf16.xpose.msra.mxu0 0
        %1946 = vmatpush.bf16.xpose.msra.mxu0 0
        %1947 = vmatpush.bf16.xpose.msra.mxu0 0
        %1948 = vmatpush.bf16.xpose.msra.mxu0 %v1536
        %1949 = vmatpush.bf16.xpose.msra.mxu0 %v1500
        %1950 = vmatpush.bf16.xpose.msra.mxu0 %v1464
        %1951 = vmatpush.bf16.xpose.msra.mxu0 %v1428
        %1952 = vmatmul.bf16.gmra.mxu0 %v924
        %v1953 = vpop.f32.mrf.mxu0
        %v1954 = vadd.f32 %v1941, %v1953
        %v1955 = vpop.f32.mrf.mxu0
        %1956 = vdwg.mxu0
        %1957 = vmatpush.bf16.xpose.msra.mxu0 0
        %1958 = vmatpush.bf16.xpose.msra.mxu0 0
        %1959 = vmatpush.bf16.xpose.msra.mxu0 0
        %1960 = vmatpush.bf16.xpose.msra.mxu0 0
        %1961 = vmatpush.bf16.xpose.msra.mxu0 %v1537
        %1962 = vmatpush.bf16.xpose.msra.mxu0 %v1501
        %1963 = vmatpush.bf16.xpose.msra.mxu0 %v1465
        %1964 = vmatpush.bf16.xpose.msra.mxu0 %v1429
        %1965 = vmatmul.bf16.gmra.mxu0 %v925
        %v1966 = vpop.f32.mrf.mxu0
        %v1967 = vadd.f32 %v1954, %v1966
        %v1968 = vpop.f32.mrf.mxu0
        %1969 = vdwg.mxu0
        %1970 = vmatpush.bf16.xpose.msra.mxu0 0
        %1971 = vmatpush.bf16.xpose.msra.mxu0 0
        %1972 = vmatpush.bf16.xpose.msra.mxu0 0
        %1973 = vmatpush.bf16.xpose.msra.mxu0 0
        %1974 = vmatpush.bf16.xpose.msra.mxu0 %v1538
        %1975 = vmatpush.bf16.xpose.msra.mxu0 %v1502
        %1976 = vmatpush.bf16.xpose.msra.mxu0 %v1466
        %1977 = vmatpush.bf16.xpose.msra.mxu0 %v1430
        %1978 = vmatmul.bf16.gmra.mxu0 %v926
        %v1979 = vpop.f32.mrf.mxu0
        %v1980 = vadd.f32 %v1967, %v1979
        %v1981 = vpop.f32.mrf.mxu0
        %1982 = vdwg.mxu0
        %1983 = vmatpush.bf16.xpose.msra.mxu0 0
        %1984 = vmatpush.bf16.xpose.msra.mxu0 0
        %1985 = vmatpush.bf16.xpose.msra.mxu0 0
        %1986 = vmatpush.bf16.xpose.msra.mxu0 0
        %1987 = vmatpush.bf16.xpose.msra.mxu0 %v1539
        %1988 = vmatpush.bf16.xpose.msra.mxu0 %v1503
        %1989 = vmatpush.bf16.xpose.msra.mxu0 %v1467
        %1990 = vmatpush.bf16.xpose.msra.mxu0 %v1431
        %1991 = vmatmul.bf16.gmra.mxu0 %v927
        %v1992 = vpop.f32.mrf.mxu0
        %v1993 = vadd.f32 %v1980, %v1992
        %v1994 = vpop.f32.mrf.mxu0
        %1995 = vdwg.mxu0
        %1996 = vmatpush.bf16.xpose.msra.mxu0 0
        %1997 = vmatpush.bf16.xpose.msra.mxu0 0
        %1998 = vmatpush.bf16.xpose.msra.mxu0 0
        %1999 = vmatpush.bf16.xpose.msra.mxu0 0
        %2000 = vmatpush.bf16.xpose.msra.mxu0 %v1540
        %2001 = vmatpush.bf16.xpose.msra.mxu0 %v1504
        %2002 = vmatpush.bf16.xpose.msra.mxu0 %v1468
        %2003 = vmatpush.bf16.xpose.msra.mxu0 %v1432
        %2004 = vmatmul.bf16.gmra.mxu0 %v928
        %v2005 = vpop.f32.mrf.mxu0
        %v2006 = vadd.f32 %v1993, %v2005
        %v2007 = vpop.f32.mrf.mxu0
        %2008 = vdwg.mxu0
        %2009 = vmatpush.bf16.xpose.msra.mxu0 0
        %2010 = vmatpush.bf16.xpose.msra.mxu0 0
        %2011 = vmatpush.bf16.xpose.msra.mxu0 0
        %2012 = vmatpush.bf16.xpose.msra.mxu0 0
        %2013 = vmatpush.bf16.xpose.msra.mxu0 %v1541
        %2014 = vmatpush.bf16.xpose.msra.mxu0 %v1505
        %2015 = vmatpush.bf16.xpose.msra.mxu0 %v1469
        %2016 = vmatpush.bf16.xpose.msra.mxu0 %v1433
        %2017 = vmatmul.bf16.gmra.mxu0 %v929
        %v2018 = vpop.f32.mrf.mxu0
        %v2019 = vadd.f32 %v2006, %v2018
        %v2020 = vpop.f32.mrf.mxu0
        %2021 = vdwg.mxu0
        %2022 = vmatpush.bf16.xpose.msra.mxu0 0
        %2023 = vmatpush.bf16.xpose.msra.mxu0 0
        %2024 = vmatpush.bf16.xpose.msra.mxu0 0
        %2025 = vmatpush.bf16.xpose.msra.mxu0 0
        %2026 = vmatpush.bf16.xpose.msra.mxu0 %v1542
        %2027 = vmatpush.bf16.xpose.msra.mxu0 %v1506
        %2028 = vmatpush.bf16.xpose.msra.mxu0 %v1470
        %2029 = vmatpush.bf16.xpose.msra.mxu0 %v1434
        %2030 = vmatmul.bf16.gmra.mxu0 %v930
        %v2031 = vpop.f32.mrf.mxu0
        %v2032 = vadd.f32 %v2019, %v2031
        %v2033 = vpop.f32.mrf.mxu0
        %2034 = vdwg.mxu0
        %2035 = vmatpush.bf16.xpose.msra.mxu0 0
        %2036 = vmatpush.bf16.xpose.msra.mxu0 0
        %2037 = vmatpush.bf16.xpose.msra.mxu0 0
        %2038 = vmatpush.bf16.xpose.msra.mxu0 0
        %2039 = vmatpush.bf16.xpose.msra.mxu0 %v1543
        %2040 = vmatpush.bf16.xpose.msra.mxu0 %v1507
        %2041 = vmatpush.bf16.xpose.msra.mxu0 %v1471
        %2042 = vmatpush.bf16.xpose.msra.mxu0 %v1435
        %2043 = vmatmul.bf16.gmra.mxu0 %v931
        %v2044 = vpop.f32.mrf.mxu0
        %v2045 = vadd.f32 %v2032, %v2044
        %v2046 = vpop.f32.mrf.mxu0
        %2047 = vdwg.mxu0
        %2048 = vmatpush.bf16.xpose.msra.mxu0 0
        %2049 = vmatpush.bf16.xpose.msra.mxu0 0
        %2050 = vmatpush.bf16.xpose.msra.mxu0 0
        %2051 = vmatpush.bf16.xpose.msra.mxu0 0
        %2052 = vmatpush.bf16.xpose.msra.mxu0 %v1544
        %2053 = vmatpush.bf16.xpose.msra.mxu0 %v1508
        %2054 = vmatpush.bf16.xpose.msra.mxu0 %v1472
        %2055 = vmatpush.bf16.xpose.msra.mxu0 %v1436
        %2056 = vmatmul.bf16.gmra.mxu0 %v932
        %v2057 = vpop.f32.mrf.mxu0
        %v2058 = vadd.f32 %v2045, %v2057
        %v2059 = vpop.f32.mrf.mxu0
        %2060 = vdwg.mxu0
        %2061 = vmatpush.bf16.xpose.msra.mxu0 0
        %2062 = vmatpush.bf16.xpose.msra.mxu0 0
        %2063 = vmatpush.bf16.xpose.msra.mxu0 0
        %2064 = vmatpush.bf16.xpose.msra.mxu0 0
        %2065 = vmatpush.bf16.xpose.msra.mxu0 %v1545
        %2066 = vmatpush.bf16.xpose.msra.mxu0 %v1509
        %2067 = vmatpush.bf16.xpose.msra.mxu0 %v1473
        %2068 = vmatpush.bf16.xpose.msra.mxu0 %v1437
        %2069 = vmatmul.bf16.gmra.mxu0 %v933
        %v2070 = vpop.f32.mrf.mxu0
        %v2071 = vadd.f32 %v2058, %v2070
        %v2072 = vpop.f32.mrf.mxu0
        %2073 = vdwg.mxu0
        %2074 = vmatpush.bf16.xpose.msra.mxu0 0
        %2075 = vmatpush.bf16.xpose.msra.mxu0 0
        %2076 = vmatpush.bf16.xpose.msra.mxu0 0
        %2077 = vmatpush.bf16.xpose.msra.mxu0 0
        %2078 = vmatpush.bf16.xpose.msra.mxu0 %v1546
        %2079 = vmatpush.bf16.xpose.msra.mxu0 %v1510
        %2080 = vmatpush.bf16.xpose.msra.mxu0 %v1474
        %2081 = vmatpush.bf16.xpose.msra.mxu0 %v1438
        %2082 = vmatmul.bf16.gmra.mxu0 %v934
        %v2083 = vpop.f32.mrf.mxu0
        %v2084 = vadd.f32 %v2071, %v2083
        %v2085 = vpop.f32.mrf.mxu0
        %2086 = vdwg.mxu0
        %2087 = vmatpush.bf16.xpose.msra.mxu0 0
        %2088 = vmatpush.bf16.xpose.msra.mxu0 0
        %2089 = vmatpush.bf16.xpose.msra.mxu0 0
        %2090 = vmatpush.bf16.xpose.msra.mxu0 0
        %2091 = vmatpush.bf16.xpose.msra.mxu0 %v1547
        %2092 = vmatpush.bf16.xpose.msra.mxu0 %v1511
        %2093 = vmatpush.bf16.xpose.msra.mxu0 %v1475
        %2094 = vmatpush.bf16.xpose.msra.mxu0 %v1439
        %2095 = vmatmul.bf16.gmra.mxu0 %v935
        %v2096 = vpop.f32.mrf.mxu0
        %v2097 = vadd.f32 %v2084, %v2096
        %v2098 = vpop.f32.mrf.mxu0
        %2099 = vdwg.mxu0
        %2100 = vmatpush.bf16.xpose.msra.mxu0 0
        %2101 = vmatpush.bf16.xpose.msra.mxu0 0
        %2102 = vmatpush.bf16.xpose.msra.mxu0 0
        %2103 = vmatpush.bf16.xpose.msra.mxu0 0
        %2104 = vmatpush.bf16.xpose.msra.mxu0 %v1548
        %2105 = vmatpush.bf16.xpose.msra.mxu0 %v1512
        %2106 = vmatpush.bf16.xpose.msra.mxu0 %v1476
        %2107 = vmatpush.bf16.xpose.msra.mxu0 %v1440
        %2108 = vmatmul.bf16.gmra.mxu0 %v936
        %v2109 = vpop.f32.mrf.mxu0
        %v2110 = vadd.f32 %v2097, %v2109
        %v2111 = vpop.f32.mrf.mxu0
        %2112 = vdwg.mxu0
        %2113 = vmatpush.bf16.xpose.msra.mxu0 0
        %2114 = vmatpush.bf16.xpose.msra.mxu0 0
        %2115 = vmatpush.bf16.xpose.msra.mxu0 0
        %2116 = vmatpush.bf16.xpose.msra.mxu0 0
        %2117 = vmatpush.bf16.xpose.msra.mxu0 %v1549
        %2118 = vmatpush.bf16.xpose.msra.mxu0 %v1513
        %2119 = vmatpush.bf16.xpose.msra.mxu0 %v1477
        %2120 = vmatpush.bf16.xpose.msra.mxu0 %v1441
        %2121 = vmatmul.bf16.gmra.mxu0 %v937
        %v2122 = vpop.f32.mrf.mxu0
        %v2123 = vadd.f32 %v2110, %v2122
        %v2124 = vpop.f32.mrf.mxu0
        %2125 = vdwg.mxu0
        %2126 = vmatpush.bf16.xpose.msra.mxu0 0
        %2127 = vmatpush.bf16.xpose.msra.mxu0 0
        %2128 = vmatpush.bf16.xpose.msra.mxu0 0
        %2129 = vmatpush.bf16.xpose.msra.mxu0 0
        %2130 = vmatpush.bf16.xpose.msra.mxu0 %v1550
        %2131 = vmatpush.bf16.xpose.msra.mxu0 %v1514
        %2132 = vmatpush.bf16.xpose.msra.mxu0 %v1478
        %2133 = vmatpush.bf16.xpose.msra.mxu0 %v1442
        %2134 = vmatmul.bf16.gmra.mxu0 %v938
        %v2135 = vpop.f32.mrf.mxu0
        %v2136 = vadd.f32 %v2123, %v2135
        %v2137 = vpop.f32.mrf.mxu0
        %2138 = vdwg.mxu0
        %2139 = vmatpush.bf16.xpose.msra.mxu0 0
        %2140 = vmatpush.bf16.xpose.msra.mxu0 0
        %2141 = vmatpush.bf16.xpose.msra.mxu0 0
        %2142 = vmatpush.bf16.xpose.msra.mxu0 0
        %2143 = vmatpush.bf16.xpose.msra.mxu0 %v1551
        %2144 = vmatpush.bf16.xpose.msra.mxu0 %v1515
        %2145 = vmatpush.bf16.xpose.msra.mxu0 %v1479
        %2146 = vmatpush.bf16.xpose.msra.mxu0 %v1443
        %2147 = vmatmul.bf16.gmra.mxu0 %v939
        %v2148 = vpop.f32.mrf.mxu0
        %v2149 = vadd.f32 %v2136, %v2148
        %v2150 = vpop.f32.mrf.mxu0
        %2151 = vdwg.mxu0
        %2152 = vmatpush.bf16.xpose.msra.mxu0 0
        %2153 = vmatpush.bf16.xpose.msra.mxu0 0
        %2154 = vmatpush.bf16.xpose.msra.mxu0 0
        %2155 = vmatpush.bf16.xpose.msra.mxu0 0
        %2156 = vmatpush.bf16.xpose.msra.mxu0 %v1552
        %2157 = vmatpush.bf16.xpose.msra.mxu0 %v1516
        %2158 = vmatpush.bf16.xpose.msra.mxu0 %v1480
        %2159 = vmatpush.bf16.xpose.msra.mxu0 %v1444
        %2160 = vmatmul.bf16.gmra.mxu0 %v940
        %v2161 = vpop.f32.mrf.mxu0
        %v2162 = vadd.f32 %v2149, %v2161
        %v2163 = vpop.f32.mrf.mxu0
        %2164 = vdwg.mxu0
        %v2165 = vpack.c.bf16 %v2162, %v2162
        %v2167 = vrot.slane %v2165, 3
        %vm2168 = vcmask 1040384
        %v2171 = vsel %vm2168, %v2165, %v2167
        %vm2173 = vcmask 1041409
        %v2174 = vsel %vm2173, %v2165, %v2167
        %v2176 = vrot.slane %v2174, 1
        %vm2177 = vcmask 1042434
        %v2178 = vsel %vm2177, %v2165, %v2167
        %v2180 = vrot.slane %v2178, 2
        %vm2181 = vcmask 1043459
        %v2182 = vsel %vm2181, %v2165, %v2167
        %v2184 = vrot.slane %v2182, 3
        %v2185 = vunpack.i.l.s16 %v2171
        %v2186 = vunpack.i.h.s16 %v2171
        %v2187 = vunpack.i.l.s16 %v2176
        %v2188 = vunpack.i.h.s16 %v2176
        %v2189 = vunpack.i.l.s16 %v2180
        %v2190 = vunpack.i.h.s16 %v2180
        %v2191 = vunpack.i.l.s16 %v2184
        %v2192 = vunpack.i.h.s16 %v2184
        %v2193 = vld [vmem:[%s3] sm:$0xf]
        %v2194 = vld [vmem:[%s3 + $0x4] sm:$0xf]
        %v2195 = vld [vmem:[%s3 + $0x8] sm:$0xf]
        %v2196 = vld [vmem:[%s3 + $0xc] sm:$0xf]
        %v2197 = vld [vmem:[%s3 + $0x10] sm:$0xf]
        %v2198 = vld [vmem:[%s3 + $0x14] sm:$0xf]
        %v2199 = vld [vmem:[%s3 + $0x18] sm:$0xf]
        %v2200 = vld [vmem:[%s3 + $0x1c] sm:$0xf]
        %v2201 = vld [vmem:[%s3 + $0x20] sm:$0xf]
        %v2202 = vld [vmem:[%s3 + $0x24] sm:$0xf]
        %v2203 = vld [vmem:[%s3 + $0x28] sm:$0xf]
        %v2204 = vld [vmem:[%s3 + $0x2c] sm:$0xf]
        %v2205 = vld [vmem:[%s3 + $0x30] sm:$0xf]
        %v2206 = vld [vmem:[%s3 + $0x34] sm:$0xf]
        %v2207 = vld [vmem:[%s3 + $0x38] sm:$0xf]
        %v2208 = vld [vmem:[%s3 + $0x3c] sm:$0xf]
        %v2209 = vld [vmem:[%s3 + $0x40] sm:$0xf]
        %v2210 = vld [vmem:[%s3 + $0x44] sm:$0xf]
        %v2211 = vld [vmem:[%s3 + $0x48] sm:$0xf]
        %v2212 = vld [vmem:[%s3 + $0x4c] sm:$0xf]
        %v2213 = vld [vmem:[%s3 + $0x50] sm:$0xf]
        %v2214 = vld [vmem:[%s3 + $0x54] sm:$0xf]
        %v2215 = vld [vmem:[%s3 + $0x58] sm:$0xf]
        %v2216 = vld [vmem:[%s3 + $0x5c] sm:$0xf]
        %v2217 = vld [vmem:[%s3 + $0x60] sm:$0xf]
        %v2218 = vld [vmem:[%s3 + $0x64] sm:$0xf]
        %v2219 = vld [vmem:[%s3 + $0x68] sm:$0xf]
        %v2220 = vld [vmem:[%s3 + $0x6c] sm:$0xf]
        %v2221 = vld [vmem:[%s3 + $0x70] sm:$0xf]
        %v2222 = vld [vmem:[%s3 + $0x74] sm:$0xf]
        %v2223 = vld [vmem:[%s3 + $0x78] sm:$0xf]
        %v2224 = vld [vmem:[%s3 + $0x7c] sm:$0xf]
        %v2225 = vld [vmem:[%s3 + $0x80] sm:$0xf]
        %v2226 = vld [vmem:[%s3 + $0x84] sm:$0xf]
        %v2227 = vld [vmem:[%s3 + $0x88] sm:$0xf]
        %v2228 = vld [vmem:[%s3 + $0x8c] sm:$0xf]
        %v2229 = vld [vmem:[%s3 + $0x90] sm:$0xf]
        %v2230 = vld [vmem:[%s3 + $0x94] sm:$0xf]
        %v2231 = vld [vmem:[%s3 + $0x98] sm:$0xf]
        %v2232 = vld [vmem:[%s3 + $0x9c] sm:$0xf]
        %v2233 = vld [vmem:[%s3 + $0xa0] sm:$0xf]
        %v2234 = vld [vmem:[%s3 + $0xa4] sm:$0xf]
        %v2235 = vld [vmem:[%s3 + $0xa8] sm:$0xf]
        %v2236 = vld [vmem:[%s3 + $0xac] sm:$0xf]
        %v2237 = vld [vmem:[%s3 + $0xb0] sm:$0xf]
        %v2238 = vld [vmem:[%s3 + $0xb4] sm:$0xf]
        %v2239 = vld [vmem:[%s3 + $0xb8] sm:$0xf]
        %v2240 = vld [vmem:[%s3 + $0xbc] sm:$0xf]
        %v2241 = vld [vmem:[%s3 + $0xc0] sm:$0xf]
        %v2242 = vld [vmem:[%s3 + $0xc4] sm:$0xf]
        %v2243 = vld [vmem:[%s3 + $0xc8] sm:$0xf]
        %v2244 = vld [vmem:[%s3 + $0xcc] sm:$0xf]
        %v2245 = vld [vmem:[%s3 + $0xd0] sm:$0xf]
        %v2246 = vld [vmem:[%s3 + $0xd4] sm:$0xf]
        %v2247 = vld [vmem:[%s3 + $0xd8] sm:$0xf]
        %v2248 = vld [vmem:[%s3 + $0xdc] sm:$0xf]
        %v2249 = vld [vmem:[%s3 + $0xe0] sm:$0xf]
        %v2250 = vld [vmem:[%s3 + $0xe4] sm:$0xf]
        %v2251 = vld [vmem:[%s3 + $0xe8] sm:$0xf]
        %v2252 = vld [vmem:[%s3 + $0xec] sm:$0xf]
        %v2253 = vld [vmem:[%s3 + $0xf0] sm:$0xf]
        %v2254 = vld [vmem:[%s3 + $0xf4] sm:$0xf]
        %v2255 = vld [vmem:[%s3 + $0xf8] sm:$0xf]
        %v2256 = vld [vmem:[%s3 + $0xfc] sm:$0xf]
        %v2257 = vpack.i.b16 %v2185, %v2185
        %v2258 = vperm.slane %v2257, 0
        %v2267 = vunpack.c.l.b16 %v2193
        %v2268 = vunpack.c.l.b16 %v2194
        %v2269 = vunpack.c.l.b16 %v2195
        %v2270 = vunpack.c.l.b16 %v2196
        %v2271 = vunpack.c.l.b16 %v2197
        %v2272 = vunpack.c.l.b16 %v2198
        %v2273 = vunpack.c.l.b16 %v2199
        %v2274 = vunpack.c.l.b16 %v2200
        %v2275 = vpack.c.b16 %v2268, %v2267
        %v2276 = vpack.c.b16 %v2270, %v2269
        %v2277 = vpack.c.b16 %v2272, %v2271
        %v2278 = vpack.c.b16 %v2274, %v2273
        %vm2283 = vcmask 523264
        %v2285 = vsel %vm2283, %v2258, 0
        %2287 = vmatpush.bf16.msra.mxu0 0
        %2288 = vmatpush.bf16.msra.mxu0 0
        %2289 = vmatpush.bf16.msra.mxu0 0
        %2290 = vmatpush.bf16.msra.mxu0 0
        %2291 = vmatpush.bf16.msra.mxu0 %v2278
        %2292 = vmatpush.bf16.msra.mxu0 %v2277
        %2293 = vmatpush.bf16.msra.mxu0 %v2276
        %2294 = vmatpush.bf16.msra.mxu0 %v2275
        %2295 = vmatmul.bf16.gmra.mxu0 %v2285
        %v2296 = vpop.f32.mrf.mxu0
        %v2297 = vadd.f32 0.0, %v2296
        %v2298 = vpop.f32.mrf.mxu0
        %2299 = vdwg.mxu0
        %v2300 = vpack.i.b16 %v2186, %v2186
        %v2301 = vperm.slane %v2300, 0
        %v2310 = vunpack.c.l.b16 %v2201
        %v2311 = vunpack.c.l.b16 %v2202
        %v2312 = vunpack.c.l.b16 %v2203
        %v2313 = vunpack.c.l.b16 %v2204
        %v2314 = vunpack.c.l.b16 %v2205
        %v2315 = vunpack.c.l.b16 %v2206
        %v2316 = vunpack.c.l.b16 %v2207
        %v2317 = vunpack.c.l.b16 %v2208
        %v2318 = vpack.c.b16 %v2311, %v2310
        %v2319 = vpack.c.b16 %v2313, %v2312
        %v2320 = vpack.c.b16 %v2315, %v2314
        %v2321 = vpack.c.b16 %v2317, %v2316
        %v2327 = vsel %vm2283, %v2301, 0
        %2329 = vmatpush.bf16.msra.mxu0 0
        %2330 = vmatpush.bf16.msra.mxu0 0
        %2331 = vmatpush.bf16.msra.mxu0 0
        %2332 = vmatpush.bf16.msra.mxu0 0
        %2333 = vmatpush.bf16.msra.mxu0 %v2321
        %2334 = vmatpush.bf16.msra.mxu0 %v2320
        %2335 = vmatpush.bf16.msra.mxu0 %v2319
        %2336 = vmatpush.bf16.msra.mxu0 %v2318
        %2337 = vmatmul.bf16.gmra.mxu0 %v2327
        %v2338 = vpop.f32.mrf.mxu0
        %v2339 = vadd.f32 0.0, %v2338
        %v2340 = vpop.f32.mrf.mxu0
        %2341 = vdwg.mxu0
        %v2342 = vpack.i.b16 %v2187, %v2187
        %v2343 = vperm.slane %v2342, 0
        %v2352 = vunpack.c.l.b16 %v2209
        %v2353 = vunpack.c.l.b16 %v2210
        %v2354 = vunpack.c.l.b16 %v2211
        %v2355 = vunpack.c.l.b16 %v2212
        %v2356 = vunpack.c.l.b16 %v2213
        %v2357 = vunpack.c.l.b16 %v2214
        %v2358 = vunpack.c.l.b16 %v2215
        %v2359 = vunpack.c.l.b16 %v2216
        %v2360 = vpack.c.b16 %v2353, %v2352
        %v2361 = vpack.c.b16 %v2355, %v2354
        %v2362 = vpack.c.b16 %v2357, %v2356
        %v2363 = vpack.c.b16 %v2359, %v2358
        %v2369 = vsel %vm2283, %v2343, 0
        %2371 = vmatpush.bf16.msra.mxu0 0
        %2372 = vmatpush.bf16.msra.mxu0 0
        %2373 = vmatpush.bf16.msra.mxu0 0
        %2374 = vmatpush.bf16.msra.mxu0 0
        %2375 = vmatpush.bf16.msra.mxu0 %v2363
        %2376 = vmatpush.bf16.msra.mxu0 %v2362
        %2377 = vmatpush.bf16.msra.mxu0 %v2361
        %2378 = vmatpush.bf16.msra.mxu0 %v2360
        %2379 = vmatmul.bf16.gmra.mxu0 %v2369
        %v2380 = vpop.f32.mrf.mxu0
        %v2381 = vadd.f32 0.0, %v2380
        %v2382 = vpop.f32.mrf.mxu0
        %2383 = vdwg.mxu0
        %v2384 = vpack.i.b16 %v2188, %v2188
        %v2385 = vperm.slane %v2384, 0
        %v2394 = vunpack.c.l.b16 %v2217
        %v2395 = vunpack.c.l.b16 %v2218
        %v2396 = vunpack.c.l.b16 %v2219
        %v2397 = vunpack.c.l.b16 %v2220
        %v2398 = vunpack.c.l.b16 %v2221
        %v2399 = vunpack.c.l.b16 %v2222
        %v2400 = vunpack.c.l.b16 %v2223
        %v2401 = vunpack.c.l.b16 %v2224
        %v2402 = vpack.c.b16 %v2395, %v2394
        %v2403 = vpack.c.b16 %v2397, %v2396
        %v2404 = vpack.c.b16 %v2399, %v2398
        %v2405 = vpack.c.b16 %v2401, %v2400
        %v2411 = vsel %vm2283, %v2385, 0
        %2413 = vmatpush.bf16.msra.mxu0 0
        %2414 = vmatpush.bf16.msra.mxu0 0
        %2415 = vmatpush.bf16.msra.mxu0 0
        %2416 = vmatpush.bf16.msra.mxu0 0
        %2417 = vmatpush.bf16.msra.mxu0 %v2405
        %2418 = vmatpush.bf16.msra.mxu0 %v2404
        %2419 = vmatpush.bf16.msra.mxu0 %v2403
        %2420 = vmatpush.bf16.msra.mxu0 %v2402
        %2421 = vmatmul.bf16.gmra.mxu0 %v2411
        %v2422 = vpop.f32.mrf.mxu0
        %v2423 = vadd.f32 0.0, %v2422
        %v2424 = vpop.f32.mrf.mxu0
        %2425 = vdwg.mxu0
        %v2426 = vpack.i.b16 %v2189, %v2189
        %v2427 = vperm.slane %v2426, 0
        %v2436 = vunpack.c.l.b16 %v2225
        %v2437 = vunpack.c.l.b16 %v2226
        %v2438 = vunpack.c.l.b16 %v2227
        %v2439 = vunpack.c.l.b16 %v2228
        %v2440 = vunpack.c.l.b16 %v2229
        %v2441 = vunpack.c.l.b16 %v2230
        %v2442 = vunpack.c.l.b16 %v2231
        %v2443 = vunpack.c.l.b16 %v2232
        %v2444 = vpack.c.b16 %v2437, %v2436
        %v2445 = vpack.c.b16 %v2439, %v2438
        %v2446 = vpack.c.b16 %v2441, %v2440
        %v2447 = vpack.c.b16 %v2443, %v2442
        %v2453 = vsel %vm2283, %v2427, 0
        %2455 = vmatpush.bf16.msra.mxu0 0
        %2456 = vmatpush.bf16.msra.mxu0 0
        %2457 = vmatpush.bf16.msra.mxu0 0
        %2458 = vmatpush.bf16.msra.mxu0 0
        %2459 = vmatpush.bf16.msra.mxu0 %v2447
        %2460 = vmatpush.bf16.msra.mxu0 %v2446
        %2461 = vmatpush.bf16.msra.mxu0 %v2445
        %2462 = vmatpush.bf16.msra.mxu0 %v2444
        %2463 = vmatmul.bf16.gmra.mxu0 %v2453
        %v2464 = vpop.f32.mrf.mxu0
        %v2465 = vadd.f32 0.0, %v2464
        %v2466 = vpop.f32.mrf.mxu0
        %2467 = vdwg.mxu0
        %v2468 = vpack.i.b16 %v2190, %v2190
        %v2469 = vperm.slane %v2468, 0
        %v2478 = vunpack.c.l.b16 %v2233
        %v2479 = vunpack.c.l.b16 %v2234
        %v2480 = vunpack.c.l.b16 %v2235
        %v2481 = vunpack.c.l.b16 %v2236
        %v2482 = vunpack.c.l.b16 %v2237
        %v2483 = vunpack.c.l.b16 %v2238
        %v2484 = vunpack.c.l.b16 %v2239
        %v2485 = vunpack.c.l.b16 %v2240
        %v2486 = vpack.c.b16 %v2479, %v2478
        %v2487 = vpack.c.b16 %v2481, %v2480
        %v2488 = vpack.c.b16 %v2483, %v2482
        %v2489 = vpack.c.b16 %v2485, %v2484
        %v2495 = vsel %vm2283, %v2469, 0
        %2497 = vmatpush.bf16.msra.mxu0 0
        %2498 = vmatpush.bf16.msra.mxu0 0
        %2499 = vmatpush.bf16.msra.mxu0 0
        %2500 = vmatpush.bf16.msra.mxu0 0
        %2501 = vmatpush.bf16.msra.mxu0 %v2489
        %2502 = vmatpush.bf16.msra.mxu0 %v2488
        %2503 = vmatpush.bf16.msra.mxu0 %v2487
        %2504 = vmatpush.bf16.msra.mxu0 %v2486
        %2505 = vmatmul.bf16.gmra.mxu0 %v2495
        %v2506 = vpop.f32.mrf.mxu0
        %v2507 = vadd.f32 0.0, %v2506
        %v2508 = vpop.f32.mrf.mxu0
        %2509 = vdwg.mxu0
        %v2510 = vpack.i.b16 %v2191, %v2191
        %v2511 = vperm.slane %v2510, 0
        %v2520 = vunpack.c.l.b16 %v2241
        %v2521 = vunpack.c.l.b16 %v2242
        %v2522 = vunpack.c.l.b16 %v2243
        %v2523 = vunpack.c.l.b16 %v2244
        %v2524 = vunpack.c.l.b16 %v2245
        %v2525 = vunpack.c.l.b16 %v2246
        %v2526 = vunpack.c.l.b16 %v2247
        %v2527 = vunpack.c.l.b16 %v2248
        %v2528 = vpack.c.b16 %v2521, %v2520
        %v2529 = vpack.c.b16 %v2523, %v2522
        %v2530 = vpack.c.b16 %v2525, %v2524
        %v2531 = vpack.c.b16 %v2527, %v2526
        %v2537 = vsel %vm2283, %v2511, 0
        %2539 = vmatpush.bf16.msra.mxu0 0
        %2540 = vmatpush.bf16.msra.mxu0 0
        %2541 = vmatpush.bf16.msra.mxu0 0
        %2542 = vmatpush.bf16.msra.mxu0 0
        %2543 = vmatpush.bf16.msra.mxu0 %v2531
        %2544 = vmatpush.bf16.msra.mxu0 %v2530
        %2545 = vmatpush.bf16.msra.mxu0 %v2529
        %2546 = vmatpush.bf16.msra.mxu0 %v2528
        %2547 = vmatmul.bf16.gmra.mxu0 %v2537
        %v2548 = vpop.f32.mrf.mxu0
        %v2549 = vadd.f32 0.0, %v2548
        %v2550 = vpop.f32.mrf.mxu0
        %2551 = vdwg.mxu0
        %v2552 = vpack.i.b16 %v2192, %v2192
        %v2553 = vperm.slane %v2552, 0
        %v2562 = vunpack.c.l.b16 %v2249
        %v2563 = vunpack.c.l.b16 %v2250
        %v2564 = vunpack.c.l.b16 %v2251
        %v2565 = vunpack.c.l.b16 %v2252
        %v2566 = vunpack.c.l.b16 %v2253
        %v2567 = vunpack.c.l.b16 %v2254
        %v2568 = vunpack.c.l.b16 %v2255
        %v2569 = vunpack.c.l.b16 %v2256
        %v2570 = vpack.c.b16 %v2563, %v2562
        %v2571 = vpack.c.b16 %v2565, %v2564
        %v2572 = vpack.c.b16 %v2567, %v2566
        %v2573 = vpack.c.b16 %v2569, %v2568
        %v2579 = vsel %vm2283, %v2553, 0
        %2581 = vmatpush.bf16.msra.mxu0 0
        %2582 = vmatpush.bf16.msra.mxu0 0
        %2583 = vmatpush.bf16.msra.mxu0 0
        %2584 = vmatpush.bf16.msra.mxu0 0
        %2585 = vmatpush.bf16.msra.mxu0 %v2573
        %2586 = vmatpush.bf16.msra.mxu0 %v2572
        %2587 = vmatpush.bf16.msra.mxu0 %v2571
        %2588 = vmatpush.bf16.msra.mxu0 %v2570
        %2589 = vmatmul.bf16.gmra.mxu0 %v2579
        %v2590 = vpop.f32.mrf.mxu0
        %v2591 = vadd.f32 0.0, %v2590
        %v2592 = vpop.f32.mrf.mxu0
        %2593 = vdwg.mxu0
        %v2594 = vld [vmem:[%s4] sm:$0xff]
        %v2596 = vrot.slane %v2594, 1
        %v2597 = vrot.slane %v2594, 2
        %v2598 = vrot.slane %v2594, 3
        %v2599 = vrot.slane %v2594, 4
        %v2600 = vrot.slane %v2594, 5
        %v2601 = vrot.slane %v2594, 6
        %v2602 = vrot.slane %v2594, 7
        %v2611 = vadd.f32 %v2297, %v2594
        %v2612 = vadd.f32 %v2339, %v2596
        %v2613 = vadd.f32 %v2381, %v2597
        %v2614 = vadd.f32 %v2423, %v2598
        %v2615 = vadd.f32 %v2465, %v2599
        %v2616 = vadd.f32 %v2507, %v2600
        %v2617 = vadd.f32 %v2549, %v2601
        %v2618 = vadd.f32 %v2591, %v2602
        %v2619 = vld [vmem:[%s5] sm:$0xff]
        %v2621 = vrot.slane %v2619, 1
        %v2622 = vrot.slane %v2619, 2
        %v2623 = vrot.slane %v2619, 3
        %v2624 = vrot.slane %v2619, 4
        %v2625 = vrot.slane %v2619, 5
        %v2626 = vrot.slane %v2619, 6
        %v2627 = vrot.slane %v2619, 7
        %v2636 = vadd.f32 %v2611, %v2619
        %v2637 = vadd.f32 %v2612, %v2621
        %v2638 = vadd.f32 %v2613, %v2622
        %v2639 = vadd.f32 %v2614, %v2623
        %v2640 = vadd.f32 %v2615, %v2624
        %v2641 = vadd.f32 %v2616, %v2625
        %v2642 = vadd.f32 %v2617, %v2626
        %v2643 = vadd.f32 %v2618, %v2627
        %v2644 = vpack.c.bf16 %v2636, %v2636
        %v2645 = vpack.c.bf16 %v2637, %v2637
        %v2646 = vpack.c.bf16 %v2638, %v2638
        %v2647 = vpack.c.bf16 %v2639, %v2639
        %v2648 = vpack.c.bf16 %v2640, %v2640
        %v2649 = vpack.c.bf16 %v2641, %v2641
        %v2650 = vpack.c.bf16 %v2642, %v2642
        %v2651 = vpack.c.bf16 %v2643, %v2643
        %v2652 = vld [vmem:[%s6] sm:$0xff]
        %v2653 = vld [vmem:[%s6 + $0x8] sm:$0xf]
        %v2654 = vld [vmem:[%s6 + $0xc] sm:$0xff]
        %v2655 = vld [vmem:[%s6 + $0x14] sm:$0xf]
        %v2656 = vld [vmem:[%s6 + $0x18] sm:$0xff]
        %v2657 = vld [vmem:[%s6 + $0x20] sm:$0xf]
        %v2658 = vld [vmem:[%s6 + $0x24] sm:$0xff]
        %v2659 = vld [vmem:[%s6 + $0x2c] sm:$0xf]
        %v2660 = vld [vmem:[%s6 + $0x30] sm:$0xff]
        %v2661 = vld [vmem:[%s6 + $0x38] sm:$0xf]
        %v2662 = vld [vmem:[%s6 + $0x3c] sm:$0xff]
        %v2663 = vld [vmem:[%s6 + $0x44] sm:$0xf]
        %v2664 = vld [vmem:[%s6 + $0x48] sm:$0xff]
        %v2665 = vld [vmem:[%s6 + $0x50] sm:$0xf]
        %v2666 = vld [vmem:[%s6 + $0x54] sm:$0xff]
        %v2667 = vld [vmem:[%s6 + $0x5c] sm:$0xf]
        %v2668 = vld [vmem:[%s6 + $0x60] sm:$0xff]
        %v2669 = vld [vmem:[%s6 + $0x68] sm:$0xf]
        %v2670 = vld [vmem:[%s6 + $0x6c] sm:$0xff]
        %v2671 = vld [vmem:[%s6 + $0x74] sm:$0xf]
        %v2672 = vld [vmem:[%s6 + $0x78] sm:$0xff]
        %v2673 = vld [vmem:[%s6 + $0x80] sm:$0xf]
        %v2674 = vld [vmem:[%s6 + $0x84] sm:$0xff]
        %v2675 = vld [vmem:[%s6 + $0x8c] sm:$0xf]
        %v2676 = vld [vmem:[%s6 + $0x90] sm:$0xff]
        %v2677 = vld [vmem:[%s6 + $0x98] sm:$0xf]
        %v2678 = vld [vmem:[%s6 + $0x9c] sm:$0xff]
        %v2679 = vld [vmem:[%s6 + $0xa4] sm:$0xf]
        %v2680 = vld [vmem:[%s6 + $0xa8] sm:$0xff]
        %v2681 = vld [vmem:[%s6 + $0xb0] sm:$0xf]
        %v2682 = vld [vmem:[%s6 + $0xb4] sm:$0xff]
        %v2683 = vld [vmem:[%s6 + $0xbc] sm:$0xf]
        %v2684 = vld [vmem:[%s7] sm:$0x7]
        %v2686 = vperm.slane %v2684, 0
        %v2687 = vperm.slane %v2684, 1
        %v2688 = vperm.slane %v2684, 2
        %v2700 = vunpack.c.l.b16 %v2644
        %v2701 = vunpack.c.l.b16 %v2645
        %v2702 = vunpack.c.l.b16 %v2646
        %v2703 = vunpack.c.l.b16 %v2647
        %v2704 = vunpack.c.l.b16 %v2648
        %v2705 = vunpack.c.l.b16 %v2649
        %v2706 = vunpack.c.l.b16 %v2650
        %v2707 = vunpack.c.l.b16 %v2651
        %v2708 = vrot.slane %v2701, 7
        %v2709 = vsel %vm2173, %v2708, %v2700
        %v2710 = vrot.slane %v2702, 6
        %v2711 = vsel %vm2177, %v2710, %v2709
        %v2712 = vrot.slane %v2703, 5
        %v2713 = vsel %vm2181, %v2712, %v2711
        %v2714 = vrot.slane %v2704, 4
        %vm2715 = vcmask 1044484
        %v2716 = vsel %vm2715, %v2714, %v2713
        %v2717 = vrot.slane %v2705, 3
        %vm2718 = vcmask 1045509
        %v2719 = vsel %vm2718, %v2717, %v2716
        %v2720 = vrot.slane %v2706, 2
        %vm2721 = vcmask 1046534
        %v2722 = vsel %vm2721, %v2720, %v2719
        %v2723 = vrot.slane %v2707, 1
        %vm2724 = vcmask 1047559
        %v2725 = vsel %vm2724, %v2723, %v2722
        %v2726 = vpack.c.b16 %v2725, %v2725
        %v2760 = vunpack.c.l.b16 %v2652
        %v2761 = vunpack.c.h.b16 %v2652
        %v2762 = vunpack.c.l.b16 %v2653
        %v2763 = vunpack.c.l.b16 %v2654
        %v2764 = vunpack.c.h.b16 %v2654
        %v2765 = vunpack.c.l.b16 %v2655
        %v2766 = vunpack.c.l.b16 %v2656
        %v2767 = vunpack.c.h.b16 %v2656
        %v2768 = vunpack.c.l.b16 %v2657
        %v2769 = vunpack.c.l.b16 %v2658
        %v2770 = vunpack.c.h.b16 %v2658
        %v2771 = vunpack.c.l.b16 %v2659
        %v2772 = vunpack.c.l.b16 %v2660
        %v2773 = vunpack.c.h.b16 %v2660
        %v2774 = vunpack.c.l.b16 %v2661
        %v2775 = vunpack.c.l.b16 %v2662
        %v2776 = vunpack.c.h.b16 %v2662
        %v2777 = vunpack.c.l.b16 %v2663
        %v2778 = vunpack.c.l.b16 %v2664
        %v2779 = vunpack.c.h.b16 %v2664
        %v2780 = vunpack.c.l.b16 %v2665
        %v2781 = vunpack.c.l.b16 %v2666
        %v2782 = vunpack.c.h.b16 %v2666
        %v2783 = vunpack.c.l.b16 %v2667
        %v2784 = vunpack.c.l.b16 %v2668
        %v2785 = vunpack.c.h.b16 %v2668
        %v2786 = vunpack.c.l.b16 %v2669
        %v2787 = vunpack.c.l.b16 %v2670
        %v2788 = vunpack.c.h.b16 %v2670
        %v2789 = vunpack.c.l.b16 %v2671
        %v2790 = vunpack.c.l.b16 %v2672
        %v2791 = vunpack.c.h.b16 %v2672
        %v2792 = vunpack.c.l.b16 %v2673
        %v2793 = vunpack.c.l.b16 %v2674
        %v2794 = vunpack.c.h.b16 %v2674
        %v2795 = vunpack.c.l.b16 %v2675
        %v2796 = vunpack.c.l.b16 %v2676
        %v2797 = vunpack.c.h.b16 %v2676
        %v2798 = vunpack.c.l.b16 %v2677
        %v2799 = vunpack.c.l.b16 %v2678
        %v2800 = vunpack.c.h.b16 %v2678
        %v2801 = vunpack.c.l.b16 %v2679
        %v2802 = vunpack.c.l.b16 %v2680
        %v2803 = vunpack.c.h.b16 %v2680
        %v2804 = vunpack.c.l.b16 %v2681
        %v2805 = vunpack.c.l.b16 %v2682
        %v2806 = vunpack.c.h.b16 %v2682
        %v2807 = vunpack.c.l.b16 %v2683
        %v2808 = vpack.c.b16 %v2763, %v2760
        %v2809 = vpack.c.b16 %v2764, %v2761
        %v2810 = vpack.c.b16 %v2765, %v2762
        %v2811 = vpack.c.b16 %v2769, %v2766
        %v2812 = vpack.c.b16 %v2770, %v2767
        %v2813 = vpack.c.b16 %v2771, %v2768
        %v2814 = vpack.c.b16 %v2775, %v2772
        %v2815 = vpack.c.b16 %v2776, %v2773
        %v2816 = vpack.c.b16 %v2777, %v2774
        %v2817 = vpack.c.b16 %v2781, %v2778
        %v2818 = vpack.c.b16 %v2782, %v2779
        %v2819 = vpack.c.b16 %v2783, %v2780
        %v2820 = vpack.c.b16 %v2787, %v2784
        %v2821 = vpack.c.b16 %v2788, %v2785
        %v2822 = vpack.c.b16 %v2789, %v2786
        %v2823 = vpack.c.b16 %v2793, %v2790
        %v2824 = vpack.c.b16 %v2794, %v2791
        %v2825 = vpack.c.b16 %v2795, %v2792
        %v2826 = vpack.c.b16 %v2799, %v2796
        %v2827 = vpack.c.b16 %v2800, %v2797
        %v2828 = vpack.c.b16 %v2801, %v2798
        %v2829 = vpack.c.b16 %v2805, %v2802
        %v2830 = vpack.c.b16 %v2806, %v2803
        %v2831 = vpack.c.b16 %v2807, %v2804
        %2856 = vmatpush.bf16.msra.mxu0 %v2829
        %2857 = vmatpush.bf16.msra.mxu0 %v2826
        %2858 = vmatpush.bf16.msra.mxu0 %v2823
        %2859 = vmatpush.bf16.msra.mxu0 %v2820
        %2860 = vmatpush.bf16.msra.mxu0 %v2817
        %2861 = vmatpush.bf16.msra.mxu0 %v2814
        %2862 = vmatpush.bf16.msra.mxu0 %v2811
        %2863 = vmatpush.bf16.msra.mxu0 %v2808
        %2864 = vmatmul.bf16.gmra.mxu0 %v2726
        %v2865 = vpop.f32.mrf.mxu0
        %v2866 = vadd.f32 %v2686, %v2865
        %v2867 = vpop.f32.mrf.mxu0
        %2868 = vdwg.mxu0
        %2869 = vmatpush.bf16.msra.mxu0 %v2830
        %2870 = vmatpush.bf16.msra.mxu0 %v2827
        %2871 = vmatpush.bf16.msra.mxu0 %v2824
        %2872 = vmatpush.bf16.msra.mxu0 %v2821
        %2873 = vmatpush.bf16.msra.mxu0 %v2818
        %2874 = vmatpush.bf16.msra.mxu0 %v2815
        %2875 = vmatpush.bf16.msra.mxu0 %v2812
        %2876 = vmatpush.bf16.msra.mxu0 %v2809
        %2877 = vmatmul.bf16.gmra.mxu0 %v2726
        %v2878 = vpop.f32.mrf.mxu0
        %v2879 = vadd.f32 %v2687, %v2878
        %v2880 = vpop.f32.mrf.mxu0
        %2881 = vdwg.mxu0
        %2882 = vmatpush.bf16.msra.mxu0 %v2831
        %2883 = vmatpush.bf16.msra.mxu0 %v2828
        %2884 = vmatpush.bf16.msra.mxu0 %v2825
        %2885 = vmatpush.bf16.msra.mxu0 %v2822
        %2886 = vmatpush.bf16.msra.mxu0 %v2819
        %2887 = vmatpush.bf16.msra.mxu0 %v2816
        %2888 = vmatpush.bf16.msra.mxu0 %v2813
        %2889 = vmatpush.bf16.msra.mxu0 %v2810
        %2890 = vmatmul.bf16.gmra.mxu0 %v2726
        %v2891 = vpop.f32.mrf.mxu0
        %v2892 = vadd.f32 %v2688, %v2891
        %v2893 = vpop.f32.mrf.mxu0
        %2894 = vdwg.mxu0
        %2896 = vrot.lane.b32.xlu0 %v2866, 96
        %v2897 = vpop.permute.xlu0 %2896
        %2899 = vrot.lane.b32.xlu0 %v2866, 64
        %v2900 = vpop.permute.xlu0 %2899
        %2902 = vrot.lane.b32.xlu0 %v2866, 32
        %v2903 = vpop.permute.xlu0 %2902
        %v2905 = vpack.c.bf16 %v2866, %v2866
        %v2906 = vpack.c.bf16 %v2897, %v2897
        %v2907 = vpack.c.bf16 %v2900, %v2900
        %v2908 = vpack.c.bf16 %v2903, %v2903
        %2910 = vrot.lane.b32.xlu0 %v2879, 96
        %v2911 = vpop.permute.xlu0 %2910
        %2913 = vrot.lane.b32.xlu0 %v2879, 64
        %v2914 = vpop.permute.xlu0 %2913
        %2916 = vrot.lane.b32.xlu0 %v2879, 32
        %v2917 = vpop.permute.xlu0 %2916
        %v2919 = vpack.c.bf16 %v2879, %v2879
        %v2920 = vpack.c.bf16 %v2911, %v2911
        %v2921 = vpack.c.bf16 %v2914, %v2914
        %v2922 = vpack.c.bf16 %v2917, %v2917
        %2924 = vrot.lane.b32.xlu0 %v2892, 96
        %v2925 = vpop.permute.xlu0 %2924
        %2927 = vrot.lane.b32.xlu0 %v2892, 64
        %v2928 = vpop.permute.xlu0 %2927
        %2930 = vrot.lane.b32.xlu0 %v2892, 32
        %v2931 = vpop.permute.xlu0 %2930
        %v2933 = vpack.c.bf16 %v2892, %v2892
        %v2934 = vpack.c.bf16 %v2925, %v2925
        %v2935 = vpack.c.bf16 %v2928, %v2928
        %v2936 = vpack.c.bf16 %v2931, %v2931
        %vm2937 = vcmask 261120
        %v2939 = vsel %vm2937, %v2905, 0
        %v2942 = vsel %vm2937, %v2919, 0
        %2944 = vmatpush.bf16.xpose.msra.mxu0 0
        %2945 = vmatpush.bf16.xpose.msra.mxu0 0
        %2946 = vmatpush.bf16.xpose.msra.mxu0 0
        %2947 = vmatpush.bf16.xpose.msra.mxu0 0
        %2948 = vmatpush.bf16.xpose.msra.mxu0 0
        %2949 = vmatpush.bf16.xpose.msra.mxu0 0
        %2950 = vmatpush.bf16.xpose.msra.mxu0 0
        %2951 = vmatpush.bf16.xpose.msra.mxu0 %v2942
        %2952 = vmatmul.bf16.gmra.mxu0 %v2939
        %v2953 = vpop.f32.mrf.mxu0
        %v2954 = vadd.f32 0.0, %v2953
        %v2955 = vpop.f32.mrf.mxu0
        %2956 = vdwg.mxu0
        %v2958 = vsel %vm2937, %v2906, 0
        %v2961 = vsel %vm2937, %v2920, 0
        %2963 = vmatpush.bf16.xpose.msra.mxu0 0
        %2964 = vmatpush.bf16.xpose.msra.mxu0 0
        %2965 = vmatpush.bf16.xpose.msra.mxu0 0
        %2966 = vmatpush.bf16.xpose.msra.mxu0 0
        %2967 = vmatpush.bf16.xpose.msra.mxu0 0
        %2968 = vmatpush.bf16.xpose.msra.mxu0 0
        %2969 = vmatpush.bf16.xpose.msra.mxu0 0
        %2970 = vmatpush.bf16.xpose.msra.mxu0 %v2961
        %2971 = vmatmul.bf16.gmra.mxu0 %v2958
        %v2972 = vpop.f32.mrf.mxu0
        %v2973 = vadd.f32 0.0, %v2972
        %v2974 = vpop.f32.mrf.mxu0
        %2975 = vdwg.mxu0
        %v2977 = vsel %vm2937, %v2907, 0
        %v2980 = vsel %vm2937, %v2921, 0
        %2982 = vmatpush.bf16.xpose.msra.mxu0 0
        %2983 = vmatpush.bf16.xpose.msra.mxu0 0
        %2984 = vmatpush.bf16.xpose.msra.mxu0 0
        %2985 = vmatpush.bf16.xpose.msra.mxu0 0
        %2986 = vmatpush.bf16.xpose.msra.mxu0 0
        %2987 = vmatpush.bf16.xpose.msra.mxu0 0
        %2988 = vmatpush.bf16.xpose.msra.mxu0 0
        %2989 = vmatpush.bf16.xpose.msra.mxu0 %v2980
        %2990 = vmatmul.bf16.gmra.mxu0 %v2977
        %v2991 = vpop.f32.mrf.mxu0
        %v2992 = vadd.f32 0.0, %v2991
        %v2993 = vpop.f32.mrf.mxu0
        %2994 = vdwg.mxu0
        %v2996 = vsel %vm2937, %v2908, 0
        %v2999 = vsel %vm2937, %v2922, 0
        %3001 = vmatpush.bf16.xpose.msra.mxu0 0
        %3002 = vmatpush.bf16.xpose.msra.mxu0 0
        %3003 = vmatpush.bf16.xpose.msra.mxu0 0
        %3004 = vmatpush.bf16.xpose.msra.mxu0 0
        %3005 = vmatpush.bf16.xpose.msra.mxu0 0
        %3006 = vmatpush.bf16.xpose.msra.mxu0 0
        %3007 = vmatpush.bf16.xpose.msra.mxu0 0
        %3008 = vmatpush.bf16.xpose.msra.mxu0 %v2999
        %3009 = vmatmul.bf16.gmra.mxu0 %v2996
        %v3010 = vpop.f32.mrf.mxu0
        %v3011 = vadd.f32 0.0, %v3010
        %v3012 = vpop.f32.mrf.mxu0
        %3013 = vdwg.mxu0
        %vm3014 = vcmask 64512
        %v3015 = vsel %vm3014, %v2954, -inf
        %3016 = vmax.xlane.f32.xlu0 %v3015
        %v3017 = vpop.xlane.xlu0 %3016
        %v3018 = vsel %vm3014, %v2973, -inf
        %3019 = vmax.xlane.f32.xlu0 %v3018
        %v3020 = vpop.xlane.xlu0 %3019
        %v3021 = vsel %vm3014, %v2992, -inf
        %3022 = vmax.xlane.f32.xlu0 %v3021
        %v3023 = vpop.xlane.xlu0 %3022
        %v3024 = vsel %vm3014, %v3011, -inf
        %3025 = vmax.xlane.f32.xlu0 %v3024
        %v3026 = vpop.xlane.xlu0 %3025
        %v3027 = vsub.f32 %v2954, %v3017
        %v3028 = vsub.f32 %v2973, %v3020
        %v3029 = vsub.f32 %v2992, %v3023
        %v3030 = vsub.f32 %v3011, %v3026
        %v3031 = vmul.f32 %v3027, 1.442695
        %v3032 = vpow.pop %v3031
        %v3033 = vmul.f32 %v3028, 1.442695
        %v3034 = vpow.pop %v3033
        %v3035 = vmul.f32 %v3029, 1.442695
        %v3036 = vpow.pop %v3035
        %v3037 = vmul.f32 %v3030, 1.442695
        %v3038 = vpow.pop %v3037
        %v3039 = vsel %vm3014, %v3032, 0.0
        %3040 = vadd.xlane.f32.xlu0 %v3039
        %v3041 = vpop.xlane.xlu0 %3040
        %v3042 = vsel %vm3014, %v3034, 0.0
        %3043 = vadd.xlane.f32.xlu0 %v3042
        %v3044 = vpop.xlane.xlu0 %3043
        %v3045 = vsel %vm3014, %v3036, 0.0
        %3046 = vadd.xlane.f32.xlu0 %v3045
        %v3047 = vpop.xlane.xlu0 %3046
        %v3048 = vsel %vm3014, %v3038, 0.0
        %3049 = vadd.xlane.f32.xlu0 %v3048
        %v3050 = vpop.xlane.xlu0 %3049
        %v3051 = vrcp.pop %v3041
        %v3052 = vrcp.pop %v3044
        %v3053 = vrcp.pop %v3047
        %v3054 = vrcp.pop %v3050
        %v3055 = vmul.f32 %v3032, %v3051
        %v3056 = vmul.f32 %v3034, %v3052
        %v3057 = vmul.f32 %v3036, %v3053
        %v3058 = vmul.f32 %v3038, %v3054
        %v3059 = vpack.c.bf16 %v3055, %v3055
        %v3060 = vpack.c.bf16 %v3056, %v3056
        %v3061 = vpack.c.bf16 %v3057, %v3057
        %v3062 = vpack.c.bf16 %v3058, %v3058
        %v3064 = vsel %vm3014, %v3059, 0
        %vm3066 = vcmask 1043456
        %v3068 = vsel %vm3066, %v2933, 0
        %3070 = vmatpush.bf16.msra.mxu0 0
        %3071 = vmatpush.bf16.msra.mxu0 0
        %3072 = vmatpush.bf16.msra.mxu0 0
        %3073 = vmatpush.bf16.msra.mxu0 0
        %3074 = vmatpush.bf16.msra.mxu0 0
        %3075 = vmatpush.bf16.msra.mxu0 0
        %3076 = vmatpush.bf16.msra.mxu0 0
        %3077 = vmatpush.bf16.msra.mxu0 %v3068
        %3078 = vmatmul.bf16.gmra.mxu0 %v3064
        %v3079 = vpop.f32.mrf.mxu0
        %v3080 = vadd.f32 0.0, %v3079
        %v3081 = vpop.f32.mrf.mxu0
        %3082 = vdwg.mxu0
        %v3084 = vsel %vm3014, %v3060, 0
        %v3087 = vsel %vm3066, %v2934, 0
        %3089 = vmatpush.bf16.msra.mxu0 0
        %3090 = vmatpush.bf16.msra.mxu0 0
        %3091 = vmatpush.bf16.msra.mxu0 0
        %3092 = vmatpush.bf16.msra.mxu0 0
        %3093 = vmatpush.bf16.msra.mxu0 0
        %3094 = vmatpush.bf16.msra.mxu0 0
        %3095 = vmatpush.bf16.msra.mxu0 0
        %3096 = vmatpush.bf16.msra.mxu0 %v3087
        %3097 = vmatmul.bf16.gmra.mxu0 %v3084
        %v3098 = vpop.f32.mrf.mxu0
        %v3099 = vadd.f32 0.0, %v3098
        %v3100 = vpop.f32.mrf.mxu0
        %3101 = vdwg.mxu0
        %v3103 = vsel %vm3014, %v3061, 0
        %v3106 = vsel %vm3066, %v2935, 0
        %3108 = vmatpush.bf16.msra.mxu0 0
        %3109 = vmatpush.bf16.msra.mxu0 0
        %3110 = vmatpush.bf16.msra.mxu0 0
        %3111 = vmatpush.bf16.msra.mxu0 0
        %3112 = vmatpush.bf16.msra.mxu0 0
        %3113 = vmatpush.bf16.msra.mxu0 0
        %3114 = vmatpush.bf16.msra.mxu0 0
        %3115 = vmatpush.bf16.msra.mxu0 %v3106
        %3116 = vmatmul.bf16.gmra.mxu0 %v3103
        %v3117 = vpop.f32.mrf.mxu0
        %v3118 = vadd.f32 0.0, %v3117
        %v3119 = vpop.f32.mrf.mxu0
        %3120 = vdwg.mxu0
        %v3122 = vsel %vm3014, %v3062, 0
        %v3125 = vsel %vm3066, %v2936, 0
        %3127 = vmatpush.bf16.msra.mxu0 0
        %3128 = vmatpush.bf16.msra.mxu0 0
        %3129 = vmatpush.bf16.msra.mxu0 0
        %3130 = vmatpush.bf16.msra.mxu0 0
        %3131 = vmatpush.bf16.msra.mxu0 0
        %3132 = vmatpush.bf16.msra.mxu0 0
        %3133 = vmatpush.bf16.msra.mxu0 0
        %3134 = vmatpush.bf16.msra.mxu0 %v3125
        %3135 = vmatmul.bf16.gmra.mxu0 %v3122
        %v3136 = vpop.f32.mrf.mxu0
        %v3137 = vadd.f32 0.0, %v3136
        %v3138 = vpop.f32.mrf.mxu0
        %3139 = vdwg.mxu0
        %v3140 = vpack.c.bf16 %v3080, %v3080
        %v3141 = vpack.c.bf16 %v3099, %v3099
        %v3142 = vpack.c.bf16 %v3118, %v3118
        %v3143 = vpack.c.bf16 %v3137, %v3137
        %v3144 = vld [vmem:[%s8] sm:$0xf]
        %v3145 = vld [vmem:[%s8 + $0x4] sm:$0xf]
        %v3146 = vld [vmem:[%s8 + $0x8] sm:$0xf]
        %v3147 = vld [vmem:[%s8 + $0xc] sm:$0xf]
        %v3148 = vld [vmem:[%s8 + $0x10] sm:$0xf]
        %v3149 = vld [vmem:[%s8 + $0x14] sm:$0xf]
        %v3150 = vld [vmem:[%s8 + $0x18] sm:$0xf]
        %v3151 = vld [vmem:[%s8 + $0x1c] sm:$0xf]
        %v3152 = vld [vmem:[%s8 + $0x20] sm:$0xf]
        %v3153 = vld [vmem:[%s8 + $0x24] sm:$0xf]
        %v3154 = vld [vmem:[%s8 + $0x28] sm:$0xf]
        %v3155 = vld [vmem:[%s8 + $0x2c] sm:$0xf]
        %v3156 = vld [vmem:[%s8 + $0x30] sm:$0xf]
        %v3157 = vld [vmem:[%s8 + $0x34] sm:$0xf]
        %v3158 = vld [vmem:[%s8 + $0x38] sm:$0xf]
        %v3159 = vld [vmem:[%s8 + $0x3c] sm:$0xf]
        %v3164 = vunpack.c.l.b16 %v3144
        %v3165 = vunpack.c.l.b16 %v3145
        %v3166 = vunpack.c.l.b16 %v3146
        %v3167 = vunpack.c.l.b16 %v3147
        %v3168 = vpack.c.b16 %v3165, %v3164
        %v3169 = vpack.c.b16 %v3167, %v3166
        %v3173 = vsel %vm2937, %v3140, 0
        %3175 = vmatpush.bf16.msra.mxu0 0
        %3176 = vmatpush.bf16.msra.mxu0 0
        %3177 = vmatpush.bf16.msra.mxu0 0
        %3178 = vmatpush.bf16.msra.mxu0 0
        %3179 = vmatpush.bf16.msra.mxu0 0
        %3180 = vmatpush.bf16.msra.mxu0 0
        %3181 = vmatpush.bf16.msra.mxu0 %v3169
        %3182 = vmatpush.bf16.msra.mxu0 %v3168
        %3183 = vmatmul.bf16.gmra.mxu0 %v3173
        %v3184 = vpop.f32.mrf.mxu0
        %v3185 = vadd.f32 0.0, %v3184
        %v3186 = vpop.f32.mrf.mxu0
        %3187 = vdwg.mxu0
        %v3192 = vunpack.c.l.b16 %v3148
        %v3193 = vunpack.c.l.b16 %v3149
        %v3194 = vunpack.c.l.b16 %v3150
        %v3195 = vunpack.c.l.b16 %v3151
        %v3196 = vpack.c.b16 %v3193, %v3192
        %v3197 = vpack.c.b16 %v3195, %v3194
        %v3201 = vsel %vm2937, %v3141, 0
        %3203 = vmatpush.bf16.msra.mxu0 0
        %3204 = vmatpush.bf16.msra.mxu0 0
        %3205 = vmatpush.bf16.msra.mxu0 0
        %3206 = vmatpush.bf16.msra.mxu0 0
        %3207 = vmatpush.bf16.msra.mxu0 0
        %3208 = vmatpush.bf16.msra.mxu0 0
        %3209 = vmatpush.bf16.msra.mxu0 %v3197
        %3210 = vmatpush.bf16.msra.mxu0 %v3196
        %3211 = vmatmul.bf16.gmra.mxu0 %v3201
        %v3212 = vpop.f32.mrf.mxu0
        %v3213 = vadd.f32 0.0, %v3212
        %v3214 = vpop.f32.mrf.mxu0
        %3215 = vdwg.mxu0
        %v3220 = vunpack.c.l.b16 %v3152
        %v3221 = vunpack.c.l.b16 %v3153
        %v3222 = vunpack.c.l.b16 %v3154
        %v3223 = vunpack.c.l.b16 %v3155
        %v3224 = vpack.c.b16 %v3221, %v3220
        %v3225 = vpack.c.b16 %v3223, %v3222
        %v3229 = vsel %vm2937, %v3142, 0
        %3231 = vmatpush.bf16.msra.mxu0 0
        %3232 = vmatpush.bf16.msra.mxu0 0
        %3233 = vmatpush.bf16.msra.mxu0 0
        %3234 = vmatpush.bf16.msra.mxu0 0
        %3235 = vmatpush.bf16.msra.mxu0 0
        %3236 = vmatpush.bf16.msra.mxu0 0
        %3237 = vmatpush.bf16.msra.mxu0 %v3225
        %3238 = vmatpush.bf16.msra.mxu0 %v3224
        %3239 = vmatmul.bf16.gmra.mxu0 %v3229
        %v3240 = vpop.f32.mrf.mxu0
        %v3241 = vadd.f32 0.0, %v3240
        %v3242 = vpop.f32.mrf.mxu0
        %3243 = vdwg.mxu0
        %v3248 = vunpack.c.l.b16 %v3156
        %v3249 = vunpack.c.l.b16 %v3157
        %v3250 = vunpack.c.l.b16 %v3158
        %v3251 = vunpack.c.l.b16 %v3159
        %v3252 = vpack.c.b16 %v3249, %v3248
        %v3253 = vpack.c.b16 %v3251, %v3250
        %v3257 = vsel %vm2937, %v3143, 0
        %3259 = vmatpush.bf16.msra.mxu0 0
        %3260 = vmatpush.bf16.msra.mxu0 0
        %3261 = vmatpush.bf16.msra.mxu0 0
        %3262 = vmatpush.bf16.msra.mxu0 0
        %3263 = vmatpush.bf16.msra.mxu0 0
        %3264 = vmatpush.bf16.msra.mxu0 0
        %3265 = vmatpush.bf16.msra.mxu0 %v3253
        %3266 = vmatpush.bf16.msra.mxu0 %v3252
        %3267 = vmatmul.bf16.gmra.mxu0 %v3257
        %v3268 = vpop.f32.mrf.mxu0
        %v3269 = vadd.f32 0.0, %v3268
        %v3270 = vpop.f32.mrf.mxu0
        %3271 = vdwg.mxu0
        %v3272 = vadd.f32 %v3185, %v3213
        %v3273 = vadd.f32 %v3272, %v3241
        %v3274 = vadd.f32 %v3273, %v3269
        %v3275 = vld [vmem:[%s9] sm:$0x1]
        %v3277 = vperm.slane %v3275, 0
        %v3279 = vadd.f32 %v3274, %v3277
        %v3281 = vrot.slane %v3279, 1
        %v3282 = vrot.slane %v3279, 2
        %v3283 = vrot.slane %v3279, 3
        %v3284 = vrot.slane %v3279, 4
        %v3285 = vrot.slane %v3279, 5
        %v3286 = vrot.slane %v3279, 6
        %v3287 = vrot.slane %v3279, 7
        %v3296 = vadd.f32 %v2636, %v3279
        %v3297 = vadd.f32 %v2637, %v3281
        %v3298 = vadd.f32 %v2638, %v3282
        %v3299 = vadd.f32 %v2639, %v3283
        %v3300 = vadd.f32 %v2640, %v3284
        %v3301 = vadd.f32 %v2641, %v3285
        %v3302 = vadd.f32 %v2642, %v3286
        %v3303 = vadd.f32 %v2643, %v3287
        %v3304 = vld [vmem:[%s10] sm:$0x1]
        %v3305 = vld [vmem:[%s11] sm:$0x1]
        %v3314 = vrot.slane %v3297, 7
        %v3315 = vsel %vm2173, %v3314, %v3296
        %v3316 = vrot.slane %v3298, 6
        %v3317 = vsel %vm2177, %v3316, %v3315
        %v3318 = vrot.slane %v3299, 5
        %v3319 = vsel %vm2181, %v3318, %v3317
        %v3320 = vrot.slane %v3300, 4
        %v3321 = vsel %vm2715, %v3320, %v3319
        %v3322 = vrot.slane %v3301, 3
        %v3323 = vsel %vm2718, %v3322, %v3321
        %v3324 = vrot.slane %v3302, 2
        %v3325 = vsel %vm2721, %v3324, %v3323
        %v3326 = vrot.slane %v3303, 1
        %v3327 = vsel %vm2724, %v3326, %v3325
        %3329 = vadd.xlane.f32.xlu0 %v3327
        %v3330 = vpop.xlane.xlu0 %3329
        %v3331 = vrcp.pop 128.0
        %v3332 = vmul.f32 128.0, %v3331
        %v3333 = vsub.f32 1.0, %v3332
        %v3334 = vmul.f32 %v3331, %v3333
        %v3335 = vadd.f32 %v3331, %v3334
        %vm3336 = vweird.f32 %v3331
        %v3337 = vsel %vm3336, %v3331, %v3335
        %v3338 = vmul.f32 %v3330, %v3337
        %v3340 = vrot.slane %v3338, 1
        %v3341 = vrot.slane %v3338, 2
        %v3342 = vrot.slane %v3338, 3
        %v3343 = vrot.slane %v3338, 4
        %v3344 = vrot.slane %v3338, 5
        %v3345 = vrot.slane %v3338, 6
        %v3346 = vrot.slane %v3338, 7
        %v3355 = vsub.f32 %v3296, %v3338
        %v3356 = vsub.f32 %v3297, %v3340
        %v3357 = vsub.f32 %v3298, %v3341
        %v3358 = vsub.f32 %v3299, %v3342
        %v3359 = vsub.f32 %v3300, %v3343
        %v3360 = vsub.f32 %v3301, %v3344
        %v3361 = vsub.f32 %v3302, %v3345
        %v3362 = vsub.f32 %v3303, %v3346
        %v3363 = vmul.f32 %v3355, %v3355
        %v3364 = vmul.f32 %v3356, %v3356
        %v3365 = vmul.f32 %v3357, %v3357
        %v3366 = vmul.f32 %v3358, %v3358
        %v3367 = vmul.f32 %v3359, %v3359
        %v3368 = vmul.f32 %v3360, %v3360
        %v3369 = vmul.f32 %v3361, %v3361
        %v3370 = vmul.f32 %v3362, %v3362
        %v3379 = vrot.slane %v3364, 7
        %v3380 = vsel %vm2173, %v3379, %v3363
        %v3381 = vrot.slane %v3365, 6
        %v3382 = vsel %vm2177, %v3381, %v3380
        %v3383 = vrot.slane %v3366, 5
        %v3384 = vsel %vm2181, %v3383, %v3382
        %v3385 = vrot.slane %v3367, 4
        %v3386 = vsel %vm2715, %v3385, %v3384
        %v3387 = vrot.slane %v3368, 3
        %v3388 = vsel %vm2718, %v3387, %v3386
        %v3389 = vrot.slane %v3369, 2
        %v3390 = vsel %vm2721, %v3389, %v3388
        %v3391 = vrot.slane %v3370, 1
        %v3392 = vsel %vm2724, %v3391, %v3390
        %3394 = vadd.xlane.f32.xlu0 %v3392
        %v3395 = vpop.xlane.xlu0 %3394
        %v3396 = vmul.f32 %v3395, %v3337
        %v3397 = vadd.f32 %v3396, 1e-05
        %v3398 = vrsqrt.pop %v3397
        %v3399 = vmul.f32 %v3398, %v3397
        %v3400 = vmul.f32 %v3399, %v3398
        %v3401 = vmul.f32 0.5, %v3400
        %v3402 = vsub.f32 1.5, %v3401
        %v3403 = vmul.f32 %v3398, %v3402
        %vm3404 = vweird.f32 %v3397
        %vm3405 = vweird.f32 %v3398
        %vm3406 = vmor %vm3404, %vm3405
        %v3407 = vsel %vm3406, %v3398, %v3403
        %v3409 = vrot.slane %v3407, 1
        %v3410 = vrot.slane %v3407, 2
        %v3411 = vrot.slane %v3407, 3
        %v3412 = vrot.slane %v3407, 4
        %v3413 = vrot.slane %v3407, 5
        %v3414 = vrot.slane %v3407, 6
        %v3415 = vrot.slane %v3407, 7
        %v3424 = vmul.f32 %v3355, %v3407
        %v3425 = vmul.f32 %v3356, %v3409
        %v3426 = vmul.f32 %v3357, %v3410
        %v3427 = vmul.f32 %v3358, %v3411
        %v3428 = vmul.f32 %v3359, %v3412
        %v3429 = vmul.f32 %v3360, %v3413
        %v3430 = vmul.f32 %v3361, %v3414
        %v3431 = vmul.f32 %v3362, %v3415
        %v3433 = vperm.slane %v3304, 0
        %v3435 = vmul.f32 %v3424, %v3433
        %v3436 = vmul.f32 %v3425, %v3433
        %v3437 = vmul.f32 %v3426, %v3433
        %v3438 = vmul.f32 %v3427, %v3433
        %v3439 = vmul.f32 %v3428, %v3433
        %v3440 = vmul.f32 %v3429, %v3433
        %v3441 = vmul.f32 %v3430, %v3433
        %v3442 = vmul.f32 %v3431, %v3433
        %v3444 = vperm.slane %v3305, 0
        %v3446 = vadd.f32 %v3435, %v3444
        %v3447 = vadd.f32 %v3436, %v3444
        %v3448 = vadd.f32 %v3437, %v3444
        %v3449 = vadd.f32 %v3438, %v3444
        %v3450 = vadd.f32 %v3439, %v3444
        %v3451 = vadd.f32 %v3440, %v3444
        %v3452 = vadd.f32 %v3441, %v3444
        %v3453 = vadd.f32 %v3442, %v3444
        %v3454 = vpack.c.bf16 %v3446, %v3446
        %v3455 = vpack.c.bf16 %v3447, %v3447
        %v3456 = vpack.c.bf16 %v3448, %v3448
        %v3457 = vpack.c.bf16 %v3449, %v3449
        %v3458 = vpack.c.bf16 %v3450, %v3450
        %v3459 = vpack.c.bf16 %v3451, %v3451
        %v3460 = vpack.c.bf16 %v3452, %v3452
        %v3461 = vpack.c.bf16 %v3453, %v3453
        %v3462 = vld [vmem:[%s12] sm:$0xff]
        %v3463 = vld [vmem:[%s12 + $0x8] sm:$0xff]
        %v3464 = vld [vmem:[%s12 + $0x10] sm:$0xff]
        %v3465 = vld [vmem:[%s12 + $0x18] sm:$0xff]
        %v3466 = vld [vmem:[%s12 + $0x20] sm:$0xff]
        %v3467 = vld [vmem:[%s12 + $0x28] sm:$0xff]
        %v3468 = vld [vmem:[%s12 + $0x30] sm:$0xff]
        %v3469 = vld [vmem:[%s12 + $0x38] sm:$0xff]
        %v3470 = vld [vmem:[%s12 + $0x40] sm:$0xff]
        %v3471 = vld [vmem:[%s12 + $0x48] sm:$0xff]
        %v3472 = vld [vmem:[%s12 + $0x50] sm:$0xff]
        %v3473 = vld [vmem:[%s12 + $0x58] sm:$0xff]
        %v3474 = vld [vmem:[%s12 + $0x60] sm:$0xff]
        %v3475 = vld [vmem:[%s12 + $0x68] sm:$0xff]
        %v3476 = vld [vmem:[%s12 + $0x70] sm:$0xff]
        %v3477 = vld [vmem:[%s12 + $0x78] sm:$0xff]
        %v3478 = vld [vmem:[%s13] sm:$0x3]
        %v3480 = vperm.slane %v3478, 0
        %v3481 = vperm.slane %v3478, 1
        %v3492 = vunpack.c.l.b16 %v3454
        %v3493 = vunpack.c.l.b16 %v3455
        %v3494 = vunpack.c.l.b16 %v3456
        %v3495 = vunpack.c.l.b16 %v3457
        %v3496 = vunpack.c.l.b16 %v3458
        %v3497 = vunpack.c.l.b16 %v3459
        %v3498 = vunpack.c.l.b16 %v3460
        %v3499 = vunpack.c.l.b16 %v3461
        %v3500 = vrot.slane %v3493, 7
        %v3501 = vsel %vm2173, %v3500, %v3492
        %v3502 = vrot.slane %v3494, 6
        %v3503 = vsel %vm2177, %v3502, %v3501
        %v3504 = vrot.slane %v3495, 5
        %v3505 = vsel %vm2181, %v3504, %v3503
        %v3506 = vrot.slane %v3496, 4
        %v3507 = vsel %vm2715, %v3506, %v3505
        %v3508 = vrot.slane %v3497, 3
        %v3509 = vsel %vm2718, %v3508, %v3507
        %v3510 = vrot.slane %v3498, 2
        %v3511 = vsel %vm2721, %v3510, %v3509
        %v3512 = vrot.slane %v3499, 1
        %v3513 = vsel %vm2724, %v3512, %v3511
        %v3514 = vpack.c.b16 %v3513, %v3513
        %v3532 = vunpack.c.l.b16 %v3462
        %v3533 = vunpack.c.h.b16 %v3462
        %v3534 = vunpack.c.l.b16 %v3463
        %v3535 = vunpack.c.h.b16 %v3463
        %v3536 = vunpack.c.l.b16 %v3464
        %v3537 = vunpack.c.h.b16 %v3464
        %v3538 = vunpack.c.l.b16 %v3465
        %v3539 = vunpack.c.h.b16 %v3465
        %v3540 = vunpack.c.l.b16 %v3466
        %v3541 = vunpack.c.h.b16 %v3466
        %v3542 = vunpack.c.l.b16 %v3467
        %v3543 = vunpack.c.h.b16 %v3467
        %v3544 = vunpack.c.l.b16 %v3468
        %v3545 = vunpack.c.h.b16 %v3468
        %v3546 = vunpack.c.l.b16 %v3469
        %v3547 = vunpack.c.h.b16 %v3469
        %v3548 = vunpack.c.l.b16 %v3470
        %v3549 = vunpack.c.h.b16 %v3470
        %v3550 = vunpack.c.l.b16 %v3471
        %v3551 = vunpack.c.h.b16 %v3471
        %v3552 = vunpack.c.l.b16 %v3472
        %v3553 = vunpack.c.h.b16 %v3472
        %v3554 = vunpack.c.l.b16 %v3473
        %v3555 = vunpack.c.h.b16 %v3473
        %v3556 = vunpack.c.l.b16 %v3474
        %v3557 = vunpack.c.h.b16 %v3474
        %v3558 = vunpack.c.l.b16 %v3475
        %v3559 = vunpack.c.h.b16 %v3475
        %v3560 = vunpack.c.l.b16 %v3476
        %v3561 = vunpack.c.h.b16 %v3476
        %v3562 = vunpack.c.l.b16 %v3477
        %v3563 = vunpack.c.h.b16 %v3477
        %v3564 = vpack.c.b16 %v3534, %v3532
        %v3565 = vpack.c.b16 %v3535, %v3533
        %v3566 = vpack.c.b16 %v3538, %v3536
        %v3567 = vpack.c.b16 %v3539, %v3537
        %v3568 = vpack.c.b16 %v3542, %v3540
        %v3569 = vpack.c.b16 %v3543, %v3541
        %v3570 = vpack.c.b16 %v3546, %v3544
        %v3571 = vpack.c.b16 %v3547, %v3545
        %v3572 = vpack.c.b16 %v3550, %v3548
        %v3573 = vpack.c.b16 %v3551, %v3549
        %v3574 = vpack.c.b16 %v3554, %v3552
        %v3575 = vpack.c.b16 %v3555, %v3553
        %v3576 = vpack.c.b16 %v3558, %v3556
        %v3577 = vpack.c.b16 %v3559, %v3557
        %v3578 = vpack.c.b16 %v3562, %v3560
        %v3579 = vpack.c.b16 %v3563, %v3561
        %3596 = vmatpush.bf16.msra.mxu0 %v3578
        %3597 = vmatpush.bf16.msra.mxu0 %v3576
        %3598 = vmatpush.bf16.msra.mxu0 %v3574
        %3599 = vmatpush.bf16.msra.mxu0 %v3572
        %3600 = vmatpush.bf16.msra.mxu0 %v3570
        %3601 = vmatpush.bf16.msra.mxu0 %v3568
        %3602 = vmatpush.bf16.msra.mxu0 %v3566
        %3603 = vmatpush.bf16.msra.mxu0 %v3564
        %3604 = vmatmul.bf16.gmra.mxu0 %v3514
        %v3605 = vpop.f32.mrf.mxu0
        %v3606 = vadd.f32 %v3480, %v3605
        %v3607 = vpop.f32.mrf.mxu0
        %3608 = vdwg.mxu0
        %3609 = vmatpush.bf16.msra.mxu0 %v3579
        %3610 = vmatpush.bf16.msra.mxu0 %v3577
        %3611 = vmatpush.bf16.msra.mxu0 %v3575
        %3612 = vmatpush.bf16.msra.mxu0 %v3573
        %3613 = vmatpush.bf16.msra.mxu0 %v3571
        %3614 = vmatpush.bf16.msra.mxu0 %v3569
        %3615 = vmatpush.bf16.msra.mxu0 %v3567
        %3616 = vmatpush.bf16.msra.mxu0 %v3565
        %3617 = vmatmul.bf16.gmra.mxu0 %v3514
        %v3618 = vpop.f32.mrf.mxu0
        %v3619 = vadd.f32 %v3481, %v3618
        %v3620 = vpop.f32.mrf.mxu0
        %3621 = vdwg.mxu0
        %v3622 = vmul.f32 %v3606, 0.5
        %v3623 = vmul.f32 %v3619, 0.5
        %v3624 = vmul.f32 %v3606, 0.70710677
        %v3625 = vmul.f32 %v3619, 0.70710677
        %vm3626 = vcmp.ge.f32.partialorder %v3624, 0.0
        %vm3627 = vcmp.ge.f32.partialorder %v3625, 0.0
        %v3628 = vsel %vm3626, 1.0, -1.0
        %v3629 = vsel %vm3627, 1.0, -1.0
        %v3630 = vand.u32 2147483647, %v3624
        %v3631 = vand.u32 2147483647, %v3625
        %v3632 = vmul.f32 %v3630, 0.3275911
        %v3633 = vmul.f32 %v3631, 0.3275911
        %v3634 = vadd.f32 %v3632, 1.0
        %v3635 = vadd.f32 %v3633, 1.0
        %v3636 = vrcp.pop %v3634
        %v3637 = vmul.f32 %v3634, %v3636
        %v3638 = vsub.f32 1.0, %v3637
        %v3639 = vmul.f32 %v3636, %v3638
        %v3640 = vadd.f32 %v3636, %v3639
        %vm3641 = vweird.f32 %v3634
        %vm3642 = vweird.f32 %v3636
        %vm3643 = vmor %vm3641, %vm3642
        %v3644 = vsel %vm3643, %v3636, %v3640
        %v3645 = vand.u32 2147483647, %v3634
        %vm3646 = vcmp.eq.f32.partialorder %v3645, 8.507059e+37
        %v3647 = vand.u32 %v3634, 2147483648
        %v3648 = vor.u32 1.1754944e-38, %v3647
        %v3649 = vsel %vm3646, %v3648, %v3644
        %v3650 = vmul.f32 1.0, %v3649
        %v3651 = vrcp.pop %v3635
        %v3652 = vmul.f32 %v3635, %v3651
        %v3653 = vsub.f32 1.0, %v3652
        %v3654 = vmul.f32 %v3651, %v3653
        %v3655 = vadd.f32 %v3651, %v3654
        %vm3656 = vweird.f32 %v3635
        %vm3657 = vweird.f32 %v3651
        %vm3658 = vmor %vm3656, %vm3657
        %v3659 = vsel %vm3658, %v3651, %v3655
        %v3660 = vand.u32 2147483647, %v3635
        %vm3661 = vcmp.eq.f32.partialorder %v3660, 8.507059e+37
        %v3662 = vand.u32 %v3635, 2147483648
        %v3663 = vor.u32 1.1754944e-38, %v3662
        %v3664 = vsel %vm3661, %v3663, %v3659
        %v3665 = vmul.f32 1.0, %v3664
        %v3666 = vmul.f32 %v3650, 1.0614054
        %v3667 = vmul.f32 %v3665, 1.0614054
        %v3668 = vadd.f32 %v3666, -1.4531521
        %v3669 = vadd.f32 %v3667, -1.4531521
        %v3670 = vmul.f32 %v3650, %v3668
        %v3671 = vmul.f32 %v3665, %v3669
        %v3672 = vadd.f32 %v3670, 1.4214138
        %v3673 = vadd.f32 %v3671, 1.4214138
        %v3674 = vmul.f32 %v3650, %v3672
        %v3675 = vmul.f32 %v3665, %v3673
        %v3676 = vadd.f32 %v3674, -0.28449672
        %v3677 = vadd.f32 %v3675, -0.28449672
        %v3678 = vmul.f32 %v3650, %v3676
        %v3679 = vmul.f32 %v3665, %v3677
        %v3680 = vadd.f32 %v3678, 0.2548296
        %v3681 = vadd.f32 %v3679, 0.2548296
        %v3682 = vmul.f32 %v3650, %v3680
        %v3683 = vmul.f32 %v3665, %v3681
        %v3684 = vsub.f32 0.0, %v3630
        %v3685 = vsub.f32 0.0, %v3631
        %v3686 = vmul.f32 %v3684, %v3630
        %v3687 = vmul.f32 %v3685, %v3631
        %v3688 = vmul.f32 %v3686, 1.442695
        %v3689 = vpow.pop %v3688
        %v3690 = vmul.f32 %v3687, 1.442695
        %v3691 = vpow.pop %v3690
        %v3692 = vmul.f32 %v3682, %v3689
        %v3693 = vmul.f32 %v3683, %v3691
        %v3694 = vsub.f32 1.0, %v3692
        %v3695 = vsub.f32 1.0, %v3693
        %v3696 = vmul.f32 %v3628, %v3694
        %v3697 = vmul.f32 %v3629, %v3695
        %v3698 = vadd.f32 %v3696, 1.0
        %v3699 = vadd.f32 %v3697, 1.0
        %v3700 = vmul.f32 %v3622, %v3698
        %v3701 = vmul.f32 %v3623, %v3699
        %v3702 = vpack.c.bf16 %v3700, %v3700
        %v3703 = vpack.c.bf16 %v3701, %v3701
        %v3704 = vld [vmem:[%s14] sm:$0xf]
        %v3705 = vld [vmem:[%s14 + $0x4] sm:$0xf]
        %v3706 = vld [vmem:[%s14 + $0x8] sm:$0xf]
        %v3707 = vld [vmem:[%s14 + $0xc] sm:$0xf]
        %v3708 = vld [vmem:[%s14 + $0x10] sm:$0xf]
        %v3709 = vld [vmem:[%s14 + $0x14] sm:$0xf]
        %v3710 = vld [vmem:[%s14 + $0x18] sm:$0xf]
        %v3711 = vld [vmem:[%s14 + $0x1c] sm:$0xf]
        %v3712 = vld [vmem:[%s14 + $0x20] sm:$0xf]
        %v3713 = vld [vmem:[%s14 + $0x24] sm:$0xf]
        %v3714 = vld [vmem:[%s14 + $0x28] sm:$0xf]
        %v3715 = vld [vmem:[%s14 + $0x2c] sm:$0xf]
        %v3716 = vld [vmem:[%s14 + $0x30] sm:$0xf]
        %v3717 = vld [vmem:[%s14 + $0x34] sm:$0xf]
        %v3718 = vld [vmem:[%s14 + $0x38] sm:$0xf]
        %v3719 = vld [vmem:[%s14 + $0x3c] sm:$0xf]
        %v3720 = vld [vmem:[%s14 + $0x40] sm:$0xf]
        %v3721 = vld [vmem:[%s14 + $0x44] sm:$0xf]
        %v3722 = vld [vmem:[%s14 + $0x48] sm:$0xf]
        %v3723 = vld [vmem:[%s14 + $0x4c] sm:$0xf]
        %v3724 = vld [vmem:[%s14 + $0x50] sm:$0xf]
        %v3725 = vld [vmem:[%s14 + $0x54] sm:$0xf]
        %v3726 = vld [vmem:[%s14 + $0x58] sm:$0xf]
        %v3727 = vld [vmem:[%s14 + $0x5c] sm:$0xf]
        %v3728 = vld [vmem:[%s14 + $0x60] sm:$0xf]
        %v3729 = vld [vmem:[%s14 + $0x64] sm:$0xf]
        %v3730 = vld [vmem:[%s14 + $0x68] sm:$0xf]
        %v3731 = vld [vmem:[%s14 + $0x6c] sm:$0xf]
        %v3732 = vld [vmem:[%s14 + $0x70] sm:$0xf]
        %v3733 = vld [vmem:[%s14 + $0x74] sm:$0xf]
        %v3734 = vld [vmem:[%s14 + $0x78] sm:$0xf]
        %v3735 = vld [vmem:[%s14 + $0x7c] sm:$0xf]
        %v3736 = vld [vmem:[%s15] sm:$0x1]
        %v3738 = vperm.slane %v3736, 0
        %v3772 = vunpack.c.l.b16 %v3704
        %v3773 = vunpack.c.l.b16 %v3705
        %v3774 = vunpack.c.l.b16 %v3706
        %v3775 = vunpack.c.l.b16 %v3707
        %v3776 = vunpack.c.l.b16 %v3708
        %v3777 = vunpack.c.l.b16 %v3709
        %v3778 = vunpack.c.l.b16 %v3710
        %v3779 = vunpack.c.l.b16 %v3711
        %v3780 = vunpack.c.l.b16 %v3712
        %v3781 = vunpack.c.l.b16 %v3713
        %v3782 = vunpack.c.l.b16 %v3714
        %v3783 = vunpack.c.l.b16 %v3715
        %v3784 = vunpack.c.l.b16 %v3716
        %v3785 = vunpack.c.l.b16 %v3717
        %v3786 = vunpack.c.l.b16 %v3718
        %v3787 = vunpack.c.l.b16 %v3719
        %v3788 = vunpack.c.l.b16 %v3720
        %v3789 = vunpack.c.l.b16 %v3721
        %v3790 = vunpack.c.l.b16 %v3722
        %v3791 = vunpack.c.l.b16 %v3723
        %v3792 = vunpack.c.l.b16 %v3724
        %v3793 = vunpack.c.l.b16 %v3725
        %v3794 = vunpack.c.l.b16 %v3726
        %v3795 = vunpack.c.l.b16 %v3727
        %v3796 = vunpack.c.l.b16 %v3728
        %v3797 = vunpack.c.l.b16 %v3729
        %v3798 = vunpack.c.l.b16 %v3730
        %v3799 = vunpack.c.l.b16 %v3731
        %v3800 = vunpack.c.l.b16 %v3732
        %v3801 = vunpack.c.l.b16 %v3733
        %v3802 = vunpack.c.l.b16 %v3734
        %v3803 = vunpack.c.l.b16 %v3735
        %v3804 = vpack.c.b16 %v3773, %v3772
        %v3805 = vpack.c.b16 %v3775, %v3774
        %v3806 = vpack.c.b16 %v3777, %v3776
        %v3807 = vpack.c.b16 %v3779, %v3778
        %v3808 = vpack.c.b16 %v3781, %v3780
        %v3809 = vpack.c.b16 %v3783, %v3782
        %v3810 = vpack.c.b16 %v3785, %v3784
        %v3811 = vpack.c.b16 %v3787, %v3786
        %v3812 = vpack.c.b16 %v3789, %v3788
        %v3813 = vpack.c.b16 %v3791, %v3790
        %v3814 = vpack.c.b16 %v3793, %v3792
        %v3815 = vpack.c.b16 %v3795, %v3794
        %v3816 = vpack.c.b16 %v3797, %v3796
        %v3817 = vpack.c.b16 %v3799, %v3798
        %v3818 = vpack.c.b16 %v3801, %v3800
        %v3819 = vpack.c.b16 %v3803, %v3802
        %3836 = vmatpush.bf16.msra.mxu0 %v3811
        %3837 = vmatpush.bf16.msra.mxu0 %v3810
        %3838 = vmatpush.bf16.msra.mxu0 %v3809
        %3839 = vmatpush.bf16.msra.mxu0 %v3808
        %3840 = vmatpush.bf16.msra.mxu0 %v3807
        %3841 = vmatpush.bf16.msra.mxu0 %v3806
        %3842 = vmatpush.bf16.msra.mxu0 %v3805
        %3843 = vmatpush.bf16.msra.mxu0 %v3804
        %3844 = vmatmul.bf16.gmra.mxu0 %v3702
        %v3845 = vpop.f32.mrf.mxu0
        %v3846 = vadd.f32 %v3738, %v3845
        %v3847 = vpop.f32.mrf.mxu0
        %3848 = vdwg.mxu0
        %3849 = vmatpush.bf16.msra.mxu0 %v3819
        %3850 = vmatpush.bf16.msra.mxu0 %v3818
        %3851 = vmatpush.bf16.msra.mxu0 %v3817
        %3852 = vmatpush.bf16.msra.mxu0 %v3816
        %3853 = vmatpush.bf16.msra.mxu0 %v3815
        %3854 = vmatpush.bf16.msra.mxu0 %v3814
        %3855 = vmatpush.bf16.msra.mxu0 %v3813
        %3856 = vmatpush.bf16.msra.mxu0 %v3812
        %3857 = vmatmul.bf16.gmra.mxu0 %v3703
        %v3858 = vpop.f32.mrf.mxu0
        %v3859 = vadd.f32 %v3846, %v3858
        %v3860 = vpop.f32.mrf.mxu0
        %3861 = vdwg.mxu0
        %v3863 = vrot.slane %v3859, 1
        %v3864 = vrot.slane %v3859, 2
        %v3865 = vrot.slane %v3859, 3
        %v3866 = vrot.slane %v3859, 4
        %v3867 = vrot.slane %v3859, 5
        %v3868 = vrot.slane %v3859, 6
        %v3869 = vrot.slane %v3859, 7
        %v3878 = vadd.f32 %v3446, %v3859
        %v3879 = vadd.f32 %v3447, %v3863
        %v3880 = vadd.f32 %v3448, %v3864
        %v3881 = vadd.f32 %v3449, %v3865
        %v3882 = vadd.f32 %v3450, %v3866
        %v3883 = vadd.f32 %v3451, %v3867
        %v3884 = vadd.f32 %v3452, %v3868
        %v3885 = vadd.f32 %v3453, %v3869
        %v3886 = vld [vmem:[%s16] sm:$0x1]
        %v3887 = vld [vmem:[%s17] sm:$0x1]
        %v3896 = vrot.slane %v3879, 7
        %v3897 = vsel %vm2173, %v3896, %v3878
        %v3898 = vrot.slane %v3880, 6
        %v3899 = vsel %vm2177, %v3898, %v3897
        %v3900 = vrot.slane %v3881, 5
        %v3901 = vsel %vm2181, %v3900, %v3899
        %v3902 = vrot.slane %v3882, 4
        %v3903 = vsel %vm2715, %v3902, %v3901
        %v3904 = vrot.slane %v3883, 3
        %v3905 = vsel %vm2718, %v3904, %v3903
        %v3906 = vrot.slane %v3884, 2
        %v3907 = vsel %vm2721, %v3906, %v3905
        %v3908 = vrot.slane %v3885, 1
        %v3909 = vsel %vm2724, %v3908, %v3907
        %3911 = vadd.xlane.f32.xlu0 %v3909
        %v3912 = vpop.xlane.xlu0 %3911
        %v3913 = vmul.f32 %v3912, %v3337
        %v3915 = vrot.slane %v3913, 1
        %v3916 = vrot.slane %v3913, 2
        %v3917 = vrot.slane %v3913, 3
        %v3918 = vrot.slane %v3913, 4
        %v3919 = vrot.slane %v3913, 5
        %v3920 = vrot.slane %v3913, 6
        %v3921 = vrot.slane %v3913, 7
        %v3930 = vsub.f32 %v3878, %v3913
        %v3931 = vsub.f32 %v3879, %v3915
        %v3932 = vsub.f32 %v3880, %v3916
        %v3933 = vsub.f32 %v3881, %v3917
        %v3934 = vsub.f32 %v3882, %v3918
        %v3935 = vsub.f32 %v3883, %v3919
        %v3936 = vsub.f32 %v3884, %v3920
        %v3937 = vsub.f32 %v3885, %v3921
        %v3938 = vmul.f32 %v3930, %v3930
        %v3939 = vmul.f32 %v3931, %v3931
        %v3940 = vmul.f32 %v3932, %v3932
        %v3941 = vmul.f32 %v3933, %v3933
        %v3942 = vmul.f32 %v3934, %v3934
        %v3943 = vmul.f32 %v3935, %v3935
        %v3944 = vmul.f32 %v3936, %v3936
        %v3945 = vmul.f32 %v3937, %v3937
        %v3954 = vrot.slane %v3939, 7
        %v3955 = vsel %vm2173, %v3954, %v3938
        %v3956 = vrot.slane %v3940, 6
        %v3957 = vsel %vm2177, %v3956, %v3955
        %v3958 = vrot.slane %v3941, 5
        %v3959 = vsel %vm2181, %v3958, %v3957
        %v3960 = vrot.slane %v3942, 4
        %v3961 = vsel %vm2715, %v3960, %v3959
        %v3962 = vrot.slane %v3943, 3
        %v3963 = vsel %vm2718, %v3962, %v3961
        %v3964 = vrot.slane %v3944, 2
        %v3965 = vsel %vm2721, %v3964, %v3963
        %v3966 = vrot.slane %v3945, 1
        %v3967 = vsel %vm2724, %v3966, %v3965
        %3969 = vadd.xlane.f32.xlu0 %v3967
        %v3970 = vpop.xlane.xlu0 %3969
        %v3971 = vmul.f32 %v3970, %v3337
        %v3972 = vadd.f32 %v3971, 1e-05
        %v3973 = vrsqrt.pop %v3972
        %v3974 = vmul.f32 %v3973, %v3972
        %v3975 = vmul.f32 %v3974, %v3973
        %v3976 = vmul.f32 0.5, %v3975
        %v3977 = vsub.f32 1.5, %v3976
        %v3978 = vmul.f32 %v3973, %v3977
        %vm3979 = vweird.f32 %v3972
        %vm3980 = vweird.f32 %v3973
        %vm3981 = vmor %vm3979, %vm3980
        %v3982 = vsel %vm3981, %v3973, %v3978
        %v3984 = vrot.slane %v3982, 1
        %v3985 = vrot.slane %v3982, 2
        %v3986 = vrot.slane %v3982, 3
        %v3987 = vrot.slane %v3982, 4
        %v3988 = vrot.slane %v3982, 5
        %v3989 = vrot.slane %v3982, 6
        %v3990 = vrot.slane %v3982, 7
        %v3999 = vmul.f32 %v3930, %v3982
        %v4000 = vmul.f32 %v3931, %v3984
        %v4001 = vmul.f32 %v3932, %v3985
        %v4002 = vmul.f32 %v3933, %v3986
        %v4003 = vmul.f32 %v3934, %v3987
        %v4004 = vmul.f32 %v3935, %v3988
        %v4005 = vmul.f32 %v3936, %v3989
        %v4006 = vmul.f32 %v3937, %v3990
        %v4008 = vperm.slane %v3886, 0
        %v4010 = vmul.f32 %v3999, %v4008
        %v4011 = vmul.f32 %v4000, %v4008
        %v4012 = vmul.f32 %v4001, %v4008
        %v4013 = vmul.f32 %v4002, %v4008
        %v4014 = vmul.f32 %v4003, %v4008
        %v4015 = vmul.f32 %v4004, %v4008
        %v4016 = vmul.f32 %v4005, %v4008
        %v4017 = vmul.f32 %v4006, %v4008
        %v4019 = vperm.slane %v3887, 0
        %v4021 = vadd.f32 %v4010, %v4019
        %v4022 = vadd.f32 %v4011, %v4019
        %v4023 = vadd.f32 %v4012, %v4019
        %v4024 = vadd.f32 %v4013, %v4019
        %v4025 = vadd.f32 %v4014, %v4019
        %v4026 = vadd.f32 %v4015, %v4019
        %v4027 = vadd.f32 %v4016, %v4019
        %v4028 = vadd.f32 %v4017, %v4019
        %v4029 = vpack.c.bf16 %v4021, %v4021
        %v4030 = vpack.c.bf16 %v4022, %v4022
        %v4031 = vpack.c.bf16 %v4023, %v4023
        %v4032 = vpack.c.bf16 %v4024, %v4024
        %v4033 = vpack.c.bf16 %v4025, %v4025
        %v4034 = vpack.c.bf16 %v4026, %v4026
        %v4035 = vpack.c.bf16 %v4027, %v4027
        %v4036 = vpack.c.bf16 %v4028, %v4028
        %s4037 = scalar_lea.vmem %s6, 192
        %v4038 = vld [vmem:[%s4037] sm:$0xff]
        %v4039 = vld [vmem:[%s4037 + $0x8] sm:$0xf]
        %v4040 = vld [vmem:[%s4037 + $0xc] sm:$0xff]
        %v4041 = vld [vmem:[%s4037 + $0x14] sm:$0xf]
        %v4042 = vld [vmem:[%s4037 + $0x18] sm:$0xff]
        %v4043 = vld [vmem:[%s4037 + $0x20] sm:$0xf]
        %v4044 = vld [vmem:[%s4037 + $0x24] sm:$0xff]
        %v4045 = vld [vmem:[%s4037 + $0x2c] sm:$0xf]
        %v4046 = vld [vmem:[%s4037 + $0x30] sm:$0xff]
        %v4047 = vld [vmem:[%s4037 + $0x38] sm:$0xf]
        %v4048 = vld [vmem:[%s4037 + $0x3c] sm:$0xff]
        %v4049 = vld [vmem:[%s4037 + $0x44] sm:$0xf]
        %v4050 = vld [vmem:[%s4037 + $0x48] sm:$0xff]
        %v4051 = vld [vmem:[%s4037 + $0x50] sm:$0xf]
        %v4052 = vld [vmem:[%s4037 + $0x54] sm:$0xff]
        %v4053 = vld [vmem:[%s4037 + $0x5c] sm:$0xf]
        %v4054 = vld [vmem:[%s4037 + $0x60] sm:$0xff]
        %v4055 = vld [vmem:[%s4037 + $0x68] sm:$0xf]
        %v4056 = vld [vmem:[%s4037 + $0x6c] sm:$0xff]
        %v4057 = vld [vmem:[%s4037 + $0x74] sm:$0xf]
        %v4058 = vld [vmem:[%s4037 + $0x78] sm:$0xff]
        %v4059 = vld [vmem:[%s4037 + $0x80] sm:$0xf]
        %v4060 = vld [vmem:[%s4037 + $0x84] sm:$0xff]
        %v4061 = vld [vmem:[%s4037 + $0x8c] sm:$0xf]
        %v4062 = vld [vmem:[%s4037 + $0x90] sm:$0xff]
        %v4063 = vld [vmem:[%s4037 + $0x98] sm:$0xf]
        %v4064 = vld [vmem:[%s4037 + $0x9c] sm:$0xff]
        %v4065 = vld [vmem:[%s4037 + $0xa4] sm:$0xf]
        %v4066 = vld [vmem:[%s4037 + $0xa8] sm:$0xff]
        %v4067 = vld [vmem:[%s4037 + $0xb0] sm:$0xf]
        %v4068 = vld [vmem:[%s4037 + $0xb4] sm:$0xff]
        %v4069 = vld [vmem:[%s4037 + $0xbc] sm:$0xf]
        %s4070 = scalar_lea.vmem %s7, 3
        %v4071 = vld [vmem:[%s4070] sm:$0x7]
        %v4073 = vperm.slane %v4071, 0
        %v4074 = vperm.slane %v4071, 1
        %v4075 = vperm.slane %v4071, 2
        %v4087 = vunpack.c.l.b16 %v4029
        %v4088 = vunpack.c.l.b16 %v4030
        %v4089 = vunpack.c.l.b16 %v4031
        %v4090 = vunpack.c.l.b16 %v4032
        %v4091 = vunpack.c.l.b16 %v4033
        %v4092 = vunpack.c.l.b16 %v4034
        %v4093 = vunpack.c.l.b16 %v4035
        %v4094 = vunpack.c.l.b16 %v4036
        %v4095 = vrot.slane %v4088, 7
        %v4096 = vsel %vm2173, %v4095, %v4087
        %v4097 = vrot.slane %v4089, 6
        %v4098 = vsel %vm2177, %v4097, %v4096
        %v4099 = vrot.slane %v4090, 5
        %v4100 = vsel %vm2181, %v4099, %v4098
        %v4101 = vrot.slane %v4091, 4
        %v4102 = vsel %vm2715, %v4101, %v4100
        %v4103 = vrot.slane %v4092, 3
        %v4104 = vsel %vm2718, %v4103, %v4102
        %v4105 = vrot.slane %v4093, 2
        %v4106 = vsel %vm2721, %v4105, %v4104
        %v4107 = vrot.slane %v4094, 1
        %v4108 = vsel %vm2724, %v4107, %v4106
        %v4109 = vpack.c.b16 %v4108, %v4108
        %v4143 = vunpack.c.l.b16 %v4038
        %v4144 = vunpack.c.h.b16 %v4038
        %v4145 = vunpack.c.l.b16 %v4039
        %v4146 = vunpack.c.l.b16 %v4040
        %v4147 = vunpack.c.h.b16 %v4040
        %v4148 = vunpack.c.l.b16 %v4041
        %v4149 = vunpack.c.l.b16 %v4042
        %v4150 = vunpack.c.h.b16 %v4042
        %v4151 = vunpack.c.l.b16 %v4043
        %v4152 = vunpack.c.l.b16 %v4044
        %v4153 = vunpack.c.h.b16 %v4044
        %v4154 = vunpack.c.l.b16 %v4045
        %v4155 = vunpack.c.l.b16 %v4046
        %v4156 = vunpack.c.h.b16 %v4046
        %v4157 = vunpack.c.l.b16 %v4047
        %v4158 = vunpack.c.l.b16 %v4048
        %v4159 = vunpack.c.h.b16 %v4048
        %v4160 = vunpack.c.l.b16 %v4049
        %v4161 = vunpack.c.l.b16 %v4050
        %v4162 = vunpack.c.h.b16 %v4050
        %v4163 = vunpack.c.l.b16 %v4051
        %v4164 = vunpack.c.l.b16 %v4052
        %v4165 = vunpack.c.h.b16 %v4052
        %v4166 = vunpack.c.l.b16 %v4053
        %v4167 = vunpack.c.l.b16 %v4054
        %v4168 = vunpack.c.h.b16 %v4054
        %v4169 = vunpack.c.l.b16 %v4055
        %v4170 = vunpack.c.l.b16 %v4056
        %v4171 = vunpack.c.h.b16 %v4056
        %v4172 = vunpack.c.l.b16 %v4057
        %v4173 = vunpack.c.l.b16 %v4058
        %v4174 = vunpack.c.h.b16 %v4058
        %v4175 = vunpack.c.l.b16 %v4059
        %v4176 = vunpack.c.l.b16 %v4060
        %v4177 = vunpack.c.h.b16 %v4060
        %v4178 = vunpack.c.l.b16 %v4061
        %v4179 = vunpack.c.l.b16 %v4062
        %v4180 = vunpack.c.h.b16 %v4062
        %v4181 = vunpack.c.l.b16 %v4063
        %v4182 = vunpack.c.l.b16 %v4064
        %v4183 = vunpack.c.h.b16 %v4064
        %v4184 = vunpack.c.l.b16 %v4065
        %v4185 = vunpack.c.l.b16 %v4066
        %v4186 = vunpack.c.h.b16 %v4066
        %v4187 = vunpack.c.l.b16 %v4067
        %v4188 = vunpack.c.l.b16 %v4068
        %v4189 = vunpack.c.h.b16 %v4068
        %v4190 = vunpack.c.l.b16 %v4069
        %v4191 = vpack.c.b16 %v4146, %v4143
        %v4192 = vpack.c.b16 %v4147, %v4144
        %v4193 = vpack.c.b16 %v4148, %v4145
        %v4194 = vpack.c.b16 %v4152, %v4149
        %v4195 = vpack.c.b16 %v4153, %v4150
        %v4196 = vpack.c.b16 %v4154, %v4151
        %v4197 = vpack.c.b16 %v4158, %v4155
        %v4198 = vpack.c.b16 %v4159, %v4156
        %v4199 = vpack.c.b16 %v4160, %v4157
        %v4200 = vpack.c.b16 %v4164, %v4161
        %v4201 = vpack.c.b16 %v4165, %v4162
        %v4202 = vpack.c.b16 %v4166, %v4163
        %v4203 = vpack.c.b16 %v4170, %v4167
        %v4204 = vpack.c.b16 %v4171, %v4168
        %v4205 = vpack.c.b16 %v4172, %v4169
        %v4206 = vpack.c.b16 %v4176, %v4173
        %v4207 = vpack.c.b16 %v4177, %v4174
        %v4208 = vpack.c.b16 %v4178, %v4175
        %v4209 = vpack.c.b16 %v4182, %v4179
        %v4210 = vpack.c.b16 %v4183, %v4180
        %v4211 = vpack.c.b16 %v4184, %v4181
        %v4212 = vpack.c.b16 %v4188, %v4185
        %v4213 = vpack.c.b16 %v4189, %v4186
        %v4214 = vpack.c.b16 %v4190, %v4187
        %4239 = vmatpush.bf16.msra.mxu0 %v4212
        %4240 = vmatpush.bf16.msra.mxu0 %v4209
        %4241 = vmatpush.bf16.msra.mxu0 %v4206
        %4242 = vmatpush.bf16.msra.mxu0 %v4203
        %4243 = vmatpush.bf16.msra.mxu0 %v4200
        %4244 = vmatpush.bf16.msra.mxu0 %v4197
        %4245 = vmatpush.bf16.msra.mxu0 %v4194
        %4246 = vmatpush.bf16.msra.mxu0 %v4191
        %4247 = vmatmul.bf16.gmra.mxu0 %v4109
        %v4248 = vpop.f32.mrf.mxu0
        %v4249 = vadd.f32 %v4073, %v4248
        %v4250 = vpop.f32.mrf.mxu0
        %4251 = vdwg.mxu0
        %4252 = vmatpush.bf16.msra.mxu0 %v4213
        %4253 = vmatpush.bf16.msra.mxu0 %v4210
        %4254 = vmatpush.bf16.msra.mxu0 %v4207
        %4255 = vmatpush.bf16.msra.mxu0 %v4204
        %4256 = vmatpush.bf16.msra.mxu0 %v4201
        %4257 = vmatpush.bf16.msra.mxu0 %v4198
        %4258 = vmatpush.bf16.msra.mxu0 %v4195
        %4259 = vmatpush.bf16.msra.mxu0 %v4192
        %4260 = vmatmul.bf16.gmra.mxu0 %v4109
        %v4261 = vpop.f32.mrf.mxu0
        %v4262 = vadd.f32 %v4074, %v4261
        %v4263 = vpop.f32.mrf.mxu0
        %4264 = vdwg.mxu0
        %4265 = vmatpush.bf16.msra.mxu0 %v4214
        %4266 = vmatpush.bf16.msra.mxu0 %v4211
        %4267 = vmatpush.bf16.msra.mxu0 %v4208
        %4268 = vmatpush.bf16.msra.mxu0 %v4205
        %4269 = vmatpush.bf16.msra.mxu0 %v4202
        %4270 = vmatpush.bf16.msra.mxu0 %v4199
        %4271 = vmatpush.bf16.msra.mxu0 %v4196
        %4272 = vmatpush.bf16.msra.mxu0 %v4193
        %4273 = vmatmul.bf16.gmra.mxu0 %v4109
        %v4274 = vpop.f32.mrf.mxu0
        %v4275 = vadd.f32 %v4075, %v4274
        %v4276 = vpop.f32.mrf.mxu0
        %4277 = vdwg.mxu0
        %4279 = vrot.lane.b32.xlu0 %v4249, 96
        %v4280 = vpop.permute.xlu0 %4279
        %4282 = vrot.lane.b32.xlu0 %v4249, 64
        %v4283 = vpop.permute.xlu0 %4282
        %4285 = vrot.lane.b32.xlu0 %v4249, 32
        %v4286 = vpop.permute.xlu0 %4285
        %v4288 = vpack.c.bf16 %v4249, %v4249
        %v4289 = vpack.c.bf16 %v4280, %v4280
        %v4290 = vpack.c.bf16 %v4283, %v4283
        %v4291 = vpack.c.bf16 %v4286, %v4286
        %4293 = vrot.lane.b32.xlu0 %v4262, 96
        %v4294 = vpop.permute.xlu0 %4293
        %4296 = vrot.lane.b32.xlu0 %v4262, 64
        %v4297 = vpop.permute.xlu0 %4296
        %4299 = vrot.lane.b32.xlu0 %v4262, 32
        %v4300 = vpop.permute.xlu0 %4299
        %v4302 = vpack.c.bf16 %v4262, %v4262
        %v4303 = vpack.c.bf16 %v4294, %v4294
        %v4304 = vpack.c.bf16 %v4297, %v4297
        %v4305 = vpack.c.bf16 %v4300, %v4300
        %4307 = vrot.lane.b32.xlu0 %v4275, 96
        %v4308 = vpop.permute.xlu0 %4307
        %4310 = vrot.lane.b32.xlu0 %v4275, 64
        %v4311 = vpop.permute.xlu0 %4310
        %4313 = vrot.lane.b32.xlu0 %v4275, 32
        %v4314 = vpop.permute.xlu0 %4313
        %v4316 = vpack.c.bf16 %v4275, %v4275
        %v4317 = vpack.c.bf16 %v4308, %v4308
        %v4318 = vpack.c.bf16 %v4311, %v4311
        %v4319 = vpack.c.bf16 %v4314, %v4314
        %v4321 = vsel %vm2937, %v4288, 0
        %v4324 = vsel %vm2937, %v4302, 0
        %4326 = vmatpush.bf16.xpose.msra.mxu0 0
        %4327 = vmatpush.bf16.xpose.msra.mxu0 0
        %4328 = vmatpush.bf16.xpose.msra.mxu0 0
        %4329 = vmatpush.bf16.xpose.msra.mxu0 0
        %4330 = vmatpush.bf16.xpose.msra.mxu0 0
        %4331 = vmatpush.bf16.xpose.msra.mxu0 0
        %4332 = vmatpush.bf16.xpose.msra.mxu0 0
        %4333 = vmatpush.bf16.xpose.msra.mxu0 %v4324
        %4334 = vmatmul.bf16.gmra.mxu0 %v4321
        %v4335 = vpop.f32.mrf.mxu0
        %v4336 = vadd.f32 0.0, %v4335
        %v4337 = vpop.f32.mrf.mxu0
        %4338 = vdwg.mxu0
        %v4340 = vsel %vm2937, %v4289, 0
        %v4343 = vsel %vm2937, %v4303, 0
        %4345 = vmatpush.bf16.xpose.msra.mxu0 0
        %4346 = vmatpush.bf16.xpose.msra.mxu0 0
        %4347 = vmatpush.bf16.xpose.msra.mxu0 0
        %4348 = vmatpush.bf16.xpose.msra.mxu0 0
        %4349 = vmatpush.bf16.xpose.msra.mxu0 0
        %4350 = vmatpush.bf16.xpose.msra.mxu0 0
        %4351 = vmatpush.bf16.xpose.msra.mxu0 0
        %4352 = vmatpush.bf16.xpose.msra.mxu0 %v4343
        %4353 = vmatmul.bf16.gmra.mxu0 %v4340
        %v4354 = vpop.f32.mrf.mxu0
        %v4355 = vadd.f32 0.0, %v4354
        %v4356 = vpop.f32.mrf.mxu0
        %4357 = vdwg.mxu0
        %v4359 = vsel %vm2937, %v4290, 0
        %v4362 = vsel %vm2937, %v4304, 0
        %4364 = vmatpush.bf16.xpose.msra.mxu0 0
        %4365 = vmatpush.bf16.xpose.msra.mxu0 0
        %4366 = vmatpush.bf16.xpose.msra.mxu0 0
        %4367 = vmatpush.bf16.xpose.msra.mxu0 0
        %4368 = vmatpush.bf16.xpose.msra.mxu0 0
        %4369 = vmatpush.bf16.xpose.msra.mxu0 0
        %4370 = vmatpush.bf16.xpose.msra.mxu0 0
        %4371 = vmatpush.bf16.xpose.msra.mxu0 %v4362
        %4372 = vmatmul.bf16.gmra.mxu0 %v4359
        %v4373 = vpop.f32.mrf.mxu0
        %v4374 = vadd.f32 0.0, %v4373
        %v4375 = vpop.f32.mrf.mxu0
        %4376 = vdwg.mxu0
        %v4378 = vsel %vm2937, %v4291, 0
        %v4381 = vsel %vm2937, %v4305, 0
        %4383 = vmatpush.bf16.xpose.msra.mxu0 0
        %4384 = vmatpush.bf16.xpose.msra.mxu0 0
        %4385 = vmatpush.bf16.xpose.msra.mxu0 0
        %4386 = vmatpush.bf16.xpose.msra.mxu0 0
        %4387 = vmatpush.bf16.xpose.msra.mxu0 0
        %4388 = vmatpush.bf16.xpose.msra.mxu0 0
        %4389 = vmatpush.bf16.xpose.msra.mxu0 0
        %4390 = vmatpush.bf16.xpose.msra.mxu0 %v4381
        %4391 = vmatmul.bf16.gmra.mxu0 %v4378
        %v4392 = vpop.f32.mrf.mxu0
        %v4393 = vadd.f32 0.0, %v4392
        %v4394 = vpop.f32.mrf.mxu0
        %4395 = vdwg.mxu0
        %v4396 = vsel %vm3014, %v4336, -inf
        %4397 = vmax.xlane.f32.xlu0 %v4396
        %v4398 = vpop.xlane.xlu0 %4397
        %v4399 = vsel %vm3014, %v4355, -inf
        %4400 = vmax.xlane.f32.xlu0 %v4399
        %v4401 = vpop.xlane.xlu0 %4400
        %v4402 = vsel %vm3014, %v4374, -inf
        %4403 = vmax.xlane.f32.xlu0 %v4402
        %v4404 = vpop.xlane.xlu0 %4403
        %v4405 = vsel %vm3014, %v4393, -inf
        %4406 = vmax.xlane.f32.xlu0 %v4405
        %v4407 = vpop.xlane.xlu0 %4406
        %v4408 = vsub.f32 %v4336, %v4398
        %v4409 = vsub.f32 %v4355, %v4401
        %v4410 = vsub.f32 %v4374, %v4404
        %v4411 = vsub.f32 %v4393, %v4407
        %v4412 = vmul.f32 %v4408, 1.442695
        %v4413 = vpow.pop %v4412
        %v4414 = vmul.f32 %v4409, 1.442695
        %v4415 = vpow.pop %v4414
        %v4416 = vmul.f32 %v4410, 1.442695
        %v4417 = vpow.pop %v4416
        %v4418 = vmul.f32 %v4411, 1.442695
        %v4419 = vpow.pop %v4418
        %v4420 = vsel %vm3014, %v4413, 0.0
        %4421 = vadd.xlane.f32.xlu0 %v4420
        %v4422 = vpop.xlane.xlu0 %4421
        %v4423 = vsel %vm3014, %v4415, 0.0
        %4424 = vadd.xlane.f32.xlu0 %v4423
        %v4425 = vpop.xlane.xlu0 %4424
        %v4426 = vsel %vm3014, %v4417, 0.0
        %4427 = vadd.xlane.f32.xlu0 %v4426
        %v4428 = vpop.xlane.xlu0 %4427
        %v4429 = vsel %vm3014, %v4419, 0.0
        %4430 = vadd.xlane.f32.xlu0 %v4429
        %v4431 = vpop.xlane.xlu0 %4430
        %v4432 = vrcp.pop %v4422
        %v4433 = vrcp.pop %v4425
        %v4434 = vrcp.pop %v4428
        %v4435 = vrcp.pop %v4431
        %v4436 = vmul.f32 %v4413, %v4432
        %v4437 = vmul.f32 %v4415, %v4433
        %v4438 = vmul.f32 %v4417, %v4434
        %v4439 = vmul.f32 %v4419, %v4435
        %v4440 = vpack.c.bf16 %v4436, %v4436
        %v4441 = vpack.c.bf16 %v4437, %v4437
        %v4442 = vpack.c.bf16 %v4438, %v4438
        %v4443 = vpack.c.bf16 %v4439, %v4439
        %v4445 = vsel %vm3014, %v4440, 0
        %v4448 = vsel %vm3066, %v4316, 0
        %4450 = vmatpush.bf16.msra.mxu0 0
        %4451 = vmatpush.bf16.msra.mxu0 0
        %4452 = vmatpush.bf16.msra.mxu0 0
        %4453 = vmatpush.bf16.msra.mxu0 0
        %4454 = vmatpush.bf16.msra.mxu0 0
        %4455 = vmatpush.bf16.msra.mxu0 0
        %4456 = vmatpush.bf16.msra.mxu0 0
        %4457 = vmatpush.bf16.msra.mxu0 %v4448
        %4458 = vmatmul.bf16.gmra.mxu0 %v4445
        %v4459 = vpop.f32.mrf.mxu0
        %v4460 = vadd.f32 0.0, %v4459
        %v4461 = vpop.f32.mrf.mxu0
        %4462 = vdwg.mxu0
        %v4464 = vsel %vm3014, %v4441, 0
        %v4467 = vsel %vm3066, %v4317, 0
        %4469 = vmatpush.bf16.msra.mxu0 0
        %4470 = vmatpush.bf16.msra.mxu0 0
        %4471 = vmatpush.bf16.msra.mxu0 0
        %4472 = vmatpush.bf16.msra.mxu0 0
        %4473 = vmatpush.bf16.msra.mxu0 0
        %4474 = vmatpush.bf16.msra.mxu0 0
        %4475 = vmatpush.bf16.msra.mxu0 0
        %4476 = vmatpush.bf16.msra.mxu0 %v4467
        %4477 = vmatmul.bf16.gmra.mxu0 %v4464
        %v4478 = vpop.f32.mrf.mxu0
        %v4479 = vadd.f32 0.0, %v4478
        %v4480 = vpop.f32.mrf.mxu0
        %4481 = vdwg.mxu0
        %v4483 = vsel %vm3014, %v4442, 0
        %v4486 = vsel %vm3066, %v4318, 0
        %4488 = vmatpush.bf16.msra.mxu0 0
        %4489 = vmatpush.bf16.msra.mxu0 0
        %4490 = vmatpush.bf16.msra.mxu0 0
        %4491 = vmatpush.bf16.msra.mxu0 0
        %4492 = vmatpush.bf16.msra.mxu0 0
        %4493 = vmatpush.bf16.msra.mxu0 0
        %4494 = vmatpush.bf16.msra.mxu0 0
        %4495 = vmatpush.bf16.msra.mxu0 %v4486
        %4496 = vmatmul.bf16.gmra.mxu0 %v4483
        %v4497 = vpop.f32.mrf.mxu0
        %v4498 = vadd.f32 0.0, %v4497
        %v4499 = vpop.f32.mrf.mxu0
        %4500 = vdwg.mxu0
        %v4502 = vsel %vm3014, %v4443, 0
        %v4505 = vsel %vm3066, %v4319, 0
        %4507 = vmatpush.bf16.msra.mxu0 0
        %4508 = vmatpush.bf16.msra.mxu0 0
        %4509 = vmatpush.bf16.msra.mxu0 0
        %4510 = vmatpush.bf16.msra.mxu0 0
        %4511 = vmatpush.bf16.msra.mxu0 0
        %4512 = vmatpush.bf16.msra.mxu0 0
        %4513 = vmatpush.bf16.msra.mxu0 0
        %4514 = vmatpush.bf16.msra.mxu0 %v4505
        %4515 = vmatmul.bf16.gmra.mxu0 %v4502
        %v4516 = vpop.f32.mrf.mxu0
        %v4517 = vadd.f32 0.0, %v4516
        %v4518 = vpop.f32.mrf.mxu0
        %4519 = vdwg.mxu0
        %v4520 = vpack.c.bf16 %v4460, %v4460
        %v4521 = vpack.c.bf16 %v4479, %v4479
        %v4522 = vpack.c.bf16 %v4498, %v4498
        %v4523 = vpack.c.bf16 %v4517, %v4517
        %s4524 = scalar_lea.vmem %s8, 64
        %v4525 = vld [vmem:[%s4524] sm:$0xf]
        %v4526 = vld [vmem:[%s4524 + $0x4] sm:$0xf]
        %v4527 = vld [vmem:[%s4524 + $0x8] sm:$0xf]
        %v4528 = vld [vmem:[%s4524 + $0xc] sm:$0xf]
        %v4529 = vld [vmem:[%s4524 + $0x10] sm:$0xf]
        %v4530 = vld [vmem:[%s4524 + $0x14] sm:$0xf]
        %v4531 = vld [vmem:[%s4524 + $0x18] sm:$0xf]
        %v4532 = vld [vmem:[%s4524 + $0x1c] sm:$0xf]
        %v4533 = vld [vmem:[%s4524 + $0x20] sm:$0xf]
        %v4534 = vld [vmem:[%s4524 + $0x24] sm:$0xf]
        %v4535 = vld [vmem:[%s4524 + $0x28] sm:$0xf]
        %v4536 = vld [vmem:[%s4524 + $0x2c] sm:$0xf]
        %v4537 = vld [vmem:[%s4524 + $0x30] sm:$0xf]
        %v4538 = vld [vmem:[%s4524 + $0x34] sm:$0xf]
        %v4539 = vld [vmem:[%s4524 + $0x38] sm:$0xf]
        %v4540 = vld [vmem:[%s4524 + $0x3c] sm:$0xf]
        %v4545 = vunpack.c.l.b16 %v4525
        %v4546 = vunpack.c.l.b16 %v4526
        %v4547 = vunpack.c.l.b16 %v4527
        %v4548 = vunpack.c.l.b16 %v4528
        %v4549 = vpack.c.b16 %v4546, %v4545
        %v4550 = vpack.c.b16 %v4548, %v4547
        %v4554 = vsel %vm2937, %v4520, 0
        %4556 = vmatpush.bf16.msra.mxu0 0
        %4557 = vmatpush.bf16.msra.mxu0 0
        %4558 = vmatpush.bf16.msra.mxu0 0
        %4559 = vmatpush.bf16.msra.mxu0 0
        %4560 = vmatpush.bf16.msra.mxu0 0
        %4561 = vmatpush.bf16.msra.mxu0 0
        %4562 = vmatpush.bf16.msra.mxu0 %v4550
        %4563 = vmatpush.bf16.msra.mxu0 %v4549
        %4564 = vmatmul.bf16.gmra.mxu0 %v4554
        %v4565 = vpop.f32.mrf.mxu0
        %v4566 = vadd.f32 0.0, %v4565
        %v4567 = vpop.f32.mrf.mxu0
        %4568 = vdwg.mxu0
        %v4573 = vunpack.c.l.b16 %v4529
        %v4574 = vunpack.c.l.b16 %v4530
        %v4575 = vunpack.c.l.b16 %v4531
        %v4576 = vunpack.c.l.b16 %v4532
        %v4577 = vpack.c.b16 %v4574, %v4573
        %v4578 = vpack.c.b16 %v4576, %v4575
        %v4582 = vsel %vm2937, %v4521, 0
        %4584 = vmatpush.bf16.msra.mxu0 0
        %4585 = vmatpush.bf16.msra.mxu0 0
        %4586 = vmatpush.bf16.msra.mxu0 0
        %4587 = vmatpush.bf16.msra.mxu0 0
        %4588 = vmatpush.bf16.msra.mxu0 0
        %4589 = vmatpush.bf16.msra.mxu0 0
        %4590 = vmatpush.bf16.msra.mxu0 %v4578
        %4591 = vmatpush.bf16.msra.mxu0 %v4577
        %4592 = vmatmul.bf16.gmra.mxu0 %v4582
        %v4593 = vpop.f32.mrf.mxu0
        %v4594 = vadd.f32 0.0, %v4593
        %v4595 = vpop.f32.mrf.mxu0
        %4596 = vdwg.mxu0
        %v4601 = vunpack.c.l.b16 %v4533
        %v4602 = vunpack.c.l.b16 %v4534
        %v4603 = vunpack.c.l.b16 %v4535
        %v4604 = vunpack.c.l.b16 %v4536
        %v4605 = vpack.c.b16 %v4602, %v4601
        %v4606 = vpack.c.b16 %v4604, %v4603
        %v4610 = vsel %vm2937, %v4522, 0
        %4612 = vmatpush.bf16.msra.mxu0 0
        %4613 = vmatpush.bf16.msra.mxu0 0
        %4614 = vmatpush.bf16.msra.mxu0 0
        %4615 = vmatpush.bf16.msra.mxu0 0
        %4616 = vmatpush.bf16.msra.mxu0 0
        %4617 = vmatpush.bf16.msra.mxu0 0
        %4618 = vmatpush.bf16.msra.mxu0 %v4606
        %4619 = vmatpush.bf16.msra.mxu0 %v4605
        %4620 = vmatmul.bf16.gmra.mxu0 %v4610
        %v4621 = vpop.f32.mrf.mxu0
        %v4622 = vadd.f32 0.0, %v4621
        %v4623 = vpop.f32.mrf.mxu0
        %4624 = vdwg.mxu0
        %v4629 = vunpack.c.l.b16 %v4537
        %v4630 = vunpack.c.l.b16 %v4538
        %v4631 = vunpack.c.l.b16 %v4539
        %v4632 = vunpack.c.l.b16 %v4540
        %v4633 = vpack.c.b16 %v4630, %v4629
        %v4634 = vpack.c.b16 %v4632, %v4631
        %v4638 = vsel %vm2937, %v4523, 0
        %4640 = vmatpush.bf16.msra.mxu0 0
        %4641 = vmatpush.bf16.msra.mxu0 0
        %4642 = vmatpush.bf16.msra.mxu0 0
        %4643 = vmatpush.bf16.msra.mxu0 0
        %4644 = vmatpush.bf16.msra.mxu0 0
        %4645 = vmatpush.bf16.msra.mxu0 0
        %4646 = vmatpush.bf16.msra.mxu0 %v4634
        %4647 = vmatpush.bf16.msra.mxu0 %v4633
        %4648 = vmatmul.bf16.gmra.mxu0 %v4638
        %v4649 = vpop.f32.mrf.mxu0
        %v4650 = vadd.f32 0.0, %v4649
        %v4651 = vpop.f32.mrf.mxu0
        %4652 = vdwg.mxu0
        %v4653 = vadd.f32 %v4566, %v4594
        %v4654 = vadd.f32 %v4653, %v4622
        %v4655 = vadd.f32 %v4654, %v4650
        %s4656 = scalar_lea.vmem %s9, 1
        %v4657 = vld [vmem:[%s4656] sm:$0x1]
        %v4659 = vperm.slane %v4657, 0
        %v4661 = vadd.f32 %v4655, %v4659
        %v4663 = vrot.slane %v4661, 1
        %v4664 = vrot.slane %v4661, 2
        %v4665 = vrot.slane %v4661, 3
        %v4666 = vrot.slane %v4661, 4
        %v4667 = vrot.slane %v4661, 5
        %v4668 = vrot.slane %v4661, 6
        %v4669 = vrot.slane %v4661, 7
        %v4678 = vadd.f32 %v4021, %v4661
        %v4679 = vadd.f32 %v4022, %v4663
        %v4680 = vadd.f32 %v4023, %v4664
        %v4681 = vadd.f32 %v4024, %v4665
        %v4682 = vadd.f32 %v4025, %v4666
        %v4683 = vadd.f32 %v4026, %v4667
        %v4684 = vadd.f32 %v4027, %v4668
        %v4685 = vadd.f32 %v4028, %v4669
        %s4686 = scalar_lea.vmem %s10, 1
        %v4687 = vld [vmem:[%s4686] sm:$0x1]
        %s4688 = scalar_lea.vmem %s11, 1
        %v4689 = vld [vmem:[%s4688] sm:$0x1]
        %v4698 = vrot.slane %v4679, 7
        %v4699 = vsel %vm2173, %v4698, %v4678
        %v4700 = vrot.slane %v4680, 6
        %v4701 = vsel %vm2177, %v4700, %v4699
        %v4702 = vrot.slane %v4681, 5
        %v4703 = vsel %vm2181, %v4702, %v4701
        %v4704 = vrot.slane %v4682, 4
        %v4705 = vsel %vm2715, %v4704, %v4703
        %v4706 = vrot.slane %v4683, 3
        %v4707 = vsel %vm2718, %v4706, %v4705
        %v4708 = vrot.slane %v4684, 2
        %v4709 = vsel %vm2721, %v4708, %v4707
        %v4710 = vrot.slane %v4685, 1
        %v4711 = vsel %vm2724, %v4710, %v4709
        %4713 = vadd.xlane.f32.xlu0 %v4711
        %v4714 = vpop.xlane.xlu0 %4713
        %v4715 = vmul.f32 %v4714, %v3337
        %v4717 = vrot.slane %v4715, 1
        %v4718 = vrot.slane %v4715, 2
        %v4719 = vrot.slane %v4715, 3
        %v4720 = vrot.slane %v4715, 4
        %v4721 = vrot.slane %v4715, 5
        %v4722 = vrot.slane %v4715, 6
        %v4723 = vrot.slane %v4715, 7
        %v4732 = vsub.f32 %v4678, %v4715
        %v4733 = vsub.f32 %v4679, %v4717
        %v4734 = vsub.f32 %v4680, %v4718
        %v4735 = vsub.f32 %v4681, %v4719
        %v4736 = vsub.f32 %v4682, %v4720
        %v4737 = vsub.f32 %v4683, %v4721
        %v4738 = vsub.f32 %v4684, %v4722
        %v4739 = vsub.f32 %v4685, %v4723
        %v4740 = vmul.f32 %v4732, %v4732
        %v4741 = vmul.f32 %v4733, %v4733
        %v4742 = vmul.f32 %v4734, %v4734
        %v4743 = vmul.f32 %v4735, %v4735
        %v4744 = vmul.f32 %v4736, %v4736
        %v4745 = vmul.f32 %v4737, %v4737
        %v4746 = vmul.f32 %v4738, %v4738
        %v4747 = vmul.f32 %v4739, %v4739
        %v4756 = vrot.slane %v4741, 7
        %v4757 = vsel %vm2173, %v4756, %v4740
        %v4758 = vrot.slane %v4742, 6
        %v4759 = vsel %vm2177, %v4758, %v4757
        %v4760 = vrot.slane %v4743, 5
        %v4761 = vsel %vm2181, %v4760, %v4759
        %v4762 = vrot.slane %v4744, 4
        %v4763 = vsel %vm2715, %v4762, %v4761
        %v4764 = vrot.slane %v4745, 3
        %v4765 = vsel %vm2718, %v4764, %v4763
        %v4766 = vrot.slane %v4746, 2
        %v4767 = vsel %vm2721, %v4766, %v4765
        %v4768 = vrot.slane %v4747, 1
        %v4769 = vsel %vm2724, %v4768, %v4767
        %4771 = vadd.xlane.f32.xlu0 %v4769
        %v4772 = vpop.xlane.xlu0 %4771
        %v4773 = vmul.f32 %v4772, %v3337
        %v4774 = vadd.f32 %v4773, 1e-05
        %v4775 = vrsqrt.pop %v4774
        %v4776 = vmul.f32 %v4775, %v4774
        %v4777 = vmul.f32 %v4776, %v4775
        %v4778 = vmul.f32 0.5, %v4777
        %v4779 = vsub.f32 1.5, %v4778
        %v4780 = vmul.f32 %v4775, %v4779
        %vm4781 = vweird.f32 %v4774
        %vm4782 = vweird.f32 %v4775
        %vm4783 = vmor %vm4781, %vm4782
        %v4784 = vsel %vm4783, %v4775, %v4780
        %v4786 = vrot.slane %v4784, 1
        %v4787 = vrot.slane %v4784, 2
        %v4788 = vrot.slane %v4784, 3
        %v4789 = vrot.slane %v4784, 4
        %v4790 = vrot.slane %v4784, 5
        %v4791 = vrot.slane %v4784, 6
        %v4792 = vrot.slane %v4784, 7
        %v4801 = vmul.f32 %v4732, %v4784
        %v4802 = vmul.f32 %v4733, %v4786
        %v4803 = vmul.f32 %v4734, %v4787
        %v4804 = vmul.f32 %v4735, %v4788
        %v4805 = vmul.f32 %v4736, %v4789
        %v4806 = vmul.f32 %v4737, %v4790
        %v4807 = vmul.f32 %v4738, %v4791
        %v4808 = vmul.f32 %v4739, %v4792
        %v4810 = vperm.slane %v4687, 0
        %v4812 = vmul.f32 %v4801, %v4810
        %v4813 = vmul.f32 %v4802, %v4810
        %v4814 = vmul.f32 %v4803, %v4810
        %v4815 = vmul.f32 %v4804, %v4810
        %v4816 = vmul.f32 %v4805, %v4810
        %v4817 = vmul.f32 %v4806, %v4810
        %v4818 = vmul.f32 %v4807, %v4810
        %v4819 = vmul.f32 %v4808, %v4810
        %v4821 = vperm.slane %v4689, 0
        %v4823 = vadd.f32 %v4812, %v4821
        %v4824 = vadd.f32 %v4813, %v4821
        %v4825 = vadd.f32 %v4814, %v4821
        %v4826 = vadd.f32 %v4815, %v4821
        %v4827 = vadd.f32 %v4816, %v4821
        %v4828 = vadd.f32 %v4817, %v4821
        %v4829 = vadd.f32 %v4818, %v4821
        %v4830 = vadd.f32 %v4819, %v4821
        %v4831 = vpack.c.bf16 %v4823, %v4823
        %v4832 = vpack.c.bf16 %v4824, %v4824
        %v4833 = vpack.c.bf16 %v4825, %v4825
        %v4834 = vpack.c.bf16 %v4826, %v4826
        %v4835 = vpack.c.bf16 %v4827, %v4827
        %v4836 = vpack.c.bf16 %v4828, %v4828
        %v4837 = vpack.c.bf16 %v4829, %v4829
        %v4838 = vpack.c.bf16 %v4830, %v4830
        %s4839 = scalar_lea.vmem %s12, 128
        %v4840 = vld [vmem:[%s4839] sm:$0xff]
        %v4841 = vld [vmem:[%s4839 + $0x8] sm:$0xff]
        %v4842 = vld [vmem:[%s4839 + $0x10] sm:$0xff]
        %v4843 = vld [vmem:[%s4839 + $0x18] sm:$0xff]
        %v4844 = vld [vmem:[%s4839 + $0x20] sm:$0xff]
        %v4845 = vld [vmem:[%s4839 + $0x28] sm:$0xff]
        %v4846 = vld [vmem:[%s4839 + $0x30] sm:$0xff]
        %v4847 = vld [vmem:[%s4839 + $0x38] sm:$0xff]
        %v4848 = vld [vmem:[%s4839 + $0x40] sm:$0xff]
        %v4849 = vld [vmem:[%s4839 + $0x48] sm:$0xff]
        %v4850 = vld [vmem:[%s4839 + $0x50] sm:$0xff]
        %v4851 = vld [vmem:[%s4839 + $0x58] sm:$0xff]
        %v4852 = vld [vmem:[%s4839 + $0x60] sm:$0xff]
        %v4853 = vld [vmem:[%s4839 + $0x68] sm:$0xff]
        %v4854 = vld [vmem:[%s4839 + $0x70] sm:$0xff]
        %v4855 = vld [vmem:[%s4839 + $0x78] sm:$0xff]
        %s4856 = scalar_lea.vmem %s13, 2
        %v4857 = vld [vmem:[%s4856] sm:$0x3]
        %v4859 = vperm.slane %v4857, 0
        %v4860 = vperm.slane %v4857, 1
        %v4871 = vunpack.c.l.b16 %v4831
        %v4872 = vunpack.c.l.b16 %v4832
        %v4873 = vunpack.c.l.b16 %v4833
        %v4874 = vunpack.c.l.b16 %v4834
        %v4875 = vunpack.c.l.b16 %v4835
        %v4876 = vunpack.c.l.b16 %v4836
        %v4877 = vunpack.c.l.b16 %v4837
        %v4878 = vunpack.c.l.b16 %v4838
        %v4879 = vrot.slane %v4872, 7
        %v4880 = vsel %vm2173, %v4879, %v4871
        %v4881 = vrot.slane %v4873, 6
        %v4882 = vsel %vm2177, %v4881, %v4880
        %v4883 = vrot.slane %v4874, 5
        %v4884 = vsel %vm2181, %v4883, %v4882
        %v4885 = vrot.slane %v4875, 4
        %v4886 = vsel %vm2715, %v4885, %v4884
        %v4887 = vrot.slane %v4876, 3
        %v4888 = vsel %vm2718, %v4887, %v4886
        %v4889 = vrot.slane %v4877, 2
        %v4890 = vsel %vm2721, %v4889, %v4888
        %v4891 = vrot.slane %v4878, 1
        %v4892 = vsel %vm2724, %v4891, %v4890
        %v4893 = vpack.c.b16 %v4892, %v4892
        %v4911 = vunpack.c.l.b16 %v4840
        %v4912 = vunpack.c.h.b16 %v4840
        %v4913 = vunpack.c.l.b16 %v4841
        %v4914 = vunpack.c.h.b16 %v4841
        %v4915 = vunpack.c.l.b16 %v4842
        %v4916 = vunpack.c.h.b16 %v4842
        %v4917 = vunpack.c.l.b16 %v4843
        %v4918 = vunpack.c.h.b16 %v4843
        %v4919 = vunpack.c.l.b16 %v4844
        %v4920 = vunpack.c.h.b16 %v4844
        %v4921 = vunpack.c.l.b16 %v4845
        %v4922 = vunpack.c.h.b16 %v4845
        %v4923 = vunpack.c.l.b16 %v4846
        %v4924 = vunpack.c.h.b16 %v4846
        %v4925 = vunpack.c.l.b16 %v4847
        %v4926 = vunpack.c.h.b16 %v4847
        %v4927 = vunpack.c.l.b16 %v4848
        %v4928 = vunpack.c.h.b16 %v4848
        %v4929 = vunpack.c.l.b16 %v4849
        %v4930 = vunpack.c.h.b16 %v4849
        %v4931 = vunpack.c.l.b16 %v4850
        %v4932 = vunpack.c.h.b16 %v4850
        %v4933 = vunpack.c.l.b16 %v4851
        %v4934 = vunpack.c.h.b16 %v4851
        %v4935 = vunpack.c.l.b16 %v4852
        %v4936 = vunpack.c.h.b16 %v4852
        %v4937 = vunpack.c.l.b16 %v4853
        %v4938 = vunpack.c.h.b16 %v4853
        %v4939 = vunpack.c.l.b16 %v4854
        %v4940 = vunpack.c.h.b16 %v4854
        %v4941 = vunpack.c.l.b16 %v4855
        %v4942 = vunpack.c.h.b16 %v4855
        %v4943 = vpack.c.b16 %v4913, %v4911
        %v4944 = vpack.c.b16 %v4914, %v4912
        %v4945 = vpack.c.b16 %v4917, %v4915
        %v4946 = vpack.c.b16 %v4918, %v4916
        %v4947 = vpack.c.b16 %v4921, %v4919
        %v4948 = vpack.c.b16 %v4922, %v4920
        %v4949 = vpack.c.b16 %v4925, %v4923
        %v4950 = vpack.c.b16 %v4926, %v4924
        %v4951 = vpack.c.b16 %v4929, %v4927
        %v4952 = vpack.c.b16 %v4930, %v4928
        %v4953 = vpack.c.b16 %v4933, %v4931
        %v4954 = vpack.c.b16 %v4934, %v4932
        %v4955 = vpack.c.b16 %v4937, %v4935
        %v4956 = vpack.c.b16 %v4938, %v4936
        %v4957 = vpack.c.b16 %v4941, %v4939
        %v4958 = vpack.c.b16 %v4942, %v4940
        %4975 = vmatpush.bf16.msra.mxu0 %v4957
        %4976 = vmatpush.bf16.msra.mxu0 %v4955
        %4977 = vmatpush.bf16.msra.mxu0 %v4953
        %4978 = vmatpush.bf16.msra.mxu0 %v4951
        %4979 = vmatpush.bf16.msra.mxu0 %v4949
        %4980 = vmatpush.bf16.msra.mxu0 %v4947
        %4981 = vmatpush.bf16.msra.mxu0 %v4945
        %4982 = vmatpush.bf16.msra.mxu0 %v4943
        %4983 = vmatmul.bf16.gmra.mxu0 %v4893
        %v4984 = vpop.f32.mrf.mxu0
        %v4985 = vadd.f32 %v4859, %v4984
        %v4986 = vpop.f32.mrf.mxu0
        %4987 = vdwg.mxu0
        %4988 = vmatpush.bf16.msra.mxu0 %v4958
        %4989 = vmatpush.bf16.msra.mxu0 %v4956
        %4990 = vmatpush.bf16.msra.mxu0 %v4954
        %4991 = vmatpush.bf16.msra.mxu0 %v4952
        %4992 = vmatpush.bf16.msra.mxu0 %v4950
        %4993 = vmatpush.bf16.msra.mxu0 %v4948
        %4994 = vmatpush.bf16.msra.mxu0 %v4946
        %4995 = vmatpush.bf16.msra.mxu0 %v4944
        %4996 = vmatmul.bf16.gmra.mxu0 %v4893
        %v4997 = vpop.f32.mrf.mxu0
        %v4998 = vadd.f32 %v4860, %v4997
        %v4999 = vpop.f32.mrf.mxu0
        %5000 = vdwg.mxu0
        %v5001 = vmul.f32 %v4985, 0.5
        %v5002 = vmul.f32 %v4998, 0.5
        %v5003 = vmul.f32 %v4985, 0.70710677
        %v5004 = vmul.f32 %v4998, 0.70710677
        %vm5005 = vcmp.ge.f32.partialorder %v5003, 0.0
        %vm5006 = vcmp.ge.f32.partialorder %v5004, 0.0
        %v5007 = vsel %vm5005, 1.0, -1.0
        %v5008 = vsel %vm5006, 1.0, -1.0
        %v5009 = vand.u32 2147483647, %v5003
        %v5010 = vand.u32 2147483647, %v5004
        %v5011 = vmul.f32 %v5009, 0.3275911
        %v5012 = vmul.f32 %v5010, 0.3275911
        %v5013 = vadd.f32 %v5011, 1.0
        %v5014 = vadd.f32 %v5012, 1.0
        %v5015 = vrcp.pop %v5013
        %v5016 = vmul.f32 %v5013, %v5015
        %v5017 = vsub.f32 1.0, %v5016
        %v5018 = vmul.f32 %v5015, %v5017
        %v5019 = vadd.f32 %v5015, %v5018
        %vm5020 = vweird.f32 %v5013
        %vm5021 = vweird.f32 %v5015
        %vm5022 = vmor %vm5020, %vm5021
        %v5023 = vsel %vm5022, %v5015, %v5019
        %v5024 = vand.u32 2147483647, %v5013
        %vm5025 = vcmp.eq.f32.partialorder %v5024, 8.507059e+37
        %v5026 = vand.u32 %v5013, 2147483648
        %v5027 = vor.u32 1.1754944e-38, %v5026
        %v5028 = vsel %vm5025, %v5027, %v5023
        %v5029 = vmul.f32 1.0, %v5028
        %v5030 = vrcp.pop %v5014
        %v5031 = vmul.f32 %v5014, %v5030
        %v5032 = vsub.f32 1.0, %v5031
        %v5033 = vmul.f32 %v5030, %v5032
        %v5034 = vadd.f32 %v5030, %v5033
        %vm5035 = vweird.f32 %v5014
        %vm5036 = vweird.f32 %v5030
        %vm5037 = vmor %vm5035, %vm5036
        %v5038 = vsel %vm5037, %v5030, %v5034
        %v5039 = vand.u32 2147483647, %v5014
        %vm5040 = vcmp.eq.f32.partialorder %v5039, 8.507059e+37
        %v5041 = vand.u32 %v5014, 2147483648
        %v5042 = vor.u32 1.1754944e-38, %v5041
        %v5043 = vsel %vm5040, %v5042, %v5038
        %v5044 = vmul.f32 1.0, %v5043
        %v5045 = vmul.f32 %v5029, 1.0614054
        %v5046 = vmul.f32 %v5044, 1.0614054
        %v5047 = vadd.f32 %v5045, -1.4531521
        %v5048 = vadd.f32 %v5046, -1.4531521
        %v5049 = vmul.f32 %v5029, %v5047
        %v5050 = vmul.f32 %v5044, %v5048
        %v5051 = vadd.f32 %v5049, 1.4214138
        %v5052 = vadd.f32 %v5050, 1.4214138
        %v5053 = vmul.f32 %v5029, %v5051
        %v5054 = vmul.f32 %v5044, %v5052
        %v5055 = vadd.f32 %v5053, -0.28449672
        %v5056 = vadd.f32 %v5054, -0.28449672
        %v5057 = vmul.f32 %v5029, %v5055
        %v5058 = vmul.f32 %v5044, %v5056
        %v5059 = vadd.f32 %v5057, 0.2548296
        %v5060 = vadd.f32 %v5058, 0.2548296
        %v5061 = vmul.f32 %v5029, %v5059
        %v5062 = vmul.f32 %v5044, %v5060
        %v5063 = vsub.f32 0.0, %v5009
        %v5064 = vsub.f32 0.0, %v5010
        %v5065 = vmul.f32 %v5063, %v5009
        %v5066 = vmul.f32 %v5064, %v5010
        %v5067 = vmul.f32 %v5065, 1.442695
        %v5068 = vpow.pop %v5067
        %v5069 = vmul.f32 %v5066, 1.442695
        %v5070 = vpow.pop %v5069
        %v5071 = vmul.f32 %v5061, %v5068
        %v5072 = vmul.f32 %v5062, %v5070
        %v5073 = vsub.f32 1.0, %v5071
        %v5074 = vsub.f32 1.0, %v5072
        %v5075 = vmul.f32 %v5007, %v5073
        %v5076 = vmul.f32 %v5008, %v5074
        %v5077 = vadd.f32 %v5075, 1.0
        %v5078 = vadd.f32 %v5076, 1.0
        %v5079 = vmul.f32 %v5001, %v5077
        %v5080 = vmul.f32 %v5002, %v5078
        %v5081 = vpack.c.bf16 %v5079, %v5079
        %v5082 = vpack.c.bf16 %v5080, %v5080
        %s5083 = scalar_lea.vmem %s14, 128
        %v5084 = vld [vmem:[%s5083] sm:$0xf]
        %v5085 = vld [vmem:[%s5083 + $0x4] sm:$0xf]
        %v5086 = vld [vmem:[%s5083 + $0x8] sm:$0xf]
        %v5087 = vld [vmem:[%s5083 + $0xc] sm:$0xf]
        %v5088 = vld [vmem:[%s5083 + $0x10] sm:$0xf]
        %v5089 = vld [vmem:[%s5083 + $0x14] sm:$0xf]
        %v5090 = vld [vmem:[%s5083 + $0x18] sm:$0xf]
        %v5091 = vld [vmem:[%s5083 + $0x1c] sm:$0xf]
        %v5092 = vld [vmem:[%s5083 + $0x20] sm:$0xf]
        %v5093 = vld [vmem:[%s5083 + $0x24] sm:$0xf]
        %v5094 = vld [vmem:[%s5083 + $0x28] sm:$0xf]
        %v5095 = vld [vmem:[%s5083 + $0x2c] sm:$0xf]
        %v5096 = vld [vmem:[%s5083 + $0x30] sm:$0xf]
        %v5097 = vld [vmem:[%s5083 + $0x34] sm:$0xf]
        %v5098 = vld [vmem:[%s5083 + $0x38] sm:$0xf]
        %v5099 = vld [vmem:[%s5083 + $0x3c] sm:$0xf]
        %v5100 = vld [vmem:[%s5083 + $0x40] sm:$0xf]
        %v5101 = vld [vmem:[%s5083 + $0x44] sm:$0xf]
        %v5102 = vld [vmem:[%s5083 + $0x48] sm:$0xf]
        %v5103 = vld [vmem:[%s5083 + $0x4c] sm:$0xf]
        %v5104 = vld [vmem:[%s5083 + $0x50] sm:$0xf]
        %v5105 = vld [vmem:[%s5083 + $0x54] sm:$0xf]
        %v5106 = vld [vmem:[%s5083 + $0x58] sm:$0xf]
        %v5107 = vld [vmem:[%s5083 + $0x5c] sm:$0xf]
        %v5108 = vld [vmem:[%s5083 + $0x60] sm:$0xf]
        %v5109 = vld [vmem:[%s5083 + $0x64] sm:$0xf]
        %v5110 = vld [vmem:[%s5083 + $0x68] sm:$0xf]
        %v5111 = vld [vmem:[%s5083 + $0x6c] sm:$0xf]
        %v5112 = vld [vmem:[%s5083 + $0x70] sm:$0xf]
        %v5113 = vld [vmem:[%s5083 + $0x74] sm:$0xf]
        %v5114 = vld [vmem:[%s5083 + $0x78] sm:$0xf]
        %v5115 = vld [vmem:[%s5083 + $0x7c] sm:$0xf]
        %s5116 = scalar_lea.vmem %s15, 1
        %v5117 = vld [vmem:[%s5116] sm:$0x1]
        %v5119 = vperm.slane %v5117, 0
        %v5153 = vunpack.c.l.b16 %v5084
        %v5154 = vunpack.c.l.b16 %v5085
        %v5155 = vunpack.c.l.b16 %v5086
        %v5156 = vunpack.c.l.b16 %v5087
        %v5157 = vunpack.c.l.b16 %v5088
        %v5158 = vunpack.c.l.b16 %v5089
        %v5159 = vunpack.c.l.b16 %v5090
        %v5160 = vunpack.c.l.b16 %v5091
        %v5161 = vunpack.c.l.b16 %v5092
        %v5162 = vunpack.c.l.b16 %v5093
        %v5163 = vunpack.c.l.b16 %v5094
        %v5164 = vunpack.c.l.b16 %v5095
        %v5165 = vunpack.c.l.b16 %v5096
        %v5166 = vunpack.c.l.b16 %v5097
        %v5167 = vunpack.c.l.b16 %v5098
        %v5168 = vunpack.c.l.b16 %v5099
        %v5169 = vunpack.c.l.b16 %v5100
        %v5170 = vunpack.c.l.b16 %v5101
        %v5171 = vunpack.c.l.b16 %v5102
        %v5172 = vunpack.c.l.b16 %v5103
        %v5173 = vunpack.c.l.b16 %v5104
        %v5174 = vunpack.c.l.b16 %v5105
        %v5175 = vunpack.c.l.b16 %v5106
        %v5176 = vunpack.c.l.b16 %v5107
        %v5177 = vunpack.c.l.b16 %v5108
        %v5178 = vunpack.c.l.b16 %v5109
        %v5179 = vunpack.c.l.b16 %v5110
        %v5180 = vunpack.c.l.b16 %v5111
        %v5181 = vunpack.c.l.b16 %v5112
        %v5182 = vunpack.c.l.b16 %v5113
        %v5183 = vunpack.c.l.b16 %v5114
        %v5184 = vunpack.c.l.b16 %v5115
        %v5185 = vpack.c.b16 %v5154, %v5153
        %v5186 = vpack.c.b16 %v5156, %v5155
        %v5187 = vpack.c.b16 %v5158, %v5157
        %v5188 = vpack.c.b16 %v5160, %v5159
        %v5189 = vpack.c.b16 %v5162, %v5161
        %v5190 = vpack.c.b16 %v5164, %v5163
        %v5191 = vpack.c.b16 %v5166, %v5165
        %v5192 = vpack.c.b16 %v5168, %v5167
        %v5193 = vpack.c.b16 %v5170, %v5169
        %v5194 = vpack.c.b16 %v5172, %v5171
        %v5195 = vpack.c.b16 %v5174, %v5173
        %v5196 = vpack.c.b16 %v5176, %v5175
        %v5197 = vpack.c.b16 %v5178, %v5177
        %v5198 = vpack.c.b16 %v5180, %v5179
        %v5199 = vpack.c.b16 %v5182, %v5181
        %v5200 = vpack.c.b16 %v5184, %v5183
        %5217 = vmatpush.bf16.msra.mxu0 %v5192
        %5218 = vmatpush.bf16.msra.mxu0 %v5191
        %5219 = vmatpush.bf16.msra.mxu0 %v5190
        %5220 = vmatpush.bf16.msra.mxu0 %v5189
        %5221 = vmatpush.bf16.msra.mxu0 %v5188
        %5222 = vmatpush.bf16.msra.mxu0 %v5187
        %5223 = vmatpush.bf16.msra.mxu0 %v5186
        %5224 = vmatpush.bf16.msra.mxu0 %v5185
        %5225 = vmatmul.bf16.gmra.mxu0 %v5081
        %v5226 = vpop.f32.mrf.mxu0
        %v5227 = vadd.f32 %v5119, %v5226
        %v5228 = vpop.f32.mrf.mxu0
        %5229 = vdwg.mxu0
        %5230 = vmatpush.bf16.msra.mxu0 %v5200
        %5231 = vmatpush.bf16.msra.mxu0 %v5199
        %5232 = vmatpush.bf16.msra.mxu0 %v5198
        %5233 = vmatpush.bf16.msra.mxu0 %v5197
        %5234 = vmatpush.bf16.msra.mxu0 %v5196
        %5235 = vmatpush.bf16.msra.mxu0 %v5195
        %5236 = vmatpush.bf16.msra.mxu0 %v5194
        %5237 = vmatpush.bf16.msra.mxu0 %v5193
        %5238 = vmatmul.bf16.gmra.mxu0 %v5082
        %v5239 = vpop.f32.mrf.mxu0
        %v5240 = vadd.f32 %v5227, %v5239
        %v5241 = vpop.f32.mrf.mxu0
        %5242 = vdwg.mxu0
        %v5244 = vrot.slane %v5240, 1
        %v5245 = vrot.slane %v5240, 2
        %v5246 = vrot.slane %v5240, 3
        %v5247 = vrot.slane %v5240, 4
        %v5248 = vrot.slane %v5240, 5
        %v5249 = vrot.slane %v5240, 6
        %v5250 = vrot.slane %v5240, 7
        %v5259 = vadd.f32 %v4823, %v5240
        %v5260 = vadd.f32 %v4824, %v5244
        %v5261 = vadd.f32 %v4825, %v5245
        %v5262 = vadd.f32 %v4826, %v5246
        %v5263 = vadd.f32 %v4827, %v5247
        %v5264 = vadd.f32 %v4828, %v5248
        %v5265 = vadd.f32 %v4829, %v5249
        %v5266 = vadd.f32 %v4830, %v5250
        %s5267 = scalar_lea.vmem %s16, 1
        %v5268 = vld [vmem:[%s5267] sm:$0x1]
        %s5269 = scalar_lea.vmem %s17, 1
        %v5270 = vld [vmem:[%s5269] sm:$0x1]
        %v5279 = vrot.slane %v5260, 7
        %v5280 = vsel %vm2173, %v5279, %v5259
        %v5281 = vrot.slane %v5261, 6
        %v5282 = vsel %vm2177, %v5281, %v5280
        %v5283 = vrot.slane %v5262, 5
        %v5284 = vsel %vm2181, %v5283, %v5282
        %v5285 = vrot.slane %v5263, 4
        %v5286 = vsel %vm2715, %v5285, %v5284
        %v5287 = vrot.slane %v5264, 3
        %v5288 = vsel %vm2718, %v5287, %v5286
        %v5289 = vrot.slane %v5265, 2
        %v5290 = vsel %vm2721, %v5289, %v5288
        %v5291 = vrot.slane %v5266, 1
        %v5292 = vsel %vm2724, %v5291, %v5290
        %5294 = vadd.xlane.f32.xlu0 %v5292
        %v5295 = vpop.xlane.xlu0 %5294
        %v5296 = vmul.f32 %v5295, %v3337
        %v5298 = vrot.slane %v5296, 1
        %v5299 = vrot.slane %v5296, 2
        %v5300 = vrot.slane %v5296, 3
        %v5301 = vrot.slane %v5296, 4
        %v5302 = vrot.slane %v5296, 5
        %v5303 = vrot.slane %v5296, 6
        %v5304 = vrot.slane %v5296, 7
        %v5313 = vsub.f32 %v5259, %v5296
        %v5314 = vsub.f32 %v5260, %v5298
        %v5315 = vsub.f32 %v5261, %v5299
        %v5316 = vsub.f32 %v5262, %v5300
        %v5317 = vsub.f32 %v5263, %v5301
        %v5318 = vsub.f32 %v5264, %v5302
        %v5319 = vsub.f32 %v5265, %v5303
        %v5320 = vsub.f32 %v5266, %v5304
        %v5321 = vmul.f32 %v5313, %v5313
        %v5322 = vmul.f32 %v5314, %v5314
        %v5323 = vmul.f32 %v5315, %v5315
        %v5324 = vmul.f32 %v5316, %v5316
        %v5325 = vmul.f32 %v5317, %v5317
        %v5326 = vmul.f32 %v5318, %v5318
        %v5327 = vmul.f32 %v5319, %v5319
        %v5328 = vmul.f32 %v5320, %v5320
        %v5337 = vrot.slane %v5322, 7
        %v5338 = vsel %vm2173, %v5337, %v5321
        %v5339 = vrot.slane %v5323, 6
        %v5340 = vsel %vm2177, %v5339, %v5338
        %v5341 = vrot.slane %v5324, 5
        %v5342 = vsel %vm2181, %v5341, %v5340
        %v5343 = vrot.slane %v5325, 4
        %v5344 = vsel %vm2715, %v5343, %v5342
        %v5345 = vrot.slane %v5326, 3
        %v5346 = vsel %vm2718, %v5345, %v5344
        %v5347 = vrot.slane %v5327, 2
        %v5348 = vsel %vm2721, %v5347, %v5346
        %v5349 = vrot.slane %v5328, 1
        %v5350 = vsel %vm2724, %v5349, %v5348
        %5352 = vadd.xlane.f32.xlu0 %v5350
        %v5353 = vpop.xlane.xlu0 %5352
        %v5354 = vmul.f32 %v5353, %v3337
        %v5355 = vadd.f32 %v5354, 1e-05
        %v5356 = vrsqrt.pop %v5355
        %v5357 = vmul.f32 %v5356, %v5355
        %v5358 = vmul.f32 %v5357, %v5356
        %v5359 = vmul.f32 0.5, %v5358
        %v5360 = vsub.f32 1.5, %v5359
        %v5361 = vmul.f32 %v5356, %v5360
        %vm5362 = vweird.f32 %v5355
        %vm5363 = vweird.f32 %v5356
        %vm5364 = vmor %vm5362, %vm5363
        %v5365 = vsel %vm5364, %v5356, %v5361
        %v5367 = vrot.slane %v5365, 1
        %v5368 = vrot.slane %v5365, 2
        %v5369 = vrot.slane %v5365, 3
        %v5370 = vrot.slane %v5365, 4
        %v5371 = vrot.slane %v5365, 5
        %v5372 = vrot.slane %v5365, 6
        %v5373 = vrot.slane %v5365, 7
        %v5382 = vmul.f32 %v5313, %v5365
        %v5383 = vmul.f32 %v5314, %v5367
        %v5384 = vmul.f32 %v5315, %v5368
        %v5385 = vmul.f32 %v5316, %v5369
        %v5386 = vmul.f32 %v5317, %v5370
        %v5387 = vmul.f32 %v5318, %v5371
        %v5388 = vmul.f32 %v5319, %v5372
        %v5389 = vmul.f32 %v5320, %v5373
        %v5391 = vperm.slane %v5268, 0
        %v5393 = vmul.f32 %v5382, %v5391
        %v5394 = vmul.f32 %v5383, %v5391
        %v5395 = vmul.f32 %v5384, %v5391
        %v5396 = vmul.f32 %v5385, %v5391
        %v5397 = vmul.f32 %v5386, %v5391
        %v5398 = vmul.f32 %v5387, %v5391
        %v5399 = vmul.f32 %v5388, %v5391
        %v5400 = vmul.f32 %v5389, %v5391
        %v5402 = vperm.slane %v5270, 0
        %v5404 = vadd.f32 %v5393, %v5402
        %v5405 = vadd.f32 %v5394, %v5402
        %v5406 = vadd.f32 %v5395, %v5402
        %v5407 = vadd.f32 %v5396, %v5402
        %v5408 = vadd.f32 %v5397, %v5402
        %v5409 = vadd.f32 %v5398, %v5402
        %v5410 = vadd.f32 %v5399, %v5402
        %v5411 = vadd.f32 %v5400, %v5402
        %v5412 = vld [vmem:[%s18] sm:$0x1]
        %v5413 = vld [vmem:[%s19] sm:$0x1]
        %v5422 = vrot.slane %v5405, 7
        %v5423 = vsel %vm2173, %v5422, %v5404
        %v5424 = vrot.slane %v5406, 6
        %v5425 = vsel %vm2177, %v5424, %v5423
        %v5426 = vrot.slane %v5407, 5
        %v5427 = vsel %vm2181, %v5426, %v5425
        %v5428 = vrot.slane %v5408, 4
        %v5429 = vsel %vm2715, %v5428, %v5427
        %v5430 = vrot.slane %v5409, 3
        %v5431 = vsel %vm2718, %v5430, %v5429
        %v5432 = vrot.slane %v5410, 2
        %v5433 = vsel %vm2721, %v5432, %v5431
        %v5434 = vrot.slane %v5411, 1
        %v5435 = vsel %vm2724, %v5434, %v5433
        %5437 = vadd.xlane.f32.xlu0 %v5435
        %v5438 = vpop.xlane.xlu0 %5437
        %v5439 = vmul.f32 %v5438, %v3337
        %v5441 = vrot.slane %v5439, 1
        %v5442 = vrot.slane %v5439, 2
        %v5443 = vrot.slane %v5439, 3
        %v5444 = vrot.slane %v5439, 4
        %v5445 = vrot.slane %v5439, 5
        %v5446 = vrot.slane %v5439, 6
        %v5447 = vrot.slane %v5439, 7
        %v5456 = vsub.f32 %v5404, %v5439
        %v5457 = vsub.f32 %v5405, %v5441
        %v5458 = vsub.f32 %v5406, %v5442
        %v5459 = vsub.f32 %v5407, %v5443
        %v5460 = vsub.f32 %v5408, %v5444
        %v5461 = vsub.f32 %v5409, %v5445
        %v5462 = vsub.f32 %v5410, %v5446
        %v5463 = vsub.f32 %v5411, %v5447
        %v5464 = vmul.f32 %v5456, %v5456
        %v5465 = vmul.f32 %v5457, %v5457
        %v5466 = vmul.f32 %v5458, %v5458
        %v5467 = vmul.f32 %v5459, %v5459
        %v5468 = vmul.f32 %v5460, %v5460
        %v5469 = vmul.f32 %v5461, %v5461
        %v5470 = vmul.f32 %v5462, %v5462
        %v5471 = vmul.f32 %v5463, %v5463
        %v5480 = vrot.slane %v5465, 7
        %v5481 = vsel %vm2173, %v5480, %v5464
        %v5482 = vrot.slane %v5466, 6
        %v5483 = vsel %vm2177, %v5482, %v5481
        %v5484 = vrot.slane %v5467, 5
        %v5485 = vsel %vm2181, %v5484, %v5483
        %v5486 = vrot.slane %v5468, 4
        %v5487 = vsel %vm2715, %v5486, %v5485
        %v5488 = vrot.slane %v5469, 3
        %v5489 = vsel %vm2718, %v5488, %v5487
        %v5490 = vrot.slane %v5470, 2
        %v5491 = vsel %vm2721, %v5490, %v5489
        %v5492 = vrot.slane %v5471, 1
        %v5493 = vsel %vm2724, %v5492, %v5491
        %5495 = vadd.xlane.f32.xlu0 %v5493
        %v5496 = vpop.xlane.xlu0 %5495
        %v5497 = vmul.f32 %v5496, %v3337
        %v5498 = vadd.f32 %v5497, 1e-05
        %v5499 = vrsqrt.pop %v5498
        %v5500 = vmul.f32 %v5499, %v5498
        %v5501 = vmul.f32 %v5500, %v5499
        %v5502 = vmul.f32 0.5, %v5501
        %v5503 = vsub.f32 1.5, %v5502
        %v5504 = vmul.f32 %v5499, %v5503
        %vm5505 = vweird.f32 %v5498
        %vm5506 = vweird.f32 %v5499
        %vm5507 = vmor %vm5505, %vm5506
        %v5508 = vsel %vm5507, %v5499, %v5504
        %v5510 = vrot.slane %v5508, 1
        %v5511 = vrot.slane %v5508, 2
        %v5512 = vrot.slane %v5508, 3
        %v5513 = vrot.slane %v5508, 4
        %v5514 = vrot.slane %v5508, 5
        %v5515 = vrot.slane %v5508, 6
        %v5516 = vrot.slane %v5508, 7
        %v5525 = vmul.f32 %v5456, %v5508
        %v5526 = vmul.f32 %v5457, %v5510
        %v5527 = vmul.f32 %v5458, %v5511
        %v5528 = vmul.f32 %v5459, %v5512
        %v5529 = vmul.f32 %v5460, %v5513
        %v5530 = vmul.f32 %v5461, %v5514
        %v5531 = vmul.f32 %v5462, %v5515
        %v5532 = vmul.f32 %v5463, %v5516
        %v5534 = vperm.slane %v5412, 0
        %v5536 = vmul.f32 %v5525, %v5534
        %v5537 = vmul.f32 %v5526, %v5534
        %v5538 = vmul.f32 %v5527, %v5534
        %v5539 = vmul.f32 %v5528, %v5534
        %v5540 = vmul.f32 %v5529, %v5534
        %v5541 = vmul.f32 %v5530, %v5534
        %v5542 = vmul.f32 %v5531, %v5534
        %v5543 = vmul.f32 %v5532, %v5534
        %v5545 = vperm.slane %v5413, 0
        %v5547 = vadd.f32 %v5536, %v5545
        %v5548 = vadd.f32 %v5537, %v5545
        %v5549 = vadd.f32 %v5538, %v5545
        %v5550 = vadd.f32 %v5539, %v5545
        %v5551 = vadd.f32 %v5540, %v5545
        %v5552 = vadd.f32 %v5541, %v5545
        %v5553 = vadd.f32 %v5542, %v5545
        %v5554 = vadd.f32 %v5543, %v5545
        %v5555 = vpack.c.bf16 %v5547, %v5547
        %v5556 = vpack.c.bf16 %v5548, %v5548
        %v5557 = vpack.c.bf16 %v5549, %v5549
        %v5558 = vpack.c.bf16 %v5550, %v5550
        %v5559 = vpack.c.bf16 %v5551, %v5551
        %v5560 = vpack.c.bf16 %v5552, %v5552
        %v5561 = vpack.c.bf16 %v5553, %v5553
        %v5562 = vpack.c.bf16 %v5554, %v5554
        %v5563 = vld [vmem:[%s20] sm:$0xf]
        %v5564 = vld [vmem:[%s20 + $0x4] sm:$0xf]
        %v5565 = vld [vmem:[%s20 + $0x8] sm:$0xf]
        %v5566 = vld [vmem:[%s20 + $0xc] sm:$0xf]
        %v5567 = vld [vmem:[%s20 + $0x10] sm:$0xf]
        %v5568 = vld [vmem:[%s20 + $0x14] sm:$0xf]
        %v5569 = vld [vmem:[%s20 + $0x18] sm:$0xf]
        %v5570 = vld [vmem:[%s20 + $0x1c] sm:$0xf]
        %v5571 = vld [vmem:[%s20 + $0x20] sm:$0xf]
        %v5572 = vld [vmem:[%s20 + $0x24] sm:$0xf]
        %v5573 = vld [vmem:[%s20 + $0x28] sm:$0xf]
        %v5574 = vld [vmem:[%s20 + $0x2c] sm:$0xf]
        %v5575 = vld [vmem:[%s20 + $0x30] sm:$0xf]
        %v5576 = vld [vmem:[%s20 + $0x34] sm:$0xf]
        %v5577 = vld [vmem:[%s20 + $0x38] sm:$0xf]
        %v5578 = vld [vmem:[%s20 + $0x3c] sm:$0xf]
        %v5579 = vld [vmem:[%s20 + $0x40] sm:$0xf]
        %v5580 = vld [vmem:[%s20 + $0x44] sm:$0xf]
        %v5581 = vld [vmem:[%s20 + $0x48] sm:$0xf]
        %v5582 = vld [vmem:[%s20 + $0x4c] sm:$0xf]
        %v5583 = vld [vmem:[%s20 + $0x50] sm:$0xf]
        %v5584 = vld [vmem:[%s20 + $0x54] sm:$0xf]
        %v5585 = vld [vmem:[%s20 + $0x58] sm:$0xf]
        %v5586 = vld [vmem:[%s20 + $0x5c] sm:$0xf]
        %v5587 = vld [vmem:[%s20 + $0x60] sm:$0xf]
        %v5588 = vld [vmem:[%s20 + $0x64] sm:$0xf]
        %v5589 = vld [vmem:[%s20 + $0x68] sm:$0xf]
        %v5590 = vld [vmem:[%s20 + $0x6c] sm:$0xf]
        %v5591 = vld [vmem:[%s20 + $0x70] sm:$0xf]
        %v5592 = vld [vmem:[%s20 + $0x74] sm:$0xf]
        %v5593 = vld [vmem:[%s20 + $0x78] sm:$0xf]
        %v5594 = vld [vmem:[%s20 + $0x7c] sm:$0xf]
        %v5595 = vld [vmem:[%s20 + $0x80] sm:$0xf]
        %v5596 = vld [vmem:[%s20 + $0x84] sm:$0xf]
        %v5597 = vld [vmem:[%s20 + $0x88] sm:$0xf]
        %v5598 = vld [vmem:[%s20 + $0x8c] sm:$0xf]
        %v5599 = vld [vmem:[%s20 + $0x90] sm:$0xf]
        %v5600 = vld [vmem:[%s20 + $0x94] sm:$0xf]
        %v5601 = vld [vmem:[%s20 + $0x98] sm:$0xf]
        %v5602 = vld [vmem:[%s20 + $0x9c] sm:$0xf]
        %v5603 = vld [vmem:[%s20 + $0xa0] sm:$0xf]
        %v5604 = vld [vmem:[%s20 + $0xa4] sm:$0xf]
        %v5605 = vld [vmem:[%s20 + $0xa8] sm:$0xf]
        %v5606 = vld [vmem:[%s20 + $0xac] sm:$0xf]
        %v5607 = vld [vmem:[%s20 + $0xb0] sm:$0xf]
        %v5608 = vld [vmem:[%s20 + $0xb4] sm:$0xf]
        %v5609 = vld [vmem:[%s20 + $0xb8] sm:$0xf]
        %v5610 = vld [vmem:[%s20 + $0xbc] sm:$0xf]
        %v5611 = vld [vmem:[%s20 + $0xc0] sm:$0xf]
        %v5612 = vld [vmem:[%s20 + $0xc4] sm:$0xf]
        %v5613 = vld [vmem:[%s20 + $0xc8] sm:$0xf]
        %v5614 = vld [vmem:[%s20 + $0xcc] sm:$0xf]
        %v5615 = vld [vmem:[%s20 + $0xd0] sm:$0xf]
        %v5616 = vld [vmem:[%s20 + $0xd4] sm:$0xf]
        %v5617 = vld [vmem:[%s20 + $0xd8] sm:$0xf]
        %v5618 = vld [vmem:[%s20 + $0xdc] sm:$0xf]
        %v5619 = vld [vmem:[%s20 + $0xe0] sm:$0xf]
        %v5620 = vld [vmem:[%s20 + $0xe4] sm:$0xf]
        %v5621 = vld [vmem:[%s20 + $0xe8] sm:$0xf]
        %v5622 = vld [vmem:[%s20 + $0xec] sm:$0xf]
        %v5623 = vld [vmem:[%s20 + $0xf0] sm:$0xf]
        %v5624 = vld [vmem:[%s20 + $0xf4] sm:$0xf]
        %v5625 = vld [vmem:[%s20 + $0xf8] sm:$0xf]
        %v5626 = vld [vmem:[%s20 + $0xfc] sm:$0xf]
        %v5627 = vld [vmem:[%s20 + $0x100] sm:$0xf]
        %v5628 = vld [vmem:[%s20 + $0x104] sm:$0xf]
        %v5629 = vld [vmem:[%s20 + $0x108] sm:$0xf]
        %v5630 = vld [vmem:[%s20 + $0x10c] sm:$0xf]
        %v5631 = vld [vmem:[%s20 + $0x110] sm:$0xf]
        %v5632 = vld [vmem:[%s20 + $0x114] sm:$0xf]
        %v5633 = vld [vmem:[%s20 + $0x118] sm:$0xf]
        %v5634 = vld [vmem:[%s20 + $0x11c] sm:$0xf]
        %v5635 = vld [vmem:[%s20 + $0x120] sm:$0xf]
        %v5636 = vld [vmem:[%s20 + $0x124] sm:$0xf]
        %v5637 = vld [vmem:[%s20 + $0x128] sm:$0xf]
        %v5638 = vld [vmem:[%s20 + $0x12c] sm:$0xf]
        %v5639 = vld [vmem:[%s20 + $0x130] sm:$0xf]
        %v5640 = vld [vmem:[%s20 + $0x134] sm:$0xf]
        %v5641 = vld [vmem:[%s20 + $0x138] sm:$0xf]
        %v5642 = vld [vmem:[%s20 + $0x13c] sm:$0xf]
        %v5643 = vld [vmem:[%s20 + $0x140] sm:$0xf]
        %v5644 = vld [vmem:[%s20 + $0x144] sm:$0xf]
        %v5645 = vld [vmem:[%s20 + $0x148] sm:$0xf]
        %v5646 = vld [vmem:[%s20 + $0x14c] sm:$0xf]
        %v5647 = vld [vmem:[%s20 + $0x150] sm:$0xf]
        %v5648 = vld [vmem:[%s20 + $0x154] sm:$0xf]
        %v5649 = vld [vmem:[%s20 + $0x158] sm:$0xf]
        %v5650 = vld [vmem:[%s20 + $0x15c] sm:$0xf]
        %v5651 = vld [vmem:[%s20 + $0x160] sm:$0xf]
        %v5652 = vld [vmem:[%s20 + $0x164] sm:$0xf]
        %v5653 = vld [vmem:[%s20 + $0x168] sm:$0xf]
        %v5654 = vld [vmem:[%s20 + $0x16c] sm:$0xf]
        %v5655 = vld [vmem:[%s20 + $0x170] sm:$0xf]
        %v5656 = vld [vmem:[%s20 + $0x174] sm:$0xf]
        %v5657 = vld [vmem:[%s20 + $0x178] sm:$0xf]
        %v5658 = vld [vmem:[%s20 + $0x17c] sm:$0xf]
        %v5659 = vld [vmem:[%s20 + $0x180] sm:$0xf]
        %v5660 = vld [vmem:[%s20 + $0x184] sm:$0xf]
        %v5661 = vld [vmem:[%s20 + $0x188] sm:$0xf]
        %v5662 = vld [vmem:[%s20 + $0x18c] sm:$0xf]
        %v5663 = vld [vmem:[%s20 + $0x190] sm:$0xf]
        %v5664 = vld [vmem:[%s20 + $0x194] sm:$0xf]
        %v5665 = vld [vmem:[%s20 + $0x198] sm:$0xf]
        %v5666 = vld [vmem:[%s20 + $0x19c] sm:$0xf]
        %v5667 = vld [vmem:[%s20 + $0x1a0] sm:$0xf]
        %v5668 = vld [vmem:[%s20 + $0x1a4] sm:$0xf]
        %v5669 = vld [vmem:[%s20 + $0x1a8] sm:$0xf]
        %v5670 = vld [vmem:[%s20 + $0x1ac] sm:$0xf]
        %v5671 = vld [vmem:[%s20 + $0x1b0] sm:$0xf]
        %v5672 = vld [vmem:[%s20 + $0x1b4] sm:$0xf]
        %v5673 = vld [vmem:[%s20 + $0x1b8] sm:$0xf]
        %v5674 = vld [vmem:[%s20 + $0x1bc] sm:$0xf]
        %v5675 = vld [vmem:[%s20 + $0x1c0] sm:$0xf]
        %v5676 = vld [vmem:[%s20 + $0x1c4] sm:$0xf]
        %v5677 = vld [vmem:[%s20 + $0x1c8] sm:$0xf]
        %v5678 = vld [vmem:[%s20 + $0x1cc] sm:$0xf]
        %v5679 = vld [vmem:[%s20 + $0x1d0] sm:$0xf]
        %v5680 = vld [vmem:[%s20 + $0x1d4] sm:$0xf]
        %v5681 = vld [vmem:[%s20 + $0x1d8] sm:$0xf]
        %v5682 = vld [vmem:[%s20 + $0x1dc] sm:$0xf]
        %v5683 = vld [vmem:[%s20 + $0x1e0] sm:$0xf]
        %v5684 = vld [vmem:[%s20 + $0x1e4] sm:$0xf]
        %v5685 = vld [vmem:[%s20 + $0x1e8] sm:$0xf]
        %v5686 = vld [vmem:[%s20 + $0x1ec] sm:$0xf]
        %v5687 = vld [vmem:[%s20 + $0x1f0] sm:$0xf]
        %v5688 = vld [vmem:[%s20 + $0x1f4] sm:$0xf]
        %v5689 = vld [vmem:[%s20 + $0x1f8] sm:$0xf]
        %v5690 = vld [vmem:[%s20 + $0x1fc] sm:$0xf]
        %v5707 = vunpack.c.l.b16 %v5563
        %v5708 = vunpack.c.l.b16 %v5564
        %v5709 = vunpack.c.l.b16 %v5565
        %v5710 = vunpack.c.l.b16 %v5566
        %v5711 = vunpack.c.l.b16 %v5567
        %v5712 = vunpack.c.l.b16 %v5568
        %v5713 = vunpack.c.l.b16 %v5569
        %v5714 = vunpack.c.l.b16 %v5570
        %v5715 = vunpack.c.l.b16 %v5571
        %v5716 = vunpack.c.l.b16 %v5572
        %v5717 = vunpack.c.l.b16 %v5573
        %v5718 = vunpack.c.l.b16 %v5574
        %v5719 = vunpack.c.l.b16 %v5575
        %v5720 = vunpack.c.l.b16 %v5576
        %v5721 = vunpack.c.l.b16 %v5577
        %v5722 = vunpack.c.l.b16 %v5578
        %v5723 = vpack.c.b16 %v5708, %v5707
        %v5724 = vpack.c.b16 %v5710, %v5709
        %v5725 = vpack.c.b16 %v5712, %v5711
        %v5726 = vpack.c.b16 %v5714, %v5713
        %v5727 = vpack.c.b16 %v5716, %v5715
        %v5728 = vpack.c.b16 %v5718, %v5717
        %v5729 = vpack.c.b16 %v5720, %v5719
        %v5730 = vpack.c.b16 %v5722, %v5721
        %5739 = vmatpush.bf16.msra.mxu0 %v5730
        %5740 = vmatpush.bf16.msra.mxu0 %v5729
        %5741 = vmatpush.bf16.msra.mxu0 %v5728
        %5742 = vmatpush.bf16.msra.mxu0 %v5727
        %5743 = vmatpush.bf16.msra.mxu0 %v5726
        %5744 = vmatpush.bf16.msra.mxu0 %v5725
        %5745 = vmatpush.bf16.msra.mxu0 %v5724
        %5746 = vmatpush.bf16.msra.mxu0 %v5723
        %5747 = vmatmul.bf16.gmra.mxu0 %v5555
        %v5748 = vpop.f32.mrf.mxu0
        %v5749 = vadd.f32 0.0, %v5748
        %v5750 = vpop.f32.mrf.mxu0
        %5751 = vdwg.mxu0
        %v5768 = vunpack.c.l.b16 %v5579
        %v5769 = vunpack.c.l.b16 %v5580
        %v5770 = vunpack.c.l.b16 %v5581
        %v5771 = vunpack.c.l.b16 %v5582
        %v5772 = vunpack.c.l.b16 %v5583
        %v5773 = vunpack.c.l.b16 %v5584
        %v5774 = vunpack.c.l.b16 %v5585
        %v5775 = vunpack.c.l.b16 %v5586
        %v5776 = vunpack.c.l.b16 %v5587
        %v5777 = vunpack.c.l.b16 %v5588
        %v5778 = vunpack.c.l.b16 %v5589
        %v5779 = vunpack.c.l.b16 %v5590
        %v5780 = vunpack.c.l.b16 %v5591
        %v5781 = vunpack.c.l.b16 %v5592
        %v5782 = vunpack.c.l.b16 %v5593
        %v5783 = vunpack.c.l.b16 %v5594
        %v5784 = vpack.c.b16 %v5769, %v5768
        %v5785 = vpack.c.b16 %v5771, %v5770
        %v5786 = vpack.c.b16 %v5773, %v5772
        %v5787 = vpack.c.b16 %v5775, %v5774
        %v5788 = vpack.c.b16 %v5777, %v5776
        %v5789 = vpack.c.b16 %v5779, %v5778
        %v5790 = vpack.c.b16 %v5781, %v5780
        %v5791 = vpack.c.b16 %v5783, %v5782
        %5800 = vmatpush.bf16.msra.mxu0 %v5791
        %5801 = vmatpush.bf16.msra.mxu0 %v5790
        %5802 = vmatpush.bf16.msra.mxu0 %v5789
        %5803 = vmatpush.bf16.msra.mxu0 %v5788
        %5804 = vmatpush.bf16.msra.mxu0 %v5787
        %5805 = vmatpush.bf16.msra.mxu0 %v5786
        %5806 = vmatpush.bf16.msra.mxu0 %v5785
        %5807 = vmatpush.bf16.msra.mxu0 %v5784
        %5808 = vmatmul.bf16.gmra.mxu0 %v5556
        %v5809 = vpop.f32.mrf.mxu0
        %v5810 = vadd.f32 0.0, %v5809
        %v5811 = vpop.f32.mrf.mxu0
        %5812 = vdwg.mxu0
        %v5829 = vunpack.c.l.b16 %v5595
        %v5830 = vunpack.c.l.b16 %v5596
        %v5831 = vunpack.c.l.b16 %v5597
        %v5832 = vunpack.c.l.b16 %v5598
        %v5833 = vunpack.c.l.b16 %v5599
        %v5834 = vunpack.c.l.b16 %v5600
        %v5835 = vunpack.c.l.b16 %v5601
        %v5836 = vunpack.c.l.b16 %v5602
        %v5837 = vunpack.c.l.b16 %v5603
        %v5838 = vunpack.c.l.b16 %v5604
        %v5839 = vunpack.c.l.b16 %v5605
        %v5840 = vunpack.c.l.b16 %v5606
        %v5841 = vunpack.c.l.b16 %v5607
        %v5842 = vunpack.c.l.b16 %v5608
        %v5843 = vunpack.c.l.b16 %v5609
        %v5844 = vunpack.c.l.b16 %v5610
        %v5845 = vpack.c.b16 %v5830, %v5829
        %v5846 = vpack.c.b16 %v5832, %v5831
        %v5847 = vpack.c.b16 %v5834, %v5833
        %v5848 = vpack.c.b16 %v5836, %v5835
        %v5849 = vpack.c.b16 %v5838, %v5837
        %v5850 = vpack.c.b16 %v5840, %v5839
        %v5851 = vpack.c.b16 %v5842, %v5841
        %v5852 = vpack.c.b16 %v5844, %v5843
        %5861 = vmatpush.bf16.msra.mxu0 %v5852
        %5862 = vmatpush.bf16.msra.mxu0 %v5851
        %5863 = vmatpush.bf16.msra.mxu0 %v5850
        %5864 = vmatpush.bf16.msra.mxu0 %v5849
        %5865 = vmatpush.bf16.msra.mxu0 %v5848
        %5866 = vmatpush.bf16.msra.mxu0 %v5847
        %5867 = vmatpush.bf16.msra.mxu0 %v5846
        %5868 = vmatpush.bf16.msra.mxu0 %v5845
        %5869 = vmatmul.bf16.gmra.mxu0 %v5557
        %v5870 = vpop.f32.mrf.mxu0
        %v5871 = vadd.f32 0.0, %v5870
        %v5872 = vpop.f32.mrf.mxu0
        %5873 = vdwg.mxu0
        %v5890 = vunpack.c.l.b16 %v5611
        %v5891 = vunpack.c.l.b16 %v5612
        %v5892 = vunpack.c.l.b16 %v5613
        %v5893 = vunpack.c.l.b16 %v5614
        %v5894 = vunpack.c.l.b16 %v5615
        %v5895 = vunpack.c.l.b16 %v5616
        %v5896 = vunpack.c.l.b16 %v5617
        %v5897 = vunpack.c.l.b16 %v5618
        %v5898 = vunpack.c.l.b16 %v5619
        %v5899 = vunpack.c.l.b16 %v5620
        %v5900 = vunpack.c.l.b16 %v5621
        %v5901 = vunpack.c.l.b16 %v5622
        %v5902 = vunpack.c.l.b16 %v5623
        %v5903 = vunpack.c.l.b16 %v5624
        %v5904 = vunpack.c.l.b16 %v5625
        %v5905 = vunpack.c.l.b16 %v5626
        %v5906 = vpack.c.b16 %v5891, %v5890
        %v5907 = vpack.c.b16 %v5893, %v5892
        %v5908 = vpack.c.b16 %v5895, %v5894
        %v5909 = vpack.c.b16 %v5897, %v5896
        %v5910 = vpack.c.b16 %v5899, %v5898
        %v5911 = vpack.c.b16 %v5901, %v5900
        %v5912 = vpack.c.b16 %v5903, %v5902
        %v5913 = vpack.c.b16 %v5905, %v5904
        %5922 = vmatpush.bf16.msra.mxu0 %v5913
        %5923 = vmatpush.bf16.msra.mxu0 %v5912
        %5924 = vmatpush.bf16.msra.mxu0 %v5911
        %5925 = vmatpush.bf16.msra.mxu0 %v5910
        %5926 = vmatpush.bf16.msra.mxu0 %v5909
        %5927 = vmatpush.bf16.msra.mxu0 %v5908
        %5928 = vmatpush.bf16.msra.mxu0 %v5907
        %5929 = vmatpush.bf16.msra.mxu0 %v5906
        %5930 = vmatmul.bf16.gmra.mxu0 %v5558
        %v5931 = vpop.f32.mrf.mxu0
        %v5932 = vadd.f32 0.0, %v5931
        %v5933 = vpop.f32.mrf.mxu0
        %5934 = vdwg.mxu0
        %v5951 = vunpack.c.l.b16 %v5627
        %v5952 = vunpack.c.l.b16 %v5628
        %v5953 = vunpack.c.l.b16 %v5629
        %v5954 = vunpack.c.l.b16 %v5630
        %v5955 = vunpack.c.l.b16 %v5631
        %v5956 = vunpack.c.l.b16 %v5632
        %v5957 = vunpack.c.l.b16 %v5633
        %v5958 = vunpack.c.l.b16 %v5634
        %v5959 = vunpack.c.l.b16 %v5635
        %v5960 = vunpack.c.l.b16 %v5636
        %v5961 = vunpack.c.l.b16 %v5637
        %v5962 = vunpack.c.l.b16 %v5638
        %v5963 = vunpack.c.l.b16 %v5639
        %v5964 = vunpack.c.l.b16 %v5640
        %v5965 = vunpack.c.l.b16 %v5641
        %v5966 = vunpack.c.l.b16 %v5642
        %v5967 = vpack.c.b16 %v5952, %v5951
        %v5968 = vpack.c.b16 %v5954, %v5953
        %v5969 = vpack.c.b16 %v5956, %v5955
        %v5970 = vpack.c.b16 %v5958, %v5957
        %v5971 = vpack.c.b16 %v5960, %v5959
        %v5972 = vpack.c.b16 %v5962, %v5961
        %v5973 = vpack.c.b16 %v5964, %v5963
        %v5974 = vpack.c.b16 %v5966, %v5965
        %5983 = vmatpush.bf16.msra.mxu0 %v5974
        %5984 = vmatpush.bf16.msra.mxu0 %v5973
        %5985 = vmatpush.bf16.msra.mxu0 %v5972
        %5986 = vmatpush.bf16.msra.mxu0 %v5971
        %5987 = vmatpush.bf16.msra.mxu0 %v5970
        %5988 = vmatpush.bf16.msra.mxu0 %v5969
        %5989 = vmatpush.bf16.msra.mxu0 %v5968
        %5990 = vmatpush.bf16.msra.mxu0 %v5967
        %5991 = vmatmul.bf16.gmra.mxu0 %v5559
        %v5992 = vpop.f32.mrf.mxu0
        %v5993 = vadd.f32 0.0, %v5992
        %v5994 = vpop.f32.mrf.mxu0
        %5995 = vdwg.mxu0
        %v6012 = vunpack.c.l.b16 %v5643
        %v6013 = vunpack.c.l.b16 %v5644
        %v6014 = vunpack.c.l.b16 %v5645
        %v6015 = vunpack.c.l.b16 %v5646
        %v6016 = vunpack.c.l.b16 %v5647
        %v6017 = vunpack.c.l.b16 %v5648
        %v6018 = vunpack.c.l.b16 %v5649
        %v6019 = vunpack.c.l.b16 %v5650
        %v6020 = vunpack.c.l.b16 %v5651
        %v6021 = vunpack.c.l.b16 %v5652
        %v6022 = vunpack.c.l.b16 %v5653
        %v6023 = vunpack.c.l.b16 %v5654
        %v6024 = vunpack.c.l.b16 %v5655
        %v6025 = vunpack.c.l.b16 %v5656
        %v6026 = vunpack.c.l.b16 %v5657
        %v6027 = vunpack.c.l.b16 %v5658
        %v6028 = vpack.c.b16 %v6013, %v6012
        %v6029 = vpack.c.b16 %v6015, %v6014
        %v6030 = vpack.c.b16 %v6017, %v6016
        %v6031 = vpack.c.b16 %v6019, %v6018
        %v6032 = vpack.c.b16 %v6021, %v6020
        %v6033 = vpack.c.b16 %v6023, %v6022
        %v6034 = vpack.c.b16 %v6025, %v6024
        %v6035 = vpack.c.b16 %v6027, %v6026
        %6044 = vmatpush.bf16.msra.mxu0 %v6035
        %6045 = vmatpush.bf16.msra.mxu0 %v6034
        %6046 = vmatpush.bf16.msra.mxu0 %v6033
        %6047 = vmatpush.bf16.msra.mxu0 %v6032
        %6048 = vmatpush.bf16.msra.mxu0 %v6031
        %6049 = vmatpush.bf16.msra.mxu0 %v6030
        %6050 = vmatpush.bf16.msra.mxu0 %v6029
        %6051 = vmatpush.bf16.msra.mxu0 %v6028
        %6052 = vmatmul.bf16.gmra.mxu0 %v5560
        %v6053 = vpop.f32.mrf.mxu0
        %v6054 = vadd.f32 0.0, %v6053
        %v6055 = vpop.f32.mrf.mxu0
        %6056 = vdwg.mxu0
        %v6073 = vunpack.c.l.b16 %v5659
        %v6074 = vunpack.c.l.b16 %v5660
        %v6075 = vunpack.c.l.b16 %v5661
        %v6076 = vunpack.c.l.b16 %v5662
        %v6077 = vunpack.c.l.b16 %v5663
        %v6078 = vunpack.c.l.b16 %v5664
        %v6079 = vunpack.c.l.b16 %v5665
        %v6080 = vunpack.c.l.b16 %v5666
        %v6081 = vunpack.c.l.b16 %v5667
        %v6082 = vunpack.c.l.b16 %v5668
        %v6083 = vunpack.c.l.b16 %v5669
        %v6084 = vunpack.c.l.b16 %v5670
        %v6085 = vunpack.c.l.b16 %v5671
        %v6086 = vunpack.c.l.b16 %v5672
        %v6087 = vunpack.c.l.b16 %v5673
        %v6088 = vunpack.c.l.b16 %v5674
        %v6089 = vpack.c.b16 %v6074, %v6073
        %v6090 = vpack.c.b16 %v6076, %v6075
        %v6091 = vpack.c.b16 %v6078, %v6077
        %v6092 = vpack.c.b16 %v6080, %v6079
        %v6093 = vpack.c.b16 %v6082, %v6081
        %v6094 = vpack.c.b16 %v6084, %v6083
        %v6095 = vpack.c.b16 %v6086, %v6085
        %v6096 = vpack.c.b16 %v6088, %v6087
        %6105 = vmatpush.bf16.msra.mxu0 %v6096
        %6106 = vmatpush.bf16.msra.mxu0 %v6095
        %6107 = vmatpush.bf16.msra.mxu0 %v6094
        %6108 = vmatpush.bf16.msra.mxu0 %v6093
        %6109 = vmatpush.bf16.msra.mxu0 %v6092
        %6110 = vmatpush.bf16.msra.mxu0 %v6091
        %6111 = vmatpush.bf16.msra.mxu0 %v6090
        %6112 = vmatpush.bf16.msra.mxu0 %v6089
        %6113 = vmatmul.bf16.gmra.mxu0 %v5561
        %v6114 = vpop.f32.mrf.mxu0
        %v6115 = vadd.f32 0.0, %v6114
        %v6116 = vpop.f32.mrf.mxu0
        %6117 = vdwg.mxu0
        %v6134 = vunpack.c.l.b16 %v5675
        %v6135 = vunpack.c.l.b16 %v5676
        %v6136 = vunpack.c.l.b16 %v5677
        %v6137 = vunpack.c.l.b16 %v5678
        %v6138 = vunpack.c.l.b16 %v5679
        %v6139 = vunpack.c.l.b16 %v5680
        %v6140 = vunpack.c.l.b16 %v5681
        %v6141 = vunpack.c.l.b16 %v5682
        %v6142 = vunpack.c.l.b16 %v5683
        %v6143 = vunpack.c.l.b16 %v5684
        %v6144 = vunpack.c.l.b16 %v5685
        %v6145 = vunpack.c.l.b16 %v5686
        %v6146 = vunpack.c.l.b16 %v5687
        %v6147 = vunpack.c.l.b16 %v5688
        %v6148 = vunpack.c.l.b16 %v5689
        %v6149 = vunpack.c.l.b16 %v5690
        %v6150 = vpack.c.b16 %v6135, %v6134
        %v6151 = vpack.c.b16 %v6137, %v6136
        %v6152 = vpack.c.b16 %v6139, %v6138
        %v6153 = vpack.c.b16 %v6141, %v6140
        %v6154 = vpack.c.b16 %v6143, %v6142
        %v6155 = vpack.c.b16 %v6145, %v6144
        %v6156 = vpack.c.b16 %v6147, %v6146
        %v6157 = vpack.c.b16 %v6149, %v6148
        %6166 = vmatpush.bf16.msra.mxu0 %v6157
        %6167 = vmatpush.bf16.msra.mxu0 %v6156
        %6168 = vmatpush.bf16.msra.mxu0 %v6155
        %6169 = vmatpush.bf16.msra.mxu0 %v6154
        %6170 = vmatpush.bf16.msra.mxu0 %v6153
        %6171 = vmatpush.bf16.msra.mxu0 %v6152
        %6172 = vmatpush.bf16.msra.mxu0 %v6151
        %6173 = vmatpush.bf16.msra.mxu0 %v6150
        %6174 = vmatmul.bf16.gmra.mxu0 %v5562
        %v6175 = vpop.f32.mrf.mxu0
        %v6176 = vadd.f32 0.0, %v6175
        %v6177 = vpop.f32.mrf.mxu0
        %6178 = vdwg.mxu0
        %v6179 = vld [vmem:[%s21] sm:$0xff]
        %v6181 = vrot.slane %v6179, 1
        %v6182 = vrot.slane %v6179, 2
        %v6183 = vrot.slane %v6179, 3
        %v6184 = vrot.slane %v6179, 4
        %v6185 = vrot.slane %v6179, 5
        %v6186 = vrot.slane %v6179, 6
        %v6187 = vrot.slane %v6179, 7
        %v6196 = vadd.f32 %v5749, %v6179
        %v6197 = vadd.f32 %v5810, %v6181
        %v6198 = vadd.f32 %v5871, %v6182
        %v6199 = vadd.f32 %v5932, %v6183
        %v6200 = vadd.f32 %v5993, %v6184
        %v6201 = vadd.f32 %v6054, %v6185
        %v6202 = vadd.f32 %v6115, %v6186
        %v6203 = vadd.f32 %v6176, %v6187
        %v6212 = vrot.slane %v6197, 7
        %v6213 = vsel %vm2173, %v6212, %v6196
        %v6214 = vrot.slane %v6198, 6
        %v6215 = vsel %vm2177, %v6214, %v6213
        %v6216 = vrot.slane %v6199, 5
        %v6217 = vsel %vm2181, %v6216, %v6215
        %v6218 = vrot.slane %v6200, 4
        %v6219 = vsel %vm2715, %v6218, %v6217
        %v6220 = vrot.slane %v6201, 3
        %v6221 = vsel %vm2718, %v6220, %v6219
        %v6222 = vrot.slane %v6202, 2
        %v6223 = vsel %vm2721, %v6222, %v6221
        %v6224 = vrot.slane %v6203, 1
        %v6225 = vsel %vm2724, %v6224, %v6223
        %6227 = vst.msk [vmem:[%s676] sm:$0xff] %vm2283, %v6225
        %s6228 = sand.u32 %s511, 1
        %s6229 = scalar_lea.sflag [#allocation3], %s6228
        %s6230 = sand.u32 %s511, 1
        %s6231 = smul.addr %s6230, 8
        %s6232 = scalar_lea.vmem [#allocation2], %s6231
        // Predicated region
        $region109: #{_lambda_.1} parent=107 // pred_check
          %p6233 = pneg %p521
        $region110: #{_lambda_.1} parent=107 // pred_check_branch
          %6235 = sbr.rel (%p6233) target = $region112
        $region111: #{_lambda_.1} parent=107 // pred_region
          %6237 = vsyncadd %s6229, 0
          %s6238 = smul.addr %s36, 8
          %s6239 = scalar_lea.hbm %s22, %s6238
          %s6241 = sshll.u32 %s6232, 4
          %s6242 = int_to_ptr.vmem [resolvable:$true] %s6241
          %s6243 = sshll.u32 %s6239, 4
          %s6244 = int_to_ptr.hbm [resolvable:$true] %s6243
          %6246 = dma.vmem_to_hbm [thread:$0]  %s6242, 128, %s6244, %s6229
        $region112: #{_lambda_.1} parent=107 // pred_fallthru
          _
      $region108: #{_lambda_.1} parent=5 // pred_fallthru
        _
      %p6247 = scmp.le.s32.totalorder 2, %s31
      // Predicated region
      $region113: #{_lambda_.1} parent=5 // pred_check
        %p6248 = pneg %p6247
      $region114: #{_lambda_.1} parent=5 // pred_check_branch
        %6250 = sbr.rel (%p6248) target = $region116
      $region115: #{_lambda_.1} parent=5 // pred_region
        %s6251 = ssub.s32 %s31, 2
        // Predicated region
        $region117: #{_lambda_.1} parent=115 // pred_check
          %p6252 = pneg %p527
        $region118: #{_lambda_.1} parent=115 // pred_check_branch
          %6254 = sbr.rel (%p6252) target = $region120
        $region119: #{_lambda_.1} parent=115 // pred_region
          %s6255 = sand.u32 %s512, 1
          %s6256 = scalar_lea.sflag [#allocation3], %s6255
          %s6257 = sand.u32 %s512, 1
          %s6258 = smul.addr %s6257, 8
          %s6259 = scalar_lea.vmem [#allocation2], %s6258
          %6261 = dma.done %s6256, 128
        $region120: #{_lambda_.1} parent=115 // pred_fallthru
          _
      $region116: #{_lambda_.1} parent=5 // pred_fallthru
        _
    $region6: #{_lambda_.1} parent=1 // loop_footer
      %s35 = sadd.s32 1, %s31
    $region7: #{_lambda_.1} parent=1 // loop_footer_branch
      %30 = sbr.rel target = $region3
    $region8: #{_lambda_.1} parent=1 // loop_exit
      _
    %6262 = vsyncpa [#allocation3], 1
    %s6263 = scalar_lea.sflag [#allocation3], 1
    %6264 = vsyncpa %s6263, 1

</llo_original>
